<compile_context>
chip_gen: v6e
topology: v6e:2x2x1
jax: 0.10.0
libtpu: 0.0.40
codegen_flags: <defaults>
</compile_context>

<pallas_src>
import functools

import jax
import jax.numpy as jnp
from jax.experimental import pallas as pl
from jax.experimental.pallas import tpu as pltpu

_NEG_LOGIT = -1e30  # bias value for padded output lanes -> exp underflows to exactly 0


def _round_up(x, m):
    return ((x + m - 1) // m) * m


def _mlp_softmax_kernel(num_hidden_layers, *refs):
    """One batch tile of the full forward pass.

    refs = (x_ref,
            w0_ref, b0_ref, ..., w_{L-1}_ref, b_{L-1}_ref,   # hidden stack (W in bf16)
            wout_ref, bout_ref,
            out_ref)
    """
    x_ref = refs[0]
    out_ref = refs[-1]
    param_refs = refs[1:-1]

    h = x_ref[...]                       # (TB, in_pad) bf16 (DMA'd as bf16)
    idx = 0
    for _ in range(num_hidden_layers):
        w = param_refs[idx][...]         # (d_in_pad, hid_pad) bf16
        b = param_refs[idx + 1][...]     # (1, hid_pad) f32
        idx += 2
        h_mm = h if h.dtype == jnp.bfloat16 else h.astype(jnp.bfloat16)
        h = jnp.dot(h_mm, w, preferred_element_type=jnp.float32) + b
        h = jnp.maximum(h, 0.0)          # ReLU in f32

    # dropout(p=0.0) is identity; the module's extra ReLU is idempotent -> elided.

    w_out = param_refs[idx][...]         # (hid_pad, out_pad) bf16
    b_out = param_refs[idx + 1][...]     # (1, out_pad) f32; padded lanes hold -1e30
    h_mm = h if h.dtype == jnp.bfloat16 else h.astype(jnp.bfloat16)
    logits = jnp.dot(h_mm, w_out, preferred_element_type=jnp.float32) + b_out

    # Padded lane columns: zero weight columns + (-1e30) bias -> exp underflows to 0,
    # so they never contribute to the softmax denominator. No iota/where mask needed.
    m = jnp.max(logits, axis=1, keepdims=True)
    e = jnp.exp(logits - m)
    denom = jnp.sum(e, axis=1, keepdims=True)
    # Exact reciprocal (EUP slot): softmax rows sum to 1 to ~1 ulp.
    out_ref[...] = e * pl.reciprocal(denom, approx=False)


def neural_network_forward(x, hidden_params, out_params, *, batch_tile=1024,
                           use_core_parallel=False):
    """x: (B, input_size) f32; hidden_params: list of (W, b) with W (in, out); out_params: (W, b)."""
    num_hidden_layers = len(hidden_params)
    batch, input_size = x.shape
    hidden_size = hidden_params[0][0].shape[1] if hidden_params else input_size
    output_size = out_params[0].shape[1]

    # Lane-dense / MXU-friendly padded feature sizes.
    in_pad = _round_up(input_size, 128)
    hid_pad = _round_up(hidden_size, 128)
    out_pad = _round_up(output_size, 128)

    # Batch tiling policy:
    #  - if the whole 128-padded batch fits under batch_tile -> single grid step
    #    (no per-step overhead, minimal padding waste);
    #  - otherwise use 256-multiple tiles so M fills the 2x256x256 MXU on v6e/v7x.
    b_pad_min = _round_up(batch, 128)
    if b_pad_min <= batch_tile:
        tb = b_pad_min
    else:
        tb = _round_up(batch_tile, 256)
    b_pad = _round_up(batch, tb)

    # Activation tile DMA'd as bf16 (halves HBM->VMEM traffic; accumulation stays f32).
    x_p = jnp.pad(x.astype(jnp.bfloat16),
                  ((0, b_pad - batch), (0, in_pad - input_size)))

    flat_params = []
    in_dim_pad = in_pad
    for w, b in hidden_params:
        w_p = jnp.pad(w.astype(jnp.float32),
                      ((0, in_dim_pad - w.shape[0]), (0, hid_pad - w.shape[1])))
        b2 = b.reshape(1, -1).astype(jnp.float32)
        b_p = jnp.pad(b2, ((0, 0), (0, hid_pad - b2.shape[1])))
        flat_params += [w_p.astype(jnp.bfloat16), b_p]
        in_dim_pad = hid_pad

    w_out, b_out = out_params
    w_out_p = jnp.pad(w_out.astype(jnp.float32),
                      ((0, hid_pad - w_out.shape[0]), (0, out_pad - w_out.shape[1])))
    b_out2 = b_out.reshape(1, -1).astype(jnp.float32)
    # Padded output lanes get a huge negative bias so exp() kills them in-kernel.
    b_out_p = jnp.pad(b_out2, ((0, 0), (0, out_pad - b_out2.shape[1])),
                      constant_values=_NEG_LOGIT)
    flat_params += [w_out_p.astype(jnp.bfloat16), b_out_p]

    grid = (b_pad // tb,)

    x_spec = pl.BlockSpec((tb, in_pad), lambda i: (i, 0))
    out_spec = pl.BlockSpec((tb, out_pad), lambda i: (i, 0))

    def make_param_specs(single_buffer):
        specs = []
        for p in flat_params:
            # Constant block index -> fetched once, VMEM-resident across all grid steps.
            if single_buffer and hasattr(pl, "Buffered"):
                specs.append(pl.BlockSpec(p.shape, lambda i: (0, 0),
                                          pipeline_mode=pl.Buffered(1)))
            else:
                specs.append(pl.BlockSpec(p.shape, lambda i: (0, 0)))
        return specs

    # Explicit VMEM budget: params + double-buffered x/out tiles + live f32 intermediates.
    param_bytes = sum(int(p.size) * p.dtype.itemsize for p in flat_params)
    act_bytes = tb * max(in_pad, hid_pad, out_pad) * 4
    io_bytes = 2 * (tb * in_pad * 2) + 2 * (tb * out_pad * 4)
    vmem_limit = int(1.5 * (param_bytes + io_bytes + 3 * act_bytes)) + (4 << 20)
    vmem_limit = max(32 << 20, min(vmem_limit, 64 << 20))  # safe on all generations

    if use_core_parallel:
        # v7x: actually shard batch tiles across the 2 TensorCores.
        dim_sem = (pltpu.CORE_PARALLEL,)
    else:
        dim_sem = ("parallel",)

    flops = 2 * b_pad * (in_pad * hid_pad
                         + max(num_hidden_layers - 1, 0) * hid_pad * hid_pad
                         + hid_pad * out_pad)
    transcendentals = b_pad * out_pad  # exp in the softmax
    bytes_accessed = (int(x_p.size) * x_p.dtype.itemsize
                      + param_bytes
                      + b_pad * out_pad * 4)

    kernel = functools.partial(_mlp_softmax_kernel, num_hidden_layers)

    def run(param_specs):
        return pl.pallas_call(
            kernel,
            out_shape=jax.ShapeDtypeStruct((b_pad, out_pad), jnp.float32),
            grid_spec=pltpu.PrefetchScalarGridSpec(
                num_scalar_prefetch=0,
                grid=grid,
                in_specs=[x_spec] + param_specs,
                out_specs=out_spec,
            ),
            compiler_params=pltpu.CompilerParams(
                dimension_semantics=dim_sem,
                vmem_limit_bytes=vmem_limit,
            ),
            cost_estimate=pl.CostEstimate(
                flops=flops,
                transcendentals=transcendentals,
                bytes_accessed=bytes_accessed,
            ),
        )(x_p, *flat_params)

    try:
        out_padded = run(make_param_specs(single_buffer=True))
    except Exception:
        # TODO(synk): pipeline_mode=pl.Buffered(1) not supported by this jax version /
        # execution mode; fall back to default double-buffered parameter blocks.
        out_padded = run(make_param_specs(single_buffer=False))

    return out_padded[:batch, :output_size]


def init_params(key, input_size, hidden_size, hidden_layers, output_size):
    """Deterministic synthetic parameter init (weights stored as (in, out))."""
    hidden_params = []
    in_dim = input_size
    for _ in range(hidden_layers):
        key, kw, kb = jax.random.split(key, 3)
        w = jax.random.normal(kw, (in_dim, hidden_size), dtype=jnp.float32) * 0.1
        b = jax.random.normal(kb, (1, hidden_size), dtype=jnp.float32) * 0.01
        hidden_params.append((w, b))
        in_dim = hidden_size
    key, kw, kb = jax.random.split(key, 3)
    w_out = jax.random.normal(kw, (hidden_size, output_size), dtype=jnp.float32) * 0.1
    b_out = jax.random.normal(kb, (1, output_size), dtype=jnp.float32) * 0.01
    return hidden_params, (w_out, b_out)


def reference_forward(x, hidden_params, out_params):
    """Pure-JAX reference with the same bf16-matmul / f32-accumulate numerics."""
    h = x.astype(jnp.float32)
    for w, b in hidden_params:
        h = jnp.dot(h.astype(jnp.bfloat16), w.astype(jnp.bfloat16),
                    preferred_element_type=jnp.float32) + b.reshape(1, -1)
        h = jnp.maximum(h, 0.0)
    h = jnp.maximum(h, 0.0)  # module's extra ReLU (idempotent)
    logits = jnp.dot(h.astype(jnp.bfloat16), out_params[0].astype(jnp.bfloat16),
                     preferred_element_type=jnp.float32) + out_params[1].reshape(1, -1)
    return jax.nn.softmax(logits, axis=1)


if __name__ == "__main__":
    # Small, module-consistent shapes; batch chosen so padding / tiling paths are exercised.
    batch = 300
    input_size = 32
    hidden_size = 32
    hidden_layers = 2
    output_size = 8

    key = jax.random.PRNGKey(0)
    key, kx = jax.random.split(key)
    x = jax.random.normal(kx, (batch, input_size), dtype=jnp.float32)

    hidden_params, out_params = init_params(
        key, input_size, hidden_size, hidden_layers, output_size
    )

    ref = reference_forward(x, hidden_params, out_params)

    # Default policy: whole 128-padded batch (384 rows) in a single grid step.
    out = neural_network_forward(x, hidden_params, out_params)
    out = jax.block_until_ready(out)
    assert out.shape == (batch, output_size)
    assert jnp.allclose(out, ref, atol=2e-3, rtol=2e-3), float(jnp.max(jnp.abs(out - ref)))
    assert jnp.allclose(jnp.sum(out, axis=1), jnp.ones((batch,)), atol=1e-4)

    # Multi-step grid path (256-row tiles, 2 pipelined grid steps) for coverage.
    out2 = neural_network_forward(x, hidden_params, out_params, batch_tile=128)
    out2 = jax.block_until_ready(out2)
    assert out2.shape == (batch, output_size)
    assert jnp.allclose(out2, ref, atol=2e-3, rtol=2e-3), float(jnp.max(jnp.abs(out2 - ref)))
    assert jnp.allclose(jnp.sum(out2, axis=1), jnp.ones((batch,)), atol=1e-4)

    print("KERNEL_OK")
</pallas_src>

<mosaic_0001>
module attributes {stable_mosaic.version = 11 : i64} {
  func.func @_mlp_softmax_kernel(%arg0: i32, %arg1: memref<384x128xbf16, #tpu.memory_space<vmem>>, %arg2: memref<128x128xbf16, #tpu.memory_space<vmem>>, %arg3: memref<1x128xf32, #tpu.memory_space<vmem>>, %arg4: memref<128x128xbf16, #tpu.memory_space<vmem>>, %arg5: memref<1x128xf32, #tpu.memory_space<vmem>>, %arg6: memref<128x128xbf16, #tpu.memory_space<vmem>>, %arg7: memref<1x128xf32, #tpu.memory_space<vmem>>, %arg8: memref<384x128xf32, #tpu.memory_space<vmem>>) attributes {dimension_semantics = [#tpu.dimension_semantics<parallel>], iteration_bounds = array<i64: 1>, scalar_prefetch = 0 : i64, scratch_operands = 0 : i64, tpu.core_type = #tpu.core_type<tc>, window_params = [{transform_indices = @transform_0, window_bounds = array<i64: 384, 128>}, {pipeline_mode = #tpu.pipeline_mode<synchronous>, transform_indices = @transform_1, window_bounds = array<i64: 128, 128>}, {pipeline_mode = #tpu.pipeline_mode<synchronous>, transform_indices = @transform_2, window_bounds = array<i64: 1, 128>}, {pipeline_mode = #tpu.pipeline_mode<synchronous>, transform_indices = @transform_3, window_bounds = array<i64: 128, 128>}, {pipeline_mode = #tpu.pipeline_mode<synchronous>, transform_indices = @transform_4, window_bounds = array<i64: 1, 128>}, {pipeline_mode = #tpu.pipeline_mode<synchronous>, transform_indices = @transform_5, window_bounds = array<i64: 128, 128>}, {pipeline_mode = #tpu.pipeline_mode<synchronous>, transform_indices = @transform_6, window_bounds = array<i64: 1, 128>}, {transform_indices = @transform_7, window_bounds = array<i64: 384, 128>}]} {
    %c0 = arith.constant 0 : index
    %c0_0 = arith.constant 0 : index
    %0 = vector.load %arg1[%c0, %c0_0] : memref<384x128xbf16, #tpu.memory_space<vmem>>, vector<384x128xbf16>
    %c0_1 = arith.constant 0 : index
    %c0_2 = arith.constant 0 : index
    %1 = vector.load %arg2[%c0_1, %c0_2] : memref<128x128xbf16, #tpu.memory_space<vmem>>, vector<128x128xbf16>
    %c0_3 = arith.constant 0 : index
    %c0_4 = arith.constant 0 : index
    %2 = vector.load %arg3[%c0_3, %c0_4] : memref<1x128xf32, #tpu.memory_space<vmem>>, vector<1x128xf32>
    %cst = arith.constant dense<0.000000e+00> : vector<384x128xf32>
    %3 = tpu.matmul %0, %1, %cst {dimension_numbers = #tpu.dot_dimension_numbers<[1], [0], [0], [1], [0, 0, 1, 1], [], []>} : vector<384x128xbf16>, vector<128x128xbf16>, vector<384x128xf32> -> vector<384x128xf32>
    %4 = vector.broadcast %2 : vector<1x128xf32> to vector<384x128xf32>
    %5 = arith.addf %3, %4 : vector<384x128xf32>
    %cst_5 = arith.constant 0.000000e+00 : f32
    %6 = vector.broadcast %cst_5 : f32 to vector<384x128xf32>
    %7 = arith.maximumf %5, %6 : vector<384x128xf32>
    %c0_6 = arith.constant 0 : index
    %c0_7 = arith.constant 0 : index
    %8 = vector.load %arg4[%c0_6, %c0_7] : memref<128x128xbf16, #tpu.memory_space<vmem>>, vector<128x128xbf16>
    %c0_8 = arith.constant 0 : index
    %c0_9 = arith.constant 0 : index
    %9 = vector.load %arg5[%c0_8, %c0_9] : memref<1x128xf32, #tpu.memory_space<vmem>>, vector<1x128xf32>
    %10 = arith.truncf %7 : vector<384x128xf32> to vector<384x128xbf16>
    %cst_10 = arith.constant dense<0.000000e+00> : vector<384x128xf32>
    %11 = tpu.matmul %10, %8, %cst_10 {dimension_numbers = #tpu.dot_dimension_numbers<[1], [0], [0], [1], [0, 0, 1, 1], [], []>} : vector<384x128xbf16>, vector<128x128xbf16>, vector<384x128xf32> -> vector<384x128xf32>
    %12 = vector.broadcast %9 : vector<1x128xf32> to vector<384x128xf32>
    %13 = arith.addf %11, %12 : vector<384x128xf32>
    %cst_11 = arith.constant 0.000000e+00 : f32
    %14 = vector.broadcast %cst_11 : f32 to vector<384x128xf32>
    %15 = arith.maximumf %13, %14 : vector<384x128xf32>
    %c0_12 = arith.constant 0 : index
    %c0_13 = arith.constant 0 : index
    %16 = vector.load %arg6[%c0_12, %c0_13] : memref<128x128xbf16, #tpu.memory_space<vmem>>, vector<128x128xbf16>
    %c0_14 = arith.constant 0 : index
    %c0_15 = arith.constant 0 : index
    %17 = vector.load %arg7[%c0_14, %c0_15] : memref<1x128xf32, #tpu.memory_space<vmem>>, vector<1x128xf32>
    %18 = arith.truncf %15 : vector<384x128xf32> to vector<384x128xbf16>
    %cst_16 = arith.constant dense<0.000000e+00> : vector<384x128xf32>
    %19 = tpu.matmul %18, %16, %cst_16 {dimension_numbers = #tpu.dot_dimension_numbers<[1], [0], [0], [1], [0, 0, 1, 1], [], []>} : vector<384x128xbf16>, vector<128x128xbf16>, vector<384x128xf32> -> vector<384x128xf32>
    %20 = vector.broadcast %17 : vector<1x128xf32> to vector<384x128xf32>
    %21 = arith.addf %19, %20 : vector<384x128xf32>
    %cst_17 = arith.constant dense<0xFF800000> : vector<384xf32>
    %22 = vector.multi_reduction <maximumf>, %21, %cst_17 [1] : vector<384x128xf32> to vector<384xf32>
    %23 = vector.shape_cast %22 : vector<384xf32> to vector<384x1xf32>
    %24 = vector.broadcast %23 : vector<384x1xf32> to vector<384x128xf32>
    %25 = arith.subf %21, %24 : vector<384x128xf32>
    %26 = math.exp %25 : vector<384x128xf32>
    %cst_18 = arith.constant dense<0.000000e+00> : vector<384xf32>
    %27 = vector.multi_reduction <add>, %26, %cst_18 [1] : vector<384x128xf32> to vector<384xf32>
    %28 = vector.shape_cast %27 : vector<384xf32> to vector<384x1xf32>
    %29 = tpu.reciprocal %28 : vector<384x1xf32> -> vector<384x1xf32>
    %30 = vector.broadcast %29 : vector<384x1xf32> to vector<384x128xf32>
    %31 = arith.mulf %26, %30 : vector<384x128xf32>
    %c0_19 = arith.constant 0 : index
    %c0_20 = arith.constant 0 : index
    %32 = vector.load %arg8[%c0_19, %c0_20] : memref<384x128xf32, #tpu.memory_space<vmem>>, vector<384x128xf32>
    tpu.vector_store %arg8[%c0_19, %c0_20], %31 {strides = array<i32>} : memref<384x128xf32, #tpu.memory_space<vmem>>, vector<384x128xf32>,
    return
  }
  func.func @transform_0(%arg0: i32) -> (i32, i32) {
    %c0_i32 = arith.constant 0 : i32
    %c0_i32_0 = arith.constant 0 : i32
    return %arg0, %c0_i32 : i32, i32
  }
  func.func @transform_1(%arg0: i32) -> (i32, i32) {
    %c0_i32 = arith.constant 0 : i32
    %c0_i32_0 = arith.constant 0 : i32
    %c0_i32_1 = arith.constant 0 : i32
    return %c0_i32, %c0_i32_0 : i32, i32
  }
  func.func @transform_2(%arg0: i32) -> (i32, i32) {
    %c0_i32 = arith.constant 0 : i32
    %c0_i32_0 = arith.constant 0 : i32
    %c0_i32_1 = arith.constant 0 : i32
    return %c0_i32, %c0_i32_0 : i32, i32
  }
  func.func @transform_3(%arg0: i32) -> (i32, i32) {
    %c0_i32 = arith.constant 0 : i32
    %c0_i32_0 = arith.constant 0 : i32
    %c0_i32_1 = arith.constant 0 : i32
    return %c0_i32, %c0_i32_0 : i32, i32
  }
  func.func @transform_4(%arg0: i32) -> (i32, i32) {
    %c0_i32 = arith.constant 0 : i32
    %c0_i32_0 = arith.constant 0 : i32
    %c0_i32_1 = arith.constant 0 : i32
    return %c0_i32, %c0_i32_0 : i32, i32
  }
  func.func @transform_5(%arg0: i32) -> (i32, i32) {
    %c0_i32 = arith.constant 0 : i32
    %c0_i32_0 = arith.constant 0 : i32
    %c0_i32_1 = arith.constant 0 : i32
    return %c0_i32, %c0_i32_0 : i32, i32
  }
  func.func @transform_6(%arg0: i32) -> (i32, i32) {
    %c0_i32 = arith.constant 0 : i32
    %c0_i32_0 = arith.constant 0 : i32
    %c0_i32_1 = arith.constant 0 : i32
    return %c0_i32, %c0_i32_0 : i32, i32
  }
  func.func @transform_7(%arg0: i32) -> (i32, i32) {
    %c0_i32 = arith.constant 0 : i32
    %c0_i32_0 = arith.constant 0 : i32
    return %arg0, %c0_i32 : i32, i32
  }
}

module attributes {stable_mosaic.version = 11 : i64} {
  func.func @_mlp_softmax_kernel(%arg0: i32, %arg1: memref<384x128xbf16, #tpu.memory_space<vmem>>, %arg2: memref<128x128xbf16, #tpu.memory_space<vmem>>, %arg3: memref<1x128xf32, #tpu.memory_space<vmem>>, %arg4: memref<128x128xbf16, #tpu.memory_space<vmem>>, %arg5: memref<1x128xf32, #tpu.memory_space<vmem>>, %arg6: memref<128x128xbf16, #tpu.memory_space<vmem>>, %arg7: memref<1x128xf32, #tpu.memory_space<vmem>>, %arg8: memref<384x128xf32, #tpu.memory_space<vmem>>) attributes {dimension_semantics = [#tpu.dimension_semantics<parallel>], iteration_bounds = array<i64: 1>, scalar_prefetch = 0 : i64, scratch_operands = 0 : i64, tpu.core_type = #tpu.core_type<tc>, window_params = [{transform_indices = @transform_0, window_bounds = array<i64: 384, 128>}, {pipeline_mode = #tpu.pipeline_mode<synchronous>, transform_indices = @transform_1, window_bounds = array<i64: 128, 128>}, {pipeline_mode = #tpu.pipeline_mode<synchronous>, transform_indices = @transform_2, window_bounds = array<i64: 1, 128>}, {pipeline_mode = #tpu.pipeline_mode<synchronous>, transform_indices = @transform_3, window_bounds = array<i64: 128, 128>}, {pipeline_mode = #tpu.pipeline_mode<synchronous>, transform_indices = @transform_4, window_bounds = array<i64: 1, 128>}, {pipeline_mode = #tpu.pipeline_mode<synchronous>, transform_indices = @transform_5, window_bounds = array<i64: 128, 128>}, {pipeline_mode = #tpu.pipeline_mode<synchronous>, transform_indices = @transform_6, window_bounds = array<i64: 1, 128>}, {transform_indices = @transform_7, window_bounds = array<i64: 384, 128>}]} {
    %c0 = arith.constant 0 : index
    %c0_0 = arith.constant 0 : index
    %0 = vector.load %arg1[%c0, %c0_0] : memref<384x128xbf16, #tpu.memory_space<vmem>>, vector<384x128xbf16>
    %c0_1 = arith.constant 0 : index
    %c0_2 = arith.constant 0 : index
    %1 = vector.load %arg2[%c0_1, %c0_2] : memref<128x128xbf16, #tpu.memory_space<vmem>>, vector<128x128xbf16>
    %c0_3 = arith.constant 0 : index
    %c0_4 = arith.constant 0 : index
    %2 = vector.load %arg3[%c0_3, %c0_4] : memref<1x128xf32, #tpu.memory_space<vmem>>, vector<1x128xf32>
    %cst = arith.constant dense<0.000000e+00> : vector<384x128xf32>
    %3 = tpu.matmul %0, %1, %cst {dimension_numbers = #tpu.dot_dimension_numbers<[1], [0], [0], [1], [0, 0, 1, 1], [], []>} : vector<384x128xbf16>, vector<128x128xbf16>, vector<384x128xf32> -> vector<384x128xf32>
    %4 = vector.broadcast %2 : vector<1x128xf32> to vector<384x128xf32>
    %5 = arith.addf %3, %4 : vector<384x128xf32>
    %cst_5 = arith.constant 0.000000e+00 : f32
    %6 = vector.broadcast %cst_5 : f32 to vector<384x128xf32>
    %7 = arith.maximumf %5, %6 : vector<384x128xf32>
    %c0_6 = arith.constant 0 : index
    %c0_7 = arith.constant 0 : index
    %8 = vector.load %arg4[%c0_6, %c0_7] : memref<128x128xbf16, #tpu.memory_space<vmem>>, vector<128x128xbf16>
    %c0_8 = arith.constant 0 : index
    %c0_9 = arith.constant 0 : index
    %9 = vector.load %arg5[%c0_8, %c0_9] : memref<1x128xf32, #tpu.memory_space<vmem>>, vector<1x128xf32>
    %10 = arith.truncf %7 : vector<384x128xf32> to vector<384x128xbf16>
    %cst_10 = arith.constant dense<0.000000e+00> : vector<384x128xf32>
    %11 = tpu.matmul %10, %8, %cst_10 {dimension_numbers = #tpu.dot_dimension_numbers<[1], [0], [0], [1], [0, 0, 1, 1], [], []>} : vector<384x128xbf16>, vector<128x128xbf16>, vector<384x128xf32> -> vector<384x128xf32>
    %12 = vector.broadcast %9 : vector<1x128xf32> to vector<384x128xf32>
    %13 = arith.addf %11, %12 : vector<384x128xf32>
    %cst_11 = arith.constant 0.000000e+00 : f32
    %14 = vector.broadcast %cst_11 : f32 to vector<384x128xf32>
    %15 = arith.maximumf %13, %14 : vector<384x128xf32>
    %c0_12 = arith.constant 0 : index
    %c0_13 = arith.constant 0 : index
    %16 = vector.load %arg6[%c0_12, %c0_13] : memref<128x128xbf16, #tpu.memory_space<vmem>>, vector<128x128xbf16>
    %c0_14 = arith.constant 0 : index
    %c0_15 = arith.constant 0 : index
    %17 = vector.load %arg7[%c0_14, %c0_15] : memref<1x128xf32, #tpu.memory_space<vmem>>, vector<1x128xf32>
    %18 = arith.truncf %15 : vector<384x128xf32> to vector<384x128xbf16>
    %cst_16 = arith.constant dense<0.000000e+00> : vector<384x128xf32>
    %19 = tpu.matmul %18, %16, %cst_16 {dimension_numbers = #tpu.dot_dimension_numbers<[1], [0], [0], [1], [0, 0, 1, 1], [], []>} : vector<384x128xbf16>, vector<128x128xbf16>, vector<384x128xf32> -> vector<384x128xf32>
    %20 = vector.broadcast %17 : vector<1x128xf32> to vector<384x128xf32>
    %21 = arith.addf %19, %20 : vector<384x128xf32>
    %cst_17 = arith.constant dense<0xFF800000> : vector<384xf32>
    %22 = vector.multi_reduction <maximumf>, %21, %cst_17 [1] : vector<384x128xf32> to vector<384xf32>
    %23 = vector.shape_cast %22 : vector<384xf32> to vector<384x1xf32>
    %24 = vector.broadcast %23 : vector<384x1xf32> to vector<384x128xf32>
    %25 = arith.subf %21, %24 : vector<384x128xf32>
    %26 = math.exp %25 : vector<384x128xf32>
    %cst_18 = arith.constant dense<0.000000e+00> : vector<384xf32>
    %27 = vector.multi_reduction <add>, %26, %cst_18 [1] : vector<384x128xf32> to vector<384xf32>
    %28 = vector.shape_cast %27 : vector<384xf32> to vector<384x1xf32>
    %29 = tpu.reciprocal %28 : vector<384x1xf32> -> vector<384x1xf32>
    %30 = vector.broadcast %29 : vector<384x1xf32> to vector<384x128xf32>
    %31 = arith.mulf %26, %30 : vector<384x128xf32>
    %c0_19 = arith.constant 0 : index
    %c0_20 = arith.constant 0 : index
    %32 = vector.load %arg8[%c0_19, %c0_20] : memref<384x128xf32, #tpu.memory_space<vmem>>, vector<384x128xf32>
    tpu.vector_store %arg8[%c0_19, %c0_20], %31 {strides = array<i32>} : memref<384x128xf32, #tpu.memory_space<vmem>>, vector<384x128xf32>,
    return
  }
  func.func @transform_0(%arg0: i32) -> (i32, i32) {
    %c0_i32 = arith.constant 0 : i32
    %c0_i32_0 = arith.constant 0 : i32
    return %arg0, %c0_i32 : i32, i32
  }
  func.func @transform_1(%arg0: i32) -> (i32, i32) {
    %c0_i32 = arith.constant 0 : i32
    %c0_i32_0 = arith.constant 0 : i32
    %c0_i32_1 = arith.constant 0 : i32
    return %c0_i32, %c0_i32_0 : i32, i32
  }
  func.func @transform_2(%arg0: i32) -> (i32, i32) {
    %c0_i32 = arith.constant 0 : i32
    %c0_i32_0 = arith.constant 0 : i32
    %c0_i32_1 = arith.constant 0 : i32
    return %c0_i32, %c0_i32_0 : i32, i32
  }
  func.func @transform_3(%arg0: i32) -> (i32, i32) {
    %c0_i32 = arith.constant 0 : i32
    %c0_i32_0 = arith.constant 0 : i32
    %c0_i32_1 = arith.constant 0 : i32
    return %c0_i32, %c0_i32_0 : i32, i32
  }
  func.func @transform_4(%arg0: i32) -> (i32, i32) {
    %c0_i32 = arith.constant 0 : i32
    %c0_i32_0 = arith.constant 0 : i32
    %c0_i32_1 = arith.constant 0 : i32
    return %c0_i32, %c0_i32_0 : i32, i32
  }
  func.func @transform_5(%arg0: i32) -> (i32, i32) {
    %c0_i32 = arith.constant 0 : i32
    %c0_i32_0 = arith.constant 0 : i32
    %c0_i32_1 = arith.constant 0 : i32
    return %c0_i32, %c0_i32_0 : i32, i32
  }
  func.func @transform_6(%arg0: i32) -> (i32, i32) {
    %c0_i32 = arith.constant 0 : i32
    %c0_i32_0 = arith.constant 0 : i32
    %c0_i32_1 = arith.constant 0 : i32
    return %c0_i32, %c0_i32_0 : i32, i32
  }
  func.func @transform_7(%arg0: i32) -> (i32, i32) {
    %c0_i32 = arith.constant 0 : i32
    %c0_i32_0 = arith.constant 0 : i32
    return %arg0, %c0_i32 : i32, i32
  }
}

</mosaic_0001>

<llo_original>
// kernel: tpu_custom_call.1
$region0: #{tpu_custom_call.1}
  #allocation0 [shape = 'u32[]', space=smem, size = 0x4, offset = 0x4, fixed_abs, tag = 'smem constant byte address 0x4 - core index']
  #allocation1 [shape = 'u32[144,128]{1,0:T(1,128)}', space=vmem, size = 0x12000, scoped, tag = 'internal scratch']
  %s0 = inlined_call_operand.hbm [shape: bf16[384,128], index: 0, kind: input, shape index: {}]
  %s1 = inlined_call_operand.hbm [shape: bf16[128,128], index: 1, kind: input, shape index: {}]
  %s2 = inlined_call_operand.vmem [shape: f32[1,128], index: 2, kind: input, shape index: {}]
  %s3 = inlined_call_operand.hbm [shape: bf16[128,128], index: 3, kind: input, shape index: {}]
  %s4 = inlined_call_operand.vmem [shape: f32[1,128], index: 4, kind: input, shape index: {}]
  %s5 = inlined_call_operand.hbm [shape: bf16[128,128], index: 5, kind: input, shape index: {}]
  %s6 = inlined_call_operand.vmem [shape: f32[1,128], index: 6, kind: input, shape index: {}]
  %s7 = inlined_call_operand.hbm [shape: f32[384,128], index: 7, kind: output, shape index: {}]
  %s8 = sld [smem:[#allocation0]]
  $region54: #{tpu_custom_call.1} parent=0
    _
  %s10 = ssub.s32 1, %s8
  %s11 = scalar_select 0, %s10, %s8
  $region1: #{tpu_custom_call.1} parent=0
    #allocation2 [shape = 'u8[98304]{0}', space=vmem, size = 0x18000, scoped, tag = 'input window, operand 0, single buffered']
    #allocation3 [shape = 's32[1]{0}', space=sflag, size = 0x4, scoped, tag = 'scoped memory for tpu_custom_call.1']
    #allocation4 [shape = 's32[1]{0}', space=sflag, size = 0x4, scoped, tag = 'scoped memory for tpu_custom_call.1']
    #allocation5 [shape = 'u8[32768]{0}', space=vmem, size = 0x8000, scoped, tag = 'input window, operand 1, single buffered']
    #allocation6 [shape = 's32[1]{0}', space=sflag, size = 0x4, scoped, tag = 'scoped memory for tpu_custom_call.1']
    #allocation7 [shape = 'u8[32768]{0}', space=vmem, size = 0x8000, scoped, tag = 'input window, operand 3, single buffered']
    #allocation8 [shape = 'u8[32768]{0}', space=vmem, size = 0x8000, scoped, tag = 'input window, operand 5, single buffered']
    #allocation9 [shape = 's32[1]{0}', space=sflag, size = 0x4, scoped, tag = 'scoped memory for tpu_custom_call.1']
    #allocation10 [shape = 'u8[196608]{0}', space=vmem, size = 0x30000, scoped, tag = 'output window, operand 0, single buffered']
    %12 = vsyncpa [#allocation3], 0
    %13 = vsyncpa [#allocation6], 0
    %14 = vsyncpa [#allocation9], 0
    %15 = vsyncpa [#allocation4], 0
    // Predicated region
    $region2: #{tpu_custom_call.1} parent=1 // pred_check
      _
    $region3: #{tpu_custom_call.1} parent=1 // pred_check_branch
      %17 = sbr.rel (0) target = $region5
    $region4: #{tpu_custom_call.1} parent=1 // pred_region
      %s19 = ssub.s32 3072, 3072
      %20 = vsyncadd [#allocation3], %s19
      %s21 = sshll.u32 [#allocation2], 4
      %s22 = int_to_ptr.vmem [resolvable:$true] %s21
      %27 = dma.hbm_to_vmem [thread:$0]  %s0, 3072, %s22, [#allocation3], 64, 64, 4
    $region5: #{tpu_custom_call.1} parent=1 // pred_fallthru
      _
    // Predicated region
    $region6: #{tpu_custom_call.1} parent=1 // pred_check
      _
    $region7: #{tpu_custom_call.1} parent=1 // pred_check_branch
      %29 = sbr.rel (0) target = $region9
    $region8: #{tpu_custom_call.1} parent=1 // pred_region
      %s31 = ssub.s32 1024, 1024
      %32 = vsyncadd [#allocation6], %s31
      %s33 = sshll.u32 [#allocation5], 4
      %s34 = int_to_ptr.vmem [resolvable:$true] %s33
      %39 = dma.hbm_to_vmem [thread:$0]  %s1, 1024, %s34, [#allocation6], 64, 64, 4
    $region9: #{tpu_custom_call.1} parent=1 // pred_fallthru
      _
    // Predicated region
    $region10: #{tpu_custom_call.1} parent=1 // pred_check
      _
    $region11: #{tpu_custom_call.1} parent=1 // pred_check_branch
      %41 = sbr.rel (0) target = $region13
    $region12: #{tpu_custom_call.1} parent=1 // pred_region
      _
    $region13: #{tpu_custom_call.1} parent=1 // pred_fallthru
      _
    // Predicated region
    $region14: #{tpu_custom_call.1} parent=1 // pred_check
      _
    $region15: #{tpu_custom_call.1} parent=1 // pred_check_branch
      %43 = sbr.rel (0) target = $region17
    $region16: #{tpu_custom_call.1} parent=1 // pred_region
      %s45 = ssub.s32 1024, 1024
      %46 = vsyncadd [#allocation6], %s45
      %s47 = sshll.u32 [#allocation7], 4
      %s48 = int_to_ptr.vmem [resolvable:$true] %s47
      %53 = dma.hbm_to_vmem [thread:$0]  %s3, 1024, %s48, [#allocation6], 64, 64, 4
    $region17: #{tpu_custom_call.1} parent=1 // pred_fallthru
      _
    // Predicated region
    $region18: #{tpu_custom_call.1} parent=1 // pred_check
      _
    $region19: #{tpu_custom_call.1} parent=1 // pred_check_branch
      %55 = sbr.rel (0) target = $region21
    $region20: #{tpu_custom_call.1} parent=1 // pred_region
      _
    $region21: #{tpu_custom_call.1} parent=1 // pred_fallthru
      _
    // Predicated region
    $region22: #{tpu_custom_call.1} parent=1 // pred_check
      _
    $region23: #{tpu_custom_call.1} parent=1 // pred_check_branch
      %57 = sbr.rel (0) target = $region25
    $region24: #{tpu_custom_call.1} parent=1 // pred_region
      %s59 = ssub.s32 1024, 1024
      %60 = vsyncadd [#allocation9], %s59
      %s61 = sshll.u32 [#allocation8], 4
      %s62 = int_to_ptr.vmem [resolvable:$true] %s61
      %67 = dma.hbm_to_vmem [thread:$0]  %s5, 1024, %s62, [#allocation9], 64, 64, 4
    $region25: #{tpu_custom_call.1} parent=1 // pred_fallthru
      _
    // Predicated region
    $region26: #{tpu_custom_call.1} parent=1 // pred_check
      _
    $region27: #{tpu_custom_call.1} parent=1 // pred_check_branch
      %69 = sbr.rel (0) target = $region29
    $region28: #{tpu_custom_call.1} parent=1 // pred_region
      _
    $region29: #{tpu_custom_call.1} parent=1 // pred_fallthru
      _
    // Predicated region
    $region30: #{tpu_custom_call.1} parent=1 // pred_check
      _
    $region31: #{tpu_custom_call.1} parent=1 // pred_check_branch
      %71 = sbr.rel (0) target = $region33
    $region32: #{tpu_custom_call.1} parent=1 // pred_region
      %72 = dma.done [#allocation3], 3072
    $region33: #{tpu_custom_call.1} parent=1 // pred_fallthru
      _
    // Predicated region
    $region34: #{tpu_custom_call.1} parent=1 // pred_check
      _
    $region35: #{tpu_custom_call.1} parent=1 // pred_check_branch
      %74 = sbr.rel (0) target = $region37
    $region36: #{tpu_custom_call.1} parent=1 // pred_region
      %75 = dma.done [#allocation6], 1024
    $region37: #{tpu_custom_call.1} parent=1 // pred_fallthru
      _
    // Predicated region
    $region38: #{tpu_custom_call.1} parent=1 // pred_check
      _
    $region39: #{tpu_custom_call.1} parent=1 // pred_check_branch
      %77 = sbr.rel (0) target = $region41
    $region40: #{tpu_custom_call.1} parent=1 // pred_region
      %78 = dma.done [#allocation6], 1024
    $region41: #{tpu_custom_call.1} parent=1 // pred_fallthru
      _
    // Predicated region
    $region42: #{tpu_custom_call.1} parent=1 // pred_check
      _
    $region43: #{tpu_custom_call.1} parent=1 // pred_check_branch
      %80 = sbr.rel (0) target = $region45
    $region44: #{tpu_custom_call.1} parent=1 // pred_region
      %81 = dma.done [#allocation9], 1024
    $region45: #{tpu_custom_call.1} parent=1 // pred_fallthru
      _
    %v83 = vld [vmem:[#allocation2] sm:$0xf]
    %v84 = vld [vmem:[#allocation2 + $0x4] sm:$0xf]
    %v85 = vld [vmem:[#allocation2 + $0x8] sm:$0xf]
    %v86 = vld [vmem:[#allocation2 + $0xc] sm:$0xf]
    %v87 = vld [vmem:[#allocation2 + $0x10] sm:$0xf]
    %v88 = vld [vmem:[#allocation2 + $0x14] sm:$0xf]
    %v89 = vld [vmem:[#allocation2 + $0x18] sm:$0xf]
    %v90 = vld [vmem:[#allocation2 + $0x1c] sm:$0xf]
    %v91 = vld [vmem:[#allocation2 + $0x20] sm:$0xf]
    %v92 = vld [vmem:[#allocation2 + $0x24] sm:$0xf]
    %v93 = vld [vmem:[#allocation2 + $0x28] sm:$0xf]
    %v94 = vld [vmem:[#allocation2 + $0x2c] sm:$0xf]
    %v95 = vld [vmem:[#allocation2 + $0x30] sm:$0xf]
    %v96 = vld [vmem:[#allocation2 + $0x34] sm:$0xf]
    %v97 = vld [vmem:[#allocation2 + $0x38] sm:$0xf]
    %v98 = vld [vmem:[#allocation2 + $0x3c] sm:$0xf]
    %v99 = vld [vmem:[#allocation2 + $0x40] sm:$0xf]
    %v100 = vld [vmem:[#allocation2 + $0x44] sm:$0xf]
    %v101 = vld [vmem:[#allocation2 + $0x48] sm:$0xf]
    %v102 = vld [vmem:[#allocation2 + $0x4c] sm:$0xf]
    %v103 = vld [vmem:[#allocation2 + $0x50] sm:$0xf]
    %v104 = vld [vmem:[#allocation2 + $0x54] sm:$0xf]
    %v105 = vld [vmem:[#allocation2 + $0x58] sm:$0xf]
    %v106 = vld [vmem:[#allocation2 + $0x5c] sm:$0xf]
    %v107 = vld [vmem:[#allocation2 + $0x60] sm:$0xf]
    %v108 = vld [vmem:[#allocation2 + $0x64] sm:$0xf]
    %v109 = vld [vmem:[#allocation2 + $0x68] sm:$0xf]
    %v110 = vld [vmem:[#allocation2 + $0x6c] sm:$0xf]
    %v111 = vld [vmem:[#allocation2 + $0x70] sm:$0xf]
    %v112 = vld [vmem:[#allocation2 + $0x74] sm:$0xf]
    %v113 = vld [vmem:[#allocation2 + $0x78] sm:$0xf]
    %v114 = vld [vmem:[#allocation2 + $0x7c] sm:$0xf]
    %v115 = vld [vmem:[#allocation2 + $0x80] sm:$0xf]
    %v116 = vld [vmem:[#allocation2 + $0x84] sm:$0xf]
    %v117 = vld [vmem:[#allocation2 + $0x88] sm:$0xf]
    %v118 = vld [vmem:[#allocation2 + $0x8c] sm:$0xf]
    %v119 = vld [vmem:[#allocation2 + $0x90] sm:$0xf]
    %v120 = vld [vmem:[#allocation2 + $0x94] sm:$0xf]
    %v121 = vld [vmem:[#allocation2 + $0x98] sm:$0xf]
    %v122 = vld [vmem:[#allocation2 + $0x9c] sm:$0xf]
    %v123 = vld [vmem:[#allocation2 + $0xa0] sm:$0xf]
    %v124 = vld [vmem:[#allocation2 + $0xa4] sm:$0xf]
    %v125 = vld [vmem:[#allocation2 + $0xa8] sm:$0xf]
    %v126 = vld [vmem:[#allocation2 + $0xac] sm:$0xf]
    %v127 = vld [vmem:[#allocation2 + $0xb0] sm:$0xf]
    %v128 = vld [vmem:[#allocation2 + $0xb4] sm:$0xf]
    %v129 = vld [vmem:[#allocation2 + $0xb8] sm:$0xf]
    %v130 = vld [vmem:[#allocation2 + $0xbc] sm:$0xf]
    %v131 = vld [vmem:[#allocation5] sm:$0xf]
    %v132 = vld [vmem:[#allocation5 + $0x4] sm:$0xf]
    %v133 = vld [vmem:[#allocation5 + $0x8] sm:$0xf]
    %v134 = vld [vmem:[#allocation5 + $0xc] sm:$0xf]
    %v135 = vld [vmem:[#allocation5 + $0x10] sm:$0xf]
    %v136 = vld [vmem:[#allocation5 + $0x14] sm:$0xf]
    %v137 = vld [vmem:[#allocation5 + $0x18] sm:$0xf]
    %v138 = vld [vmem:[#allocation5 + $0x1c] sm:$0xf]
    %v139 = vld [vmem:[#allocation5 + $0x20] sm:$0xf]
    %v140 = vld [vmem:[#allocation5 + $0x24] sm:$0xf]
    %v141 = vld [vmem:[#allocation5 + $0x28] sm:$0xf]
    %v142 = vld [vmem:[#allocation5 + $0x2c] sm:$0xf]
    %v143 = vld [vmem:[#allocation5 + $0x30] sm:$0xf]
    %v144 = vld [vmem:[#allocation5 + $0x34] sm:$0xf]
    %v145 = vld [vmem:[#allocation5 + $0x38] sm:$0xf]
    %v146 = vld [vmem:[#allocation5 + $0x3c] sm:$0xf]
    %v147 = vld [vmem:[%s2] sm:$0x1]
    %v149 = vlaneseq
    %v150 = vshrl.u32 %v149, 7
    %v151 = vsub.s32 0, %v150
    %v152 = vrot.slane %v147, %v151
    %v202 = vunpack.c.l.b16 %v83
    %v203 = vunpack.c.l.b16 %v84
    %v204 = vunpack.c.l.b16 %v85
    %v205 = vunpack.c.l.b16 %v86
    %v206 = vunpack.c.l.b16 %v87
    %v207 = vunpack.c.l.b16 %v88
    %v208 = vunpack.c.l.b16 %v89
    %v209 = vunpack.c.l.b16 %v90
    %v210 = vunpack.c.l.b16 %v91
    %v211 = vunpack.c.l.b16 %v92
    %v212 = vunpack.c.l.b16 %v93
    %v213 = vunpack.c.l.b16 %v94
    %v214 = vunpack.c.l.b16 %v95
    %v215 = vunpack.c.l.b16 %v96
    %v216 = vunpack.c.l.b16 %v97
    %v217 = vunpack.c.l.b16 %v98
    %v218 = vunpack.c.l.b16 %v99
    %v219 = vunpack.c.l.b16 %v100
    %v220 = vunpack.c.l.b16 %v101
    %v221 = vunpack.c.l.b16 %v102
    %v222 = vunpack.c.l.b16 %v103
    %v223 = vunpack.c.l.b16 %v104
    %v224 = vunpack.c.l.b16 %v105
    %v225 = vunpack.c.l.b16 %v106
    %v226 = vunpack.c.l.b16 %v107
    %v227 = vunpack.c.l.b16 %v108
    %v228 = vunpack.c.l.b16 %v109
    %v229 = vunpack.c.l.b16 %v110
    %v230 = vunpack.c.l.b16 %v111
    %v231 = vunpack.c.l.b16 %v112
    %v232 = vunpack.c.l.b16 %v113
    %v233 = vunpack.c.l.b16 %v114
    %v234 = vunpack.c.l.b16 %v115
    %v235 = vunpack.c.l.b16 %v116
    %v236 = vunpack.c.l.b16 %v117
    %v237 = vunpack.c.l.b16 %v118
    %v238 = vunpack.c.l.b16 %v119
    %v239 = vunpack.c.l.b16 %v120
    %v240 = vunpack.c.l.b16 %v121
    %v241 = vunpack.c.l.b16 %v122
    %v242 = vunpack.c.l.b16 %v123
    %v243 = vunpack.c.l.b16 %v124
    %v244 = vunpack.c.l.b16 %v125
    %v245 = vunpack.c.l.b16 %v126
    %v246 = vunpack.c.l.b16 %v127
    %v247 = vunpack.c.l.b16 %v128
    %v248 = vunpack.c.l.b16 %v129
    %v249 = vunpack.c.l.b16 %v130
    %v250 = vpack.c.b16 %v203, %v202
    %v251 = vpack.c.b16 %v205, %v204
    %v252 = vpack.c.b16 %v207, %v206
    %v253 = vpack.c.b16 %v209, %v208
    %v254 = vpack.c.b16 %v211, %v210
    %v255 = vpack.c.b16 %v213, %v212
    %v256 = vpack.c.b16 %v215, %v214
    %v257 = vpack.c.b16 %v217, %v216
    %v258 = vpack.c.b16 %v219, %v218
    %v259 = vpack.c.b16 %v221, %v220
    %v260 = vpack.c.b16 %v223, %v222
    %v261 = vpack.c.b16 %v225, %v224
    %v262 = vpack.c.b16 %v227, %v226
    %v263 = vpack.c.b16 %v229, %v228
    %v264 = vpack.c.b16 %v231, %v230
    %v265 = vpack.c.b16 %v233, %v232
    %v266 = vpack.c.b16 %v235, %v234
    %v267 = vpack.c.b16 %v237, %v236
    %v268 = vpack.c.b16 %v239, %v238
    %v269 = vpack.c.b16 %v241, %v240
    %v270 = vpack.c.b16 %v243, %v242
    %v271 = vpack.c.b16 %v245, %v244
    %v272 = vpack.c.b16 %v247, %v246
    %v273 = vpack.c.b16 %v249, %v248
    %v314 = vunpack.c.l.b16 %v131
    %v315 = vunpack.c.l.b16 %v132
    %v316 = vunpack.c.l.b16 %v133
    %v317 = vunpack.c.l.b16 %v134
    %v318 = vunpack.c.l.b16 %v135
    %v319 = vunpack.c.l.b16 %v136
    %v320 = vunpack.c.l.b16 %v137
    %v321 = vunpack.c.l.b16 %v138
    %v322 = vunpack.c.l.b16 %v139
    %v323 = vunpack.c.l.b16 %v140
    %v324 = vunpack.c.l.b16 %v141
    %v325 = vunpack.c.l.b16 %v142
    %v326 = vunpack.c.l.b16 %v143
    %v327 = vunpack.c.l.b16 %v144
    %v328 = vunpack.c.l.b16 %v145
    %v329 = vunpack.c.l.b16 %v146
    %v330 = vpack.c.b16 %v315, %v314
    %v331 = vpack.c.b16 %v317, %v316
    %v332 = vpack.c.b16 %v319, %v318
    %v333 = vpack.c.b16 %v321, %v320
    %v334 = vpack.c.b16 %v323, %v322
    %v335 = vpack.c.b16 %v325, %v324
    %v336 = vpack.c.b16 %v327, %v326
    %v337 = vpack.c.b16 %v329, %v328
    %346 = vmatprep.subr.bf16.mxu0 0
    %347 = vmatpush1.bf16.msra.mxu0 %v337
    %348 = vmatprep.subr.bf16.mxu0 0
    %349 = vmatpush1.bf16.msra.mxu0 %v336
    %350 = vmatprep.subr.bf16.mxu0 0
    %351 = vmatpush1.bf16.msra.mxu0 %v335
    %352 = vmatprep.subr.bf16.mxu0 0
    %353 = vmatpush1.bf16.msra.mxu0 %v334
    %354 = vmatprep.subr.bf16.mxu0 0
    %355 = vmatpush1.bf16.msra.mxu0 %v333
    %356 = vmatprep.subr.bf16.mxu0 0
    %357 = vmatpush1.bf16.msra.mxu0 %v332
    %358 = vmatprep.subr.bf16.mxu0 0
    %359 = vmatpush1.bf16.msra.mxu0 %v331
    %360 = vmatprep.subr.bf16.mxu0 0
    %361 = vmatpush1.bf16.msra.mxu0 %v330
    %362 = vmatprep.subr.bf16.mxu0 0
    %363 = vmatpush2.bf16.msra.mxu0 0
    %364 = vmatprep.subr.bf16.mxu0 0
    %365 = vmatpush2.bf16.msra.mxu0 0
    %366 = vmatprep.subr.bf16.mxu0 0
    %367 = vmatpush2.bf16.msra.mxu0 0
    %368 = vmatprep.subr.bf16.mxu0 0
    %369 = vmatpush2.bf16.msra.mxu0 0
    %370 = vmatprep.subr.bf16.mxu0 0
    %371 = vmatpush2.bf16.msra.mxu0 0
    %372 = vmatprep.subr.bf16.mxu0 0
    %373 = vmatpush2.bf16.msra.mxu0 0
    %374 = vmatprep.subr.bf16.mxu0 0
    %375 = vmatpush2.bf16.msra.mxu0 0
    %376 = vmatprep.subr.bf16.mxu0 0
    %377 = vmatpush2.bf16.msra.mxu0 0
    %378 = vmatprep.mubr.bf16.mxu0 0
    %379 = vmatmul.mubr.bf16.gmra.mxu0 %v250
    %v380 = vpop.f32.mrf.mxu0
    %v381 = vadd.f32 %v152, %v380
    %v382 = vpop.f32.mrf.mxu0
    %v383 = vpop.f32.mrf.mxu0
    %v384 = vadd.f32 %v152, %v383
    %v385 = vpop.f32.mrf.mxu0
    %386 = vmatprep.mubr.bf16.mxu0 0
    %387 = vmatmul.mubr.bf16.gmra.mxu0 %v251
    %v388 = vpop.f32.mrf.mxu0
    %v389 = vadd.f32 %v152, %v388
    %v390 = vpop.f32.mrf.mxu0
    %v391 = vpop.f32.mrf.mxu0
    %v392 = vadd.f32 %v152, %v391
    %v393 = vpop.f32.mrf.mxu0
    %394 = vmatprep.mubr.bf16.mxu0 0
    %395 = vmatmul.mubr.bf16.gmra.mxu0 %v252
    %v396 = vpop.f32.mrf.mxu0
    %v397 = vadd.f32 %v152, %v396
    %v398 = vpop.f32.mrf.mxu0
    %v399 = vpop.f32.mrf.mxu0
    %v400 = vadd.f32 %v152, %v399
    %v401 = vpop.f32.mrf.mxu0
    %402 = vmatprep.mubr.bf16.mxu0 0
    %403 = vmatmul.mubr.bf16.gmra.mxu0 %v253
    %v404 = vpop.f32.mrf.mxu0
    %v405 = vadd.f32 %v152, %v404
    %v406 = vpop.f32.mrf.mxu0
    %v407 = vpop.f32.mrf.mxu0
    %v408 = vadd.f32 %v152, %v407
    %v409 = vpop.f32.mrf.mxu0
    %410 = vmatprep.mubr.bf16.mxu0 0
    %411 = vmatmul.mubr.bf16.gmra.mxu0 %v254
    %v412 = vpop.f32.mrf.mxu0
    %v413 = vadd.f32 %v152, %v412
    %v414 = vpop.f32.mrf.mxu0
    %v415 = vpop.f32.mrf.mxu0
    %v416 = vadd.f32 %v152, %v415
    %v417 = vpop.f32.mrf.mxu0
    %418 = vmatprep.mubr.bf16.mxu0 0
    %419 = vmatmul.mubr.bf16.gmra.mxu0 %v255
    %v420 = vpop.f32.mrf.mxu0
    %v421 = vadd.f32 %v152, %v420
    %v422 = vpop.f32.mrf.mxu0
    %v423 = vpop.f32.mrf.mxu0
    %v424 = vadd.f32 %v152, %v423
    %v425 = vpop.f32.mrf.mxu0
    %426 = vmatprep.mubr.bf16.mxu0 0
    %427 = vmatmul.mubr.bf16.gmra.mxu0 %v256
    %v428 = vpop.f32.mrf.mxu0
    %v429 = vadd.f32 %v152, %v428
    %v430 = vpop.f32.mrf.mxu0
    %v431 = vpop.f32.mrf.mxu0
    %v432 = vadd.f32 %v152, %v431
    %v433 = vpop.f32.mrf.mxu0
    %434 = vmatprep.mubr.bf16.mxu0 0
    %435 = vmatmul.mubr.bf16.gmra.mxu0 %v257
    %v436 = vpop.f32.mrf.mxu0
    %v437 = vadd.f32 %v152, %v436
    %v438 = vpop.f32.mrf.mxu0
    %v439 = vpop.f32.mrf.mxu0
    %v440 = vadd.f32 %v152, %v439
    %v441 = vpop.f32.mrf.mxu0
    %442 = vmatprep.mubr.bf16.mxu0 0
    %443 = vmatmul.mubr.bf16.gmra.mxu0 %v258
    %v444 = vpop.f32.mrf.mxu0
    %v445 = vadd.f32 %v152, %v444
    %v446 = vpop.f32.mrf.mxu0
    %v447 = vpop.f32.mrf.mxu0
    %v448 = vadd.f32 %v152, %v447
    %v449 = vpop.f32.mrf.mxu0
    %450 = vmatprep.mubr.bf16.mxu0 0
    %451 = vmatmul.mubr.bf16.gmra.mxu0 %v259
    %v452 = vpop.f32.mrf.mxu0
    %v453 = vadd.f32 %v152, %v452
    %v454 = vpop.f32.mrf.mxu0
    %v455 = vpop.f32.mrf.mxu0
    %v456 = vadd.f32 %v152, %v455
    %v457 = vpop.f32.mrf.mxu0
    %458 = vmatprep.mubr.bf16.mxu0 0
    %459 = vmatmul.mubr.bf16.gmra.mxu0 %v260
    %v460 = vpop.f32.mrf.mxu0
    %v461 = vadd.f32 %v152, %v460
    %v462 = vpop.f32.mrf.mxu0
    %v463 = vpop.f32.mrf.mxu0
    %v464 = vadd.f32 %v152, %v463
    %v465 = vpop.f32.mrf.mxu0
    %466 = vmatprep.mubr.bf16.mxu0 0
    %467 = vmatmul.mubr.bf16.gmra.mxu0 %v261
    %v468 = vpop.f32.mrf.mxu0
    %v469 = vadd.f32 %v152, %v468
    %v470 = vpop.f32.mrf.mxu0
    %v471 = vpop.f32.mrf.mxu0
    %v472 = vadd.f32 %v152, %v471
    %v473 = vpop.f32.mrf.mxu0
    %474 = vmatprep.mubr.bf16.mxu0 0
    %475 = vmatmul.mubr.bf16.gmra.mxu0 %v262
    %v476 = vpop.f32.mrf.mxu0
    %v477 = vadd.f32 %v152, %v476
    %v478 = vpop.f32.mrf.mxu0
    %v479 = vpop.f32.mrf.mxu0
    %v480 = vadd.f32 %v152, %v479
    %v481 = vpop.f32.mrf.mxu0
    %482 = vmatprep.mubr.bf16.mxu0 0
    %483 = vmatmul.mubr.bf16.gmra.mxu0 %v263
    %v484 = vpop.f32.mrf.mxu0
    %v485 = vadd.f32 %v152, %v484
    %v486 = vpop.f32.mrf.mxu0
    %v487 = vpop.f32.mrf.mxu0
    %v488 = vadd.f32 %v152, %v487
    %v489 = vpop.f32.mrf.mxu0
    %490 = vmatprep.mubr.bf16.mxu0 0
    %491 = vmatmul.mubr.bf16.gmra.mxu0 %v264
    %v492 = vpop.f32.mrf.mxu0
    %v493 = vadd.f32 %v152, %v492
    %v494 = vpop.f32.mrf.mxu0
    %v495 = vpop.f32.mrf.mxu0
    %v496 = vadd.f32 %v152, %v495
    %v497 = vpop.f32.mrf.mxu0
    %498 = vmatprep.mubr.bf16.mxu0 0
    %499 = vmatmul.mubr.bf16.gmra.mxu0 %v265
    %v500 = vpop.f32.mrf.mxu0
    %v501 = vadd.f32 %v152, %v500
    %v502 = vpop.f32.mrf.mxu0
    %v503 = vpop.f32.mrf.mxu0
    %v504 = vadd.f32 %v152, %v503
    %v505 = vpop.f32.mrf.mxu0
    %506 = vmatprep.mubr.bf16.mxu0 0
    %507 = vmatmul.mubr.bf16.gmra.mxu0 %v266
    %v508 = vpop.f32.mrf.mxu0
    %v509 = vadd.f32 %v152, %v508
    %v510 = vpop.f32.mrf.mxu0
    %v511 = vpop.f32.mrf.mxu0
    %v512 = vadd.f32 %v152, %v511
    %v513 = vpop.f32.mrf.mxu0
    %514 = vmatprep.mubr.bf16.mxu0 0
    %515 = vmatmul.mubr.bf16.gmra.mxu0 %v267
    %v516 = vpop.f32.mrf.mxu0
    %v517 = vadd.f32 %v152, %v516
    %v518 = vpop.f32.mrf.mxu0
    %v519 = vpop.f32.mrf.mxu0
    %v520 = vadd.f32 %v152, %v519
    %v521 = vpop.f32.mrf.mxu0
    %522 = vmatprep.mubr.bf16.mxu0 0
    %523 = vmatmul.mubr.bf16.gmra.mxu0 %v268
    %v524 = vpop.f32.mrf.mxu0
    %v525 = vadd.f32 %v152, %v524
    %v526 = vpop.f32.mrf.mxu0
    %v527 = vpop.f32.mrf.mxu0
    %v528 = vadd.f32 %v152, %v527
    %v529 = vpop.f32.mrf.mxu0
    %530 = vmatprep.mubr.bf16.mxu0 0
    %531 = vmatmul.mubr.bf16.gmra.mxu0 %v269
    %v532 = vpop.f32.mrf.mxu0
    %v533 = vadd.f32 %v152, %v532
    %v534 = vpop.f32.mrf.mxu0
    %v535 = vpop.f32.mrf.mxu0
    %v536 = vadd.f32 %v152, %v535
    %v537 = vpop.f32.mrf.mxu0
    %538 = vmatprep.mubr.bf16.mxu0 0
    %539 = vmatmul.mubr.bf16.gmra.mxu0 %v270
    %v540 = vpop.f32.mrf.mxu0
    %v541 = vadd.f32 %v152, %v540
    %v542 = vpop.f32.mrf.mxu0
    %v543 = vpop.f32.mrf.mxu0
    %v544 = vadd.f32 %v152, %v543
    %v545 = vpop.f32.mrf.mxu0
    %546 = vmatprep.mubr.bf16.mxu0 0
    %547 = vmatmul.mubr.bf16.gmra.mxu0 %v271
    %v548 = vpop.f32.mrf.mxu0
    %v549 = vadd.f32 %v152, %v548
    %v550 = vpop.f32.mrf.mxu0
    %v551 = vpop.f32.mrf.mxu0
    %v552 = vadd.f32 %v152, %v551
    %v553 = vpop.f32.mrf.mxu0
    %554 = vmatprep.mubr.bf16.mxu0 0
    %555 = vmatmul.mubr.bf16.gmra.mxu0 %v272
    %v556 = vpop.f32.mrf.mxu0
    %v557 = vadd.f32 %v152, %v556
    %v558 = vpop.f32.mrf.mxu0
    %v559 = vpop.f32.mrf.mxu0
    %v560 = vadd.f32 %v152, %v559
    %v561 = vpop.f32.mrf.mxu0
    %562 = vmatprep.mubr.bf16.mxu0 0
    %563 = vmatmul.mubr.bf16.gmra.mxu0 %v273
    %v564 = vpop.f32.mrf.mxu0
    %v565 = vadd.f32 %v152, %v564
    %v566 = vpop.f32.mrf.mxu0
    %v567 = vpop.f32.mrf.mxu0
    %v568 = vadd.f32 %v152, %v567
    %v569 = vpop.f32.mrf.mxu0
    %570 = vdwg.mxu0
    %v571 = vmax.f32 %v381, 0.0
    %v572 = vmax.f32 %v384, 0.0
    %v573 = vmax.f32 %v389, 0.0
    %v574 = vmax.f32 %v392, 0.0
    %v575 = vmax.f32 %v397, 0.0
    %v576 = vmax.f32 %v400, 0.0
    %v577 = vmax.f32 %v405, 0.0
    %v578 = vmax.f32 %v408, 0.0
    %v579 = vmax.f32 %v413, 0.0
    %v580 = vmax.f32 %v416, 0.0
    %v581 = vmax.f32 %v421, 0.0
    %v582 = vmax.f32 %v424, 0.0
    %v583 = vmax.f32 %v429, 0.0
    %v584 = vmax.f32 %v432, 0.0
    %v585 = vmax.f32 %v437, 0.0
    %v586 = vmax.f32 %v440, 0.0
    %v587 = vmax.f32 %v445, 0.0
    %v588 = vmax.f32 %v448, 0.0
    %v589 = vmax.f32 %v453, 0.0
    %v590 = vmax.f32 %v456, 0.0
    %v591 = vmax.f32 %v461, 0.0
    %v592 = vmax.f32 %v464, 0.0
    %v593 = vmax.f32 %v469, 0.0
    %v594 = vmax.f32 %v472, 0.0
    %v595 = vmax.f32 %v477, 0.0
    %v596 = vmax.f32 %v480, 0.0
    %v597 = vmax.f32 %v485, 0.0
    %v598 = vmax.f32 %v488, 0.0
    %v599 = vmax.f32 %v493, 0.0
    %v600 = vmax.f32 %v496, 0.0
    %v601 = vmax.f32 %v501, 0.0
    %v602 = vmax.f32 %v504, 0.0
    %v603 = vmax.f32 %v509, 0.0
    %v604 = vmax.f32 %v512, 0.0
    %v605 = vmax.f32 %v517, 0.0
    %v606 = vmax.f32 %v520, 0.0
    %v607 = vmax.f32 %v525, 0.0
    %v608 = vmax.f32 %v528, 0.0
    %v609 = vmax.f32 %v533, 0.0
    %v610 = vmax.f32 %v536, 0.0
    %v611 = vmax.f32 %v541, 0.0
    %v612 = vmax.f32 %v544, 0.0
    %v613 = vmax.f32 %v549, 0.0
    %v614 = vmax.f32 %v552, 0.0
    %v615 = vmax.f32 %v557, 0.0
    %v616 = vmax.f32 %v560, 0.0
    %v617 = vmax.f32 %v565, 0.0
    %v618 = vmax.f32 %v568, 0.0
    %v619 = vld [vmem:[#allocation7] sm:$0xf]
    %v620 = vld [vmem:[#allocation7 + $0x4] sm:$0xf]
    %v621 = vld [vmem:[#allocation7 + $0x8] sm:$0xf]
    %v622 = vld [vmem:[#allocation7 + $0xc] sm:$0xf]
    %v623 = vld [vmem:[#allocation7 + $0x10] sm:$0xf]
    %v624 = vld [vmem:[#allocation7 + $0x14] sm:$0xf]
    %v625 = vld [vmem:[#allocation7 + $0x18] sm:$0xf]
    %v626 = vld [vmem:[#allocation7 + $0x1c] sm:$0xf]
    %v627 = vld [vmem:[#allocation7 + $0x20] sm:$0xf]
    %v628 = vld [vmem:[#allocation7 + $0x24] sm:$0xf]
    %v629 = vld [vmem:[#allocation7 + $0x28] sm:$0xf]
    %v630 = vld [vmem:[#allocation7 + $0x2c] sm:$0xf]
    %v631 = vld [vmem:[#allocation7 + $0x30] sm:$0xf]
    %v632 = vld [vmem:[#allocation7 + $0x34] sm:$0xf]
    %v633 = vld [vmem:[#allocation7 + $0x38] sm:$0xf]
    %v634 = vld [vmem:[#allocation7 + $0x3c] sm:$0xf]
    %v635 = vld [vmem:[%s4] sm:$0x1]
    %v636 = vpack.c.bf16 %v572, %v571
    %v637 = vpack.c.bf16 %v574, %v573
    %v638 = vpack.c.bf16 %v576, %v575
    %v639 = vpack.c.bf16 %v578, %v577
    %v640 = vpack.c.bf16 %v580, %v579
    %v641 = vpack.c.bf16 %v582, %v581
    %v642 = vpack.c.bf16 %v584, %v583
    %v643 = vpack.c.bf16 %v586, %v585
    %v644 = vpack.c.bf16 %v588, %v587
    %v645 = vpack.c.bf16 %v590, %v589
    %v646 = vpack.c.bf16 %v592, %v591
    %v647 = vpack.c.bf16 %v594, %v593
    %v648 = vpack.c.bf16 %v596, %v595
    %v649 = vpack.c.bf16 %v598, %v597
    %v650 = vpack.c.bf16 %v600, %v599
    %v651 = vpack.c.bf16 %v602, %v601
    %v652 = vpack.c.bf16 %v604, %v603
    %v653 = vpack.c.bf16 %v606, %v605
    %v654 = vpack.c.bf16 %v608, %v607
    %v655 = vpack.c.bf16 %v610, %v609
    %v656 = vpack.c.bf16 %v612, %v611
    %v657 = vpack.c.bf16 %v614, %v613
    %v658 = vpack.c.bf16 %v616, %v615
    %v659 = vpack.c.bf16 %v618, %v617
    %v661 = vlaneseq
    %v662 = vshrl.u32 %v661, 7
    %v663 = vsub.s32 0, %v662
    %v664 = vrot.slane %v635, %v663
    %v682 = vunpack.c.l.b16 %v619
    %v683 = vunpack.c.l.b16 %v620
    %v684 = vunpack.c.l.b16 %v621
    %v685 = vunpack.c.l.b16 %v622
    %v686 = vunpack.c.l.b16 %v623
    %v687 = vunpack.c.l.b16 %v624
    %v688 = vunpack.c.l.b16 %v625
    %v689 = vunpack.c.l.b16 %v626
    %v690 = vunpack.c.l.b16 %v627
    %v691 = vunpack.c.l.b16 %v628
    %v692 = vunpack.c.l.b16 %v629
    %v693 = vunpack.c.l.b16 %v630
    %v694 = vunpack.c.l.b16 %v631
    %v695 = vunpack.c.l.b16 %v632
    %v696 = vunpack.c.l.b16 %v633
    %v697 = vunpack.c.l.b16 %v634
    %v698 = vpack.c.b16 %v683, %v682
    %v699 = vpack.c.b16 %v685, %v684
    %v700 = vpack.c.b16 %v687, %v686
    %v701 = vpack.c.b16 %v689, %v688
    %v702 = vpack.c.b16 %v691, %v690
    %v703 = vpack.c.b16 %v693, %v692
    %v704 = vpack.c.b16 %v695, %v694
    %v705 = vpack.c.b16 %v697, %v696
    %714 = vmatprep.subr.bf16.mxu0 0
    %715 = vmatpush1.bf16.msra.mxu0 %v705
    %716 = vmatprep.subr.bf16.mxu0 0
    %717 = vmatpush1.bf16.msra.mxu0 %v704
    %718 = vmatprep.subr.bf16.mxu0 0
    %719 = vmatpush1.bf16.msra.mxu0 %v703
    %720 = vmatprep.subr.bf16.mxu0 0
    %721 = vmatpush1.bf16.msra.mxu0 %v702
    %722 = vmatprep.subr.bf16.mxu0 0
    %723 = vmatpush1.bf16.msra.mxu0 %v701
    %724 = vmatprep.subr.bf16.mxu0 0
    %725 = vmatpush1.bf16.msra.mxu0 %v700
    %726 = vmatprep.subr.bf16.mxu0 0
    %727 = vmatpush1.bf16.msra.mxu0 %v699
    %728 = vmatprep.subr.bf16.mxu0 0
    %729 = vmatpush1.bf16.msra.mxu0 %v698
    %730 = vmatprep.subr.bf16.mxu0 0
    %731 = vmatpush2.bf16.msra.mxu0 0
    %732 = vmatprep.subr.bf16.mxu0 0
    %733 = vmatpush2.bf16.msra.mxu0 0
    %734 = vmatprep.subr.bf16.mxu0 0
    %735 = vmatpush2.bf16.msra.mxu0 0
    %736 = vmatprep.subr.bf16.mxu0 0
    %737 = vmatpush2.bf16.msra.mxu0 0
    %738 = vmatprep.subr.bf16.mxu0 0
    %739 = vmatpush2.bf16.msra.mxu0 0
    %740 = vmatprep.subr.bf16.mxu0 0
    %741 = vmatpush2.bf16.msra.mxu0 0
    %742 = vmatprep.subr.bf16.mxu0 0
    %743 = vmatpush2.bf16.msra.mxu0 0
    %744 = vmatprep.subr.bf16.mxu0 0
    %745 = vmatpush2.bf16.msra.mxu0 0
    %746 = vmatprep.mubr.bf16.mxu0 0
    %747 = vmatmul.mubr.bf16.gmra.mxu0 %v636
    %v748 = vpop.f32.mrf.mxu0
    %v749 = vadd.f32 %v664, %v748
    %v750 = vpop.f32.mrf.mxu0
    %v751 = vpop.f32.mrf.mxu0
    %v752 = vadd.f32 %v664, %v751
    %v753 = vpop.f32.mrf.mxu0
    %754 = vmatprep.mubr.bf16.mxu0 0
    %755 = vmatmul.mubr.bf16.gmra.mxu0 %v637
    %v756 = vpop.f32.mrf.mxu0
    %v757 = vadd.f32 %v664, %v756
    %v758 = vpop.f32.mrf.mxu0
    %v759 = vpop.f32.mrf.mxu0
    %v760 = vadd.f32 %v664, %v759
    %v761 = vpop.f32.mrf.mxu0
    %762 = vmatprep.mubr.bf16.mxu0 0
    %763 = vmatmul.mubr.bf16.gmra.mxu0 %v638
    %v764 = vpop.f32.mrf.mxu0
    %v765 = vadd.f32 %v664, %v764
    %v766 = vpop.f32.mrf.mxu0
    %v767 = vpop.f32.mrf.mxu0
    %v768 = vadd.f32 %v664, %v767
    %v769 = vpop.f32.mrf.mxu0
    %770 = vmatprep.mubr.bf16.mxu0 0
    %771 = vmatmul.mubr.bf16.gmra.mxu0 %v639
    %v772 = vpop.f32.mrf.mxu0
    %v773 = vadd.f32 %v664, %v772
    %v774 = vpop.f32.mrf.mxu0
    %v775 = vpop.f32.mrf.mxu0
    %v776 = vadd.f32 %v664, %v775
    %v777 = vpop.f32.mrf.mxu0
    %778 = vmatprep.mubr.bf16.mxu0 0
    %779 = vmatmul.mubr.bf16.gmra.mxu0 %v640
    %v780 = vpop.f32.mrf.mxu0
    %v781 = vadd.f32 %v664, %v780
    %v782 = vpop.f32.mrf.mxu0
    %v783 = vpop.f32.mrf.mxu0
    %v784 = vadd.f32 %v664, %v783
    %v785 = vpop.f32.mrf.mxu0
    %786 = vmatprep.mubr.bf16.mxu0 0
    %787 = vmatmul.mubr.bf16.gmra.mxu0 %v641
    %v788 = vpop.f32.mrf.mxu0
    %v789 = vadd.f32 %v664, %v788
    %v790 = vpop.f32.mrf.mxu0
    %v791 = vpop.f32.mrf.mxu0
    %v792 = vadd.f32 %v664, %v791
    %v793 = vpop.f32.mrf.mxu0
    %794 = vmatprep.mubr.bf16.mxu0 0
    %795 = vmatmul.mubr.bf16.gmra.mxu0 %v642
    %v796 = vpop.f32.mrf.mxu0
    %v797 = vadd.f32 %v664, %v796
    %v798 = vpop.f32.mrf.mxu0
    %v799 = vpop.f32.mrf.mxu0
    %v800 = vadd.f32 %v664, %v799
    %v801 = vpop.f32.mrf.mxu0
    %802 = vmatprep.mubr.bf16.mxu0 0
    %803 = vmatmul.mubr.bf16.gmra.mxu0 %v643
    %v804 = vpop.f32.mrf.mxu0
    %v805 = vadd.f32 %v664, %v804
    %v806 = vpop.f32.mrf.mxu0
    %v807 = vpop.f32.mrf.mxu0
    %v808 = vadd.f32 %v664, %v807
    %v809 = vpop.f32.mrf.mxu0
    %810 = vmatprep.mubr.bf16.mxu0 0
    %811 = vmatmul.mubr.bf16.gmra.mxu0 %v644
    %v812 = vpop.f32.mrf.mxu0
    %v813 = vadd.f32 %v664, %v812
    %v814 = vpop.f32.mrf.mxu0
    %v815 = vpop.f32.mrf.mxu0
    %v816 = vadd.f32 %v664, %v815
    %v817 = vpop.f32.mrf.mxu0
    %818 = vmatprep.mubr.bf16.mxu0 0
    %819 = vmatmul.mubr.bf16.gmra.mxu0 %v645
    %v820 = vpop.f32.mrf.mxu0
    %v821 = vadd.f32 %v664, %v820
    %v822 = vpop.f32.mrf.mxu0
    %v823 = vpop.f32.mrf.mxu0
    %v824 = vadd.f32 %v664, %v823
    %v825 = vpop.f32.mrf.mxu0
    %826 = vmatprep.mubr.bf16.mxu0 0
    %827 = vmatmul.mubr.bf16.gmra.mxu0 %v646
    %v828 = vpop.f32.mrf.mxu0
    %v829 = vadd.f32 %v664, %v828
    %v830 = vpop.f32.mrf.mxu0
    %v831 = vpop.f32.mrf.mxu0
    %v832 = vadd.f32 %v664, %v831
    %v833 = vpop.f32.mrf.mxu0
    %834 = vmatprep.mubr.bf16.mxu0 0
    %835 = vmatmul.mubr.bf16.gmra.mxu0 %v647
    %v836 = vpop.f32.mrf.mxu0
    %v837 = vadd.f32 %v664, %v836
    %v838 = vpop.f32.mrf.mxu0
    %v839 = vpop.f32.mrf.mxu0
    %v840 = vadd.f32 %v664, %v839
    %v841 = vpop.f32.mrf.mxu0
    %842 = vmatprep.mubr.bf16.mxu0 0
    %843 = vmatmul.mubr.bf16.gmra.mxu0 %v648
    %v844 = vpop.f32.mrf.mxu0
    %v845 = vadd.f32 %v664, %v844
    %v846 = vpop.f32.mrf.mxu0
    %v847 = vpop.f32.mrf.mxu0
    %v848 = vadd.f32 %v664, %v847
    %v849 = vpop.f32.mrf.mxu0
    %850 = vmatprep.mubr.bf16.mxu0 0
    %851 = vmatmul.mubr.bf16.gmra.mxu0 %v649
    %v852 = vpop.f32.mrf.mxu0
    %v853 = vadd.f32 %v664, %v852
    %v854 = vpop.f32.mrf.mxu0
    %v855 = vpop.f32.mrf.mxu0
    %v856 = vadd.f32 %v664, %v855
    %v857 = vpop.f32.mrf.mxu0
    %858 = vmatprep.mubr.bf16.mxu0 0
    %859 = vmatmul.mubr.bf16.gmra.mxu0 %v650
    %v860 = vpop.f32.mrf.mxu0
    %v861 = vadd.f32 %v664, %v860
    %v862 = vpop.f32.mrf.mxu0
    %v863 = vpop.f32.mrf.mxu0
    %v864 = vadd.f32 %v664, %v863
    %v865 = vpop.f32.mrf.mxu0
    %866 = vmatprep.mubr.bf16.mxu0 0
    %867 = vmatmul.mubr.bf16.gmra.mxu0 %v651
    %v868 = vpop.f32.mrf.mxu0
    %v869 = vadd.f32 %v664, %v868
    %v870 = vpop.f32.mrf.mxu0
    %v871 = vpop.f32.mrf.mxu0
    %v872 = vadd.f32 %v664, %v871
    %v873 = vpop.f32.mrf.mxu0
    %874 = vmatprep.mubr.bf16.mxu0 0
    %875 = vmatmul.mubr.bf16.gmra.mxu0 %v652
    %v876 = vpop.f32.mrf.mxu0
    %v877 = vadd.f32 %v664, %v876
    %v878 = vpop.f32.mrf.mxu0
    %v879 = vpop.f32.mrf.mxu0
    %v880 = vadd.f32 %v664, %v879
    %v881 = vpop.f32.mrf.mxu0
    %882 = vmatprep.mubr.bf16.mxu0 0
    %883 = vmatmul.mubr.bf16.gmra.mxu0 %v653
    %v884 = vpop.f32.mrf.mxu0
    %v885 = vadd.f32 %v664, %v884
    %v886 = vpop.f32.mrf.mxu0
    %v887 = vpop.f32.mrf.mxu0
    %v888 = vadd.f32 %v664, %v887
    %v889 = vpop.f32.mrf.mxu0
    %890 = vmatprep.mubr.bf16.mxu0 0
    %891 = vmatmul.mubr.bf16.gmra.mxu0 %v654
    %v892 = vpop.f32.mrf.mxu0
    %v893 = vadd.f32 %v664, %v892
    %v894 = vpop.f32.mrf.mxu0
    %v895 = vpop.f32.mrf.mxu0
    %v896 = vadd.f32 %v664, %v895
    %v897 = vpop.f32.mrf.mxu0
    %898 = vmatprep.mubr.bf16.mxu0 0
    %899 = vmatmul.mubr.bf16.gmra.mxu0 %v655
    %v900 = vpop.f32.mrf.mxu0
    %v901 = vadd.f32 %v664, %v900
    %v902 = vpop.f32.mrf.mxu0
    %v903 = vpop.f32.mrf.mxu0
    %v904 = vadd.f32 %v664, %v903
    %v905 = vpop.f32.mrf.mxu0
    %906 = vmatprep.mubr.bf16.mxu0 0
    %907 = vmatmul.mubr.bf16.gmra.mxu0 %v656
    %v908 = vpop.f32.mrf.mxu0
    %v909 = vadd.f32 %v664, %v908
    %v910 = vpop.f32.mrf.mxu0
    %v911 = vpop.f32.mrf.mxu0
    %v912 = vadd.f32 %v664, %v911
    %v913 = vpop.f32.mrf.mxu0
    %914 = vmatprep.mubr.bf16.mxu0 0
    %915 = vmatmul.mubr.bf16.gmra.mxu0 %v657
    %v916 = vpop.f32.mrf.mxu0
    %v917 = vadd.f32 %v664, %v916
    %v918 = vpop.f32.mrf.mxu0
    %v919 = vpop.f32.mrf.mxu0
    %v920 = vadd.f32 %v664, %v919
    %v921 = vpop.f32.mrf.mxu0
    %922 = vmatprep.mubr.bf16.mxu0 0
    %923 = vmatmul.mubr.bf16.gmra.mxu0 %v658
    %v924 = vpop.f32.mrf.mxu0
    %v925 = vadd.f32 %v664, %v924
    %v926 = vpop.f32.mrf.mxu0
    %v927 = vpop.f32.mrf.mxu0
    %v928 = vadd.f32 %v664, %v927
    %v929 = vpop.f32.mrf.mxu0
    %930 = vmatprep.mubr.bf16.mxu0 0
    %931 = vmatmul.mubr.bf16.gmra.mxu0 %v659
    %v932 = vpop.f32.mrf.mxu0
    %v933 = vadd.f32 %v664, %v932
    %v934 = vpop.f32.mrf.mxu0
    %v935 = vpop.f32.mrf.mxu0
    %v936 = vadd.f32 %v664, %v935
    %v937 = vpop.f32.mrf.mxu0
    %938 = vdwg.mxu0
    %v939 = vmax.f32 %v749, 0.0
    %v940 = vmax.f32 %v752, 0.0
    %v941 = vmax.f32 %v757, 0.0
    %v942 = vmax.f32 %v760, 0.0
    %v943 = vmax.f32 %v765, 0.0
    %v944 = vmax.f32 %v768, 0.0
    %v945 = vmax.f32 %v773, 0.0
    %v946 = vmax.f32 %v776, 0.0
    %v947 = vmax.f32 %v781, 0.0
    %v948 = vmax.f32 %v784, 0.0
    %v949 = vmax.f32 %v789, 0.0
    %v950 = vmax.f32 %v792, 0.0
    %v951 = vmax.f32 %v797, 0.0
    %v952 = vmax.f32 %v800, 0.0
    %v953 = vmax.f32 %v805, 0.0
    %v954 = vmax.f32 %v808, 0.0
    %v955 = vmax.f32 %v813, 0.0
    %v956 = vmax.f32 %v816, 0.0
    %v957 = vmax.f32 %v821, 0.0
    %v958 = vmax.f32 %v824, 0.0
    %v959 = vmax.f32 %v829, 0.0
    %v960 = vmax.f32 %v832, 0.0
    %v961 = vmax.f32 %v837, 0.0
    %v962 = vmax.f32 %v840, 0.0
    %v963 = vmax.f32 %v845, 0.0
    %v964 = vmax.f32 %v848, 0.0
    %v965 = vmax.f32 %v853, 0.0
    %v966 = vmax.f32 %v856, 0.0
    %v967 = vmax.f32 %v861, 0.0
    %v968 = vmax.f32 %v864, 0.0
    %v969 = vmax.f32 %v869, 0.0
    %v970 = vmax.f32 %v872, 0.0
    %v971 = vmax.f32 %v877, 0.0
    %v972 = vmax.f32 %v880, 0.0
    %v973 = vmax.f32 %v885, 0.0
    %v974 = vmax.f32 %v888, 0.0
    %v975 = vmax.f32 %v893, 0.0
    %v976 = vmax.f32 %v896, 0.0
    %v977 = vmax.f32 %v901, 0.0
    %v978 = vmax.f32 %v904, 0.0
    %v979 = vmax.f32 %v909, 0.0
    %v980 = vmax.f32 %v912, 0.0
    %v981 = vmax.f32 %v917, 0.0
    %v982 = vmax.f32 %v920, 0.0
    %v983 = vmax.f32 %v925, 0.0
    %v984 = vmax.f32 %v928, 0.0
    %v985 = vmax.f32 %v933, 0.0
    %v986 = vmax.f32 %v936, 0.0
    %v987 = vld [vmem:[#allocation8] sm:$0xf]
    %v988 = vld [vmem:[#allocation8 + $0x4] sm:$0xf]
    %v989 = vld [vmem:[#allocation8 + $0x8] sm:$0xf]
    %v990 = vld [vmem:[#allocation8 + $0xc] sm:$0xf]
    %v991 = vld [vmem:[#allocation8 + $0x10] sm:$0xf]
    %v992 = vld [vmem:[#allocation8 + $0x14] sm:$0xf]
    %v993 = vld [vmem:[#allocation8 + $0x18] sm:$0xf]
    %v994 = vld [vmem:[#allocation8 + $0x1c] sm:$0xf]
    %v995 = vld [vmem:[#allocation8 + $0x20] sm:$0xf]
    %v996 = vld [vmem:[#allocation8 + $0x24] sm:$0xf]
    %v997 = vld [vmem:[#allocation8 + $0x28] sm:$0xf]
    %v998 = vld [vmem:[#allocation8 + $0x2c] sm:$0xf]
    %v999 = vld [vmem:[#allocation8 + $0x30] sm:$0xf]
    %v1000 = vld [vmem:[#allocation8 + $0x34] sm:$0xf]
    %v1001 = vld [vmem:[#allocation8 + $0x38] sm:$0xf]
    %v1002 = vld [vmem:[#allocation8 + $0x3c] sm:$0xf]
    %v1003 = vld [vmem:[%s6] sm:$0x1]
    %v1004 = vpack.c.bf16 %v940, %v939
    %v1005 = vpack.c.bf16 %v942, %v941
    %v1006 = vpack.c.bf16 %v944, %v943
    %v1007 = vpack.c.bf16 %v946, %v945
    %v1008 = vpack.c.bf16 %v948, %v947
    %v1009 = vpack.c.bf16 %v950, %v949
    %v1010 = vpack.c.bf16 %v952, %v951
    %v1011 = vpack.c.bf16 %v954, %v953
    %v1012 = vpack.c.bf16 %v956, %v955
    %v1013 = vpack.c.bf16 %v958, %v957
    %v1014 = vpack.c.bf16 %v960, %v959
    %v1015 = vpack.c.bf16 %v962, %v961
    %v1016 = vpack.c.bf16 %v964, %v963
    %v1017 = vpack.c.bf16 %v966, %v965
    %v1018 = vpack.c.bf16 %v968, %v967
    %v1019 = vpack.c.bf16 %v970, %v969
    %v1020 = vpack.c.bf16 %v972, %v971
    %v1021 = vpack.c.bf16 %v974, %v973
    %v1022 = vpack.c.bf16 %v976, %v975
    %v1023 = vpack.c.bf16 %v978, %v977
    %v1024 = vpack.c.bf16 %v980, %v979
    %v1025 = vpack.c.bf16 %v982, %v981
    %v1026 = vpack.c.bf16 %v984, %v983
    %v1027 = vpack.c.bf16 %v986, %v985
    %v1029 = vlaneseq
    %v1030 = vshrl.u32 %v1029, 7
    %v1031 = vsub.s32 0, %v1030
    %v1032 = vrot.slane %v1003, %v1031
    %v1050 = vunpack.c.l.b16 %v987
    %v1051 = vunpack.c.l.b16 %v988
    %v1052 = vunpack.c.l.b16 %v989
    %v1053 = vunpack.c.l.b16 %v990
    %v1054 = vunpack.c.l.b16 %v991
    %v1055 = vunpack.c.l.b16 %v992
    %v1056 = vunpack.c.l.b16 %v993
    %v1057 = vunpack.c.l.b16 %v994
    %v1058 = vunpack.c.l.b16 %v995
    %v1059 = vunpack.c.l.b16 %v996
    %v1060 = vunpack.c.l.b16 %v997
    %v1061 = vunpack.c.l.b16 %v998
    %v1062 = vunpack.c.l.b16 %v999
    %v1063 = vunpack.c.l.b16 %v1000
    %v1064 = vunpack.c.l.b16 %v1001
    %v1065 = vunpack.c.l.b16 %v1002
    %v1066 = vpack.c.b16 %v1051, %v1050
    %v1067 = vpack.c.b16 %v1053, %v1052
    %v1068 = vpack.c.b16 %v1055, %v1054
    %v1069 = vpack.c.b16 %v1057, %v1056
    %v1070 = vpack.c.b16 %v1059, %v1058
    %v1071 = vpack.c.b16 %v1061, %v1060
    %v1072 = vpack.c.b16 %v1063, %v1062
    %v1073 = vpack.c.b16 %v1065, %v1064
    %1082 = vmatprep.subr.bf16.mxu0 0
    %1083 = vmatpush1.bf16.msra.mxu0 %v1073
    %1084 = vmatprep.subr.bf16.mxu0 0
    %1085 = vmatpush1.bf16.msra.mxu0 %v1072
    %1086 = vmatprep.subr.bf16.mxu0 0
    %1087 = vmatpush1.bf16.msra.mxu0 %v1071
    %1088 = vmatprep.subr.bf16.mxu0 0
    %1089 = vmatpush1.bf16.msra.mxu0 %v1070
    %1090 = vmatprep.subr.bf16.mxu0 0
    %1091 = vmatpush1.bf16.msra.mxu0 %v1069
    %1092 = vmatprep.subr.bf16.mxu0 0
    %1093 = vmatpush1.bf16.msra.mxu0 %v1068
    %1094 = vmatprep.subr.bf16.mxu0 0
    %1095 = vmatpush1.bf16.msra.mxu0 %v1067
    %1096 = vmatprep.subr.bf16.mxu0 0
    %1097 = vmatpush1.bf16.msra.mxu0 %v1066
    %1098 = vmatprep.subr.bf16.mxu0 0
    %1099 = vmatpush2.bf16.msra.mxu0 0
    %1100 = vmatprep.subr.bf16.mxu0 0
    %1101 = vmatpush2.bf16.msra.mxu0 0
    %1102 = vmatprep.subr.bf16.mxu0 0
    %1103 = vmatpush2.bf16.msra.mxu0 0
    %1104 = vmatprep.subr.bf16.mxu0 0
    %1105 = vmatpush2.bf16.msra.mxu0 0
    %1106 = vmatprep.subr.bf16.mxu0 0
    %1107 = vmatpush2.bf16.msra.mxu0 0
    %1108 = vmatprep.subr.bf16.mxu0 0
    %1109 = vmatpush2.bf16.msra.mxu0 0
    %1110 = vmatprep.subr.bf16.mxu0 0
    %1111 = vmatpush2.bf16.msra.mxu0 0
    %1112 = vmatprep.subr.bf16.mxu0 0
    %1113 = vmatpush2.bf16.msra.mxu0 0
    %1114 = vmatprep.mubr.bf16.mxu0 0
    %1115 = vmatmul.mubr.bf16.gmra.mxu0 %v1004
    %v1116 = vpop.f32.mrf.mxu0
    %v1117 = vadd.f32 %v1032, %v1116
    %v1118 = vpop.f32.mrf.mxu0
    %v1119 = vpop.f32.mrf.mxu0
    %v1120 = vadd.f32 %v1032, %v1119
    %v1121 = vpop.f32.mrf.mxu0
    %1122 = vmatprep.mubr.bf16.mxu0 0
    %1123 = vmatmul.mubr.bf16.gmra.mxu0 %v1005
    %v1124 = vpop.f32.mrf.mxu0
    %v1125 = vadd.f32 %v1032, %v1124
    %v1126 = vpop.f32.mrf.mxu0
    %v1127 = vpop.f32.mrf.mxu0
    %v1128 = vadd.f32 %v1032, %v1127
    %v1129 = vpop.f32.mrf.mxu0
    %1130 = vmatprep.mubr.bf16.mxu0 0
    %1131 = vmatmul.mubr.bf16.gmra.mxu0 %v1006
    %v1132 = vpop.f32.mrf.mxu0
    %v1133 = vadd.f32 %v1032, %v1132
    %v1134 = vpop.f32.mrf.mxu0
    %v1135 = vpop.f32.mrf.mxu0
    %v1136 = vadd.f32 %v1032, %v1135
    %v1137 = vpop.f32.mrf.mxu0
    %1138 = vmatprep.mubr.bf16.mxu0 0
    %1139 = vmatmul.mubr.bf16.gmra.mxu0 %v1007
    %v1140 = vpop.f32.mrf.mxu0
    %v1141 = vadd.f32 %v1032, %v1140
    %v1142 = vpop.f32.mrf.mxu0
    %v1143 = vpop.f32.mrf.mxu0
    %v1144 = vadd.f32 %v1032, %v1143
    %v1145 = vpop.f32.mrf.mxu0
    %1146 = vmatprep.mubr.bf16.mxu0 0
    %1147 = vmatmul.mubr.bf16.gmra.mxu0 %v1008
    %v1148 = vpop.f32.mrf.mxu0
    %v1149 = vadd.f32 %v1032, %v1148
    %v1150 = vpop.f32.mrf.mxu0
    %v1151 = vpop.f32.mrf.mxu0
    %v1152 = vadd.f32 %v1032, %v1151
    %v1153 = vpop.f32.mrf.mxu0
    %1154 = vmatprep.mubr.bf16.mxu0 0
    %1155 = vmatmul.mubr.bf16.gmra.mxu0 %v1009
    %v1156 = vpop.f32.mrf.mxu0
    %v1157 = vadd.f32 %v1032, %v1156
    %v1158 = vpop.f32.mrf.mxu0
    %v1159 = vpop.f32.mrf.mxu0
    %v1160 = vadd.f32 %v1032, %v1159
    %v1161 = vpop.f32.mrf.mxu0
    %1162 = vmatprep.mubr.bf16.mxu0 0
    %1163 = vmatmul.mubr.bf16.gmra.mxu0 %v1010
    %v1164 = vpop.f32.mrf.mxu0
    %v1165 = vadd.f32 %v1032, %v1164
    %v1166 = vpop.f32.mrf.mxu0
    %v1167 = vpop.f32.mrf.mxu0
    %v1168 = vadd.f32 %v1032, %v1167
    %v1169 = vpop.f32.mrf.mxu0
    %1170 = vmatprep.mubr.bf16.mxu0 0
    %1171 = vmatmul.mubr.bf16.gmra.mxu0 %v1011
    %v1172 = vpop.f32.mrf.mxu0
    %v1173 = vadd.f32 %v1032, %v1172
    %v1174 = vpop.f32.mrf.mxu0
    %v1175 = vpop.f32.mrf.mxu0
    %v1176 = vadd.f32 %v1032, %v1175
    %v1177 = vpop.f32.mrf.mxu0
    %1178 = vmatprep.mubr.bf16.mxu0 0
    %1179 = vmatmul.mubr.bf16.gmra.mxu0 %v1012
    %v1180 = vpop.f32.mrf.mxu0
    %v1181 = vadd.f32 %v1032, %v1180
    %v1182 = vpop.f32.mrf.mxu0
    %v1183 = vpop.f32.mrf.mxu0
    %v1184 = vadd.f32 %v1032, %v1183
    %v1185 = vpop.f32.mrf.mxu0
    %1186 = vmatprep.mubr.bf16.mxu0 0
    %1187 = vmatmul.mubr.bf16.gmra.mxu0 %v1013
    %v1188 = vpop.f32.mrf.mxu0
    %v1189 = vadd.f32 %v1032, %v1188
    %v1190 = vpop.f32.mrf.mxu0
    %v1191 = vpop.f32.mrf.mxu0
    %v1192 = vadd.f32 %v1032, %v1191
    %v1193 = vpop.f32.mrf.mxu0
    %1194 = vmatprep.mubr.bf16.mxu0 0
    %1195 = vmatmul.mubr.bf16.gmra.mxu0 %v1014
    %v1196 = vpop.f32.mrf.mxu0
    %v1197 = vadd.f32 %v1032, %v1196
    %v1198 = vpop.f32.mrf.mxu0
    %v1199 = vpop.f32.mrf.mxu0
    %v1200 = vadd.f32 %v1032, %v1199
    %v1201 = vpop.f32.mrf.mxu0
    %1202 = vmatprep.mubr.bf16.mxu0 0
    %1203 = vmatmul.mubr.bf16.gmra.mxu0 %v1015
    %v1204 = vpop.f32.mrf.mxu0
    %v1205 = vadd.f32 %v1032, %v1204
    %v1206 = vpop.f32.mrf.mxu0
    %v1207 = vpop.f32.mrf.mxu0
    %v1208 = vadd.f32 %v1032, %v1207
    %v1209 = vpop.f32.mrf.mxu0
    %1210 = vmatprep.mubr.bf16.mxu0 0
    %1211 = vmatmul.mubr.bf16.gmra.mxu0 %v1016
    %v1212 = vpop.f32.mrf.mxu0
    %v1213 = vadd.f32 %v1032, %v1212
    %v1214 = vpop.f32.mrf.mxu0
    %v1215 = vpop.f32.mrf.mxu0
    %v1216 = vadd.f32 %v1032, %v1215
    %v1217 = vpop.f32.mrf.mxu0
    %1218 = vmatprep.mubr.bf16.mxu0 0
    %1219 = vmatmul.mubr.bf16.gmra.mxu0 %v1017
    %v1220 = vpop.f32.mrf.mxu0
    %v1221 = vadd.f32 %v1032, %v1220
    %v1222 = vpop.f32.mrf.mxu0
    %v1223 = vpop.f32.mrf.mxu0
    %v1224 = vadd.f32 %v1032, %v1223
    %v1225 = vpop.f32.mrf.mxu0
    %1226 = vmatprep.mubr.bf16.mxu0 0
    %1227 = vmatmul.mubr.bf16.gmra.mxu0 %v1018
    %v1228 = vpop.f32.mrf.mxu0
    %v1229 = vadd.f32 %v1032, %v1228
    %v1230 = vpop.f32.mrf.mxu0
    %v1231 = vpop.f32.mrf.mxu0
    %v1232 = vadd.f32 %v1032, %v1231
    %v1233 = vpop.f32.mrf.mxu0
    %1234 = vmatprep.mubr.bf16.mxu0 0
    %1235 = vmatmul.mubr.bf16.gmra.mxu0 %v1019
    %v1236 = vpop.f32.mrf.mxu0
    %v1237 = vadd.f32 %v1032, %v1236
    %v1238 = vpop.f32.mrf.mxu0
    %v1239 = vpop.f32.mrf.mxu0
    %v1240 = vadd.f32 %v1032, %v1239
    %v1241 = vpop.f32.mrf.mxu0
    %1242 = vmatprep.mubr.bf16.mxu0 0
    %1243 = vmatmul.mubr.bf16.gmra.mxu0 %v1020
    %v1244 = vpop.f32.mrf.mxu0
    %v1245 = vadd.f32 %v1032, %v1244
    %v1246 = vpop.f32.mrf.mxu0
    %v1247 = vpop.f32.mrf.mxu0
    %v1248 = vadd.f32 %v1032, %v1247
    %v1249 = vpop.f32.mrf.mxu0
    %1250 = vmatprep.mubr.bf16.mxu0 0
    %1251 = vmatmul.mubr.bf16.gmra.mxu0 %v1021
    %v1252 = vpop.f32.mrf.mxu0
    %v1253 = vadd.f32 %v1032, %v1252
    %v1254 = vpop.f32.mrf.mxu0
    %v1255 = vpop.f32.mrf.mxu0
    %v1256 = vadd.f32 %v1032, %v1255
    %v1257 = vpop.f32.mrf.mxu0
    %1258 = vmatprep.mubr.bf16.mxu0 0
    %1259 = vmatmul.mubr.bf16.gmra.mxu0 %v1022
    %v1260 = vpop.f32.mrf.mxu0
    %v1261 = vadd.f32 %v1032, %v1260
    %v1262 = vpop.f32.mrf.mxu0
    %v1263 = vpop.f32.mrf.mxu0
    %v1264 = vadd.f32 %v1032, %v1263
    %v1265 = vpop.f32.mrf.mxu0
    %1266 = vmatprep.mubr.bf16.mxu0 0
    %1267 = vmatmul.mubr.bf16.gmra.mxu0 %v1023
    %v1268 = vpop.f32.mrf.mxu0
    %v1269 = vadd.f32 %v1032, %v1268
    %v1270 = vpop.f32.mrf.mxu0
    %v1271 = vpop.f32.mrf.mxu0
    %v1272 = vadd.f32 %v1032, %v1271
    %v1273 = vpop.f32.mrf.mxu0
    %1274 = vmatprep.mubr.bf16.mxu0 0
    %1275 = vmatmul.mubr.bf16.gmra.mxu0 %v1024
    %v1276 = vpop.f32.mrf.mxu0
    %v1277 = vadd.f32 %v1032, %v1276
    %v1278 = vpop.f32.mrf.mxu0
    %v1279 = vpop.f32.mrf.mxu0
    %v1280 = vadd.f32 %v1032, %v1279
    %v1281 = vpop.f32.mrf.mxu0
    %1282 = vmatprep.mubr.bf16.mxu0 0
    %1283 = vmatmul.mubr.bf16.gmra.mxu0 %v1025
    %v1284 = vpop.f32.mrf.mxu0
    %v1285 = vadd.f32 %v1032, %v1284
    %v1286 = vpop.f32.mrf.mxu0
    %v1287 = vpop.f32.mrf.mxu0
    %v1288 = vadd.f32 %v1032, %v1287
    %v1289 = vpop.f32.mrf.mxu0
    %1290 = vmatprep.mubr.bf16.mxu0 0
    %1291 = vmatmul.mubr.bf16.gmra.mxu0 %v1026
    %v1292 = vpop.f32.mrf.mxu0
    %v1293 = vadd.f32 %v1032, %v1292
    %v1294 = vpop.f32.mrf.mxu0
    %v1295 = vpop.f32.mrf.mxu0
    %v1296 = vadd.f32 %v1032, %v1295
    %v1297 = vpop.f32.mrf.mxu0
    %1298 = vmatprep.mubr.bf16.mxu0 0
    %1299 = vmatmul.mubr.bf16.gmra.mxu0 %v1027
    %v1300 = vpop.f32.mrf.mxu0
    %v1301 = vadd.f32 %v1032, %v1300
    %v1302 = vpop.f32.mrf.mxu0
    %v1303 = vpop.f32.mrf.mxu0
    %v1304 = vadd.f32 %v1032, %v1303
    %v1305 = vpop.f32.mrf.mxu0
    %1306 = vdwg.mxu0
    %1307 = vmax.xlane.f32.xlu0 %v1117
    %v1308 = vpop.xlane.xlu0 %1307
    %1309 = vmax.xlane.f32.xlu0 %v1120
    %v1310 = vpop.xlane.xlu0 %1309
    %1311 = vmax.xlane.f32.xlu0 %v1125
    %v1312 = vpop.xlane.xlu0 %1311
    %1313 = vmax.xlane.f32.xlu0 %v1128
    %v1314 = vpop.xlane.xlu0 %1313
    %1315 = vmax.xlane.f32.xlu0 %v1133
    %v1316 = vpop.xlane.xlu0 %1315
    %1317 = vmax.xlane.f32.xlu0 %v1136
    %v1318 = vpop.xlane.xlu0 %1317
    %1319 = vmax.xlane.f32.xlu0 %v1141
    %v1320 = vpop.xlane.xlu0 %1319
    %1321 = vmax.xlane.f32.xlu0 %v1144
    %v1322 = vpop.xlane.xlu0 %1321
    %1323 = vmax.xlane.f32.xlu0 %v1149
    %v1324 = vpop.xlane.xlu0 %1323
    %1325 = vmax.xlane.f32.xlu0 %v1152
    %v1326 = vpop.xlane.xlu0 %1325
    %1327 = vmax.xlane.f32.xlu0 %v1157
    %v1328 = vpop.xlane.xlu0 %1327
    %1329 = vmax.xlane.f32.xlu0 %v1160
    %v1330 = vpop.xlane.xlu0 %1329
    %1331 = vmax.xlane.f32.xlu0 %v1165
    %v1332 = vpop.xlane.xlu0 %1331
    %1333 = vmax.xlane.f32.xlu0 %v1168
    %v1334 = vpop.xlane.xlu0 %1333
    %1335 = vmax.xlane.f32.xlu0 %v1173
    %v1336 = vpop.xlane.xlu0 %1335
    %1337 = vmax.xlane.f32.xlu0 %v1176
    %v1338 = vpop.xlane.xlu0 %1337
    %1339 = vmax.xlane.f32.xlu0 %v1181
    %v1340 = vpop.xlane.xlu0 %1339
    %1341 = vmax.xlane.f32.xlu0 %v1184
    %v1342 = vpop.xlane.xlu0 %1341
    %1343 = vmax.xlane.f32.xlu0 %v1189
    %v1344 = vpop.xlane.xlu0 %1343
    %1345 = vmax.xlane.f32.xlu0 %v1192
    %v1346 = vpop.xlane.xlu0 %1345
    %1347 = vmax.xlane.f32.xlu0 %v1197
    %v1348 = vpop.xlane.xlu0 %1347
    %1349 = vmax.xlane.f32.xlu0 %v1200
    %v1350 = vpop.xlane.xlu0 %1349
    %1351 = vmax.xlane.f32.xlu0 %v1205
    %v1352 = vpop.xlane.xlu0 %1351
    %1353 = vmax.xlane.f32.xlu0 %v1208
    %v1354 = vpop.xlane.xlu0 %1353
    %1355 = vmax.xlane.f32.xlu0 %v1213
    %v1356 = vpop.xlane.xlu0 %1355
    %1357 = vmax.xlane.f32.xlu0 %v1216
    %v1358 = vpop.xlane.xlu0 %1357
    %1359 = vmax.xlane.f32.xlu0 %v1221
    %v1360 = vpop.xlane.xlu0 %1359
    %1361 = vmax.xlane.f32.xlu0 %v1224
    %v1362 = vpop.xlane.xlu0 %1361
    %1363 = vmax.xlane.f32.xlu0 %v1229
    %v1364 = vpop.xlane.xlu0 %1363
    %1365 = vmax.xlane.f32.xlu0 %v1232
    %v1366 = vpop.xlane.xlu0 %1365
    %1367 = vmax.xlane.f32.xlu0 %v1237
    %v1368 = vpop.xlane.xlu0 %1367
    %1369 = vmax.xlane.f32.xlu0 %v1240
    %v1370 = vpop.xlane.xlu0 %1369
    %1371 = vmax.xlane.f32.xlu0 %v1245
    %v1372 = vpop.xlane.xlu0 %1371
    %1373 = vmax.xlane.f32.xlu0 %v1248
    %v1374 = vpop.xlane.xlu0 %1373
    %1375 = vmax.xlane.f32.xlu0 %v1253
    %v1376 = vpop.xlane.xlu0 %1375
    %1377 = vmax.xlane.f32.xlu0 %v1256
    %v1378 = vpop.xlane.xlu0 %1377
    %1379 = vmax.xlane.f32.xlu0 %v1261
    %v1380 = vpop.xlane.xlu0 %1379
    %1381 = vmax.xlane.f32.xlu0 %v1264
    %v1382 = vpop.xlane.xlu0 %1381
    %1383 = vmax.xlane.f32.xlu0 %v1269
    %v1384 = vpop.xlane.xlu0 %1383
    %1385 = vmax.xlane.f32.xlu0 %v1272
    %v1386 = vpop.xlane.xlu0 %1385
    %1387 = vmax.xlane.f32.xlu0 %v1277
    %v1388 = vpop.xlane.xlu0 %1387
    %1389 = vmax.xlane.f32.xlu0 %v1280
    %v1390 = vpop.xlane.xlu0 %1389
    %1391 = vmax.xlane.f32.xlu0 %v1285
    %v1392 = vpop.xlane.xlu0 %1391
    %1393 = vmax.xlane.f32.xlu0 %v1288
    %v1394 = vpop.xlane.xlu0 %1393
    %1395 = vmax.xlane.f32.xlu0 %v1293
    %v1396 = vpop.xlane.xlu0 %1395
    %1397 = vmax.xlane.f32.xlu0 %v1296
    %v1398 = vpop.xlane.xlu0 %1397
    %1399 = vmax.xlane.f32.xlu0 %v1301
    %v1400 = vpop.xlane.xlu0 %1399
    %1401 = vmax.xlane.f32.xlu0 %v1304
    %v1402 = vpop.xlane.xlu0 %1401
    %v1403 = vsub.f32 %v1117, %v1308
    %v1404 = vsub.f32 %v1120, %v1310
    %v1405 = vsub.f32 %v1125, %v1312
    %v1406 = vsub.f32 %v1128, %v1314
    %v1407 = vsub.f32 %v1133, %v1316
    %v1408 = vsub.f32 %v1136, %v1318
    %v1409 = vsub.f32 %v1141, %v1320
    %v1410 = vsub.f32 %v1144, %v1322
    %v1411 = vsub.f32 %v1149, %v1324
    %v1412 = vsub.f32 %v1152, %v1326
    %v1413 = vsub.f32 %v1157, %v1328
    %v1414 = vsub.f32 %v1160, %v1330
    %v1415 = vsub.f32 %v1165, %v1332
    %v1416 = vsub.f32 %v1168, %v1334
    %v1417 = vsub.f32 %v1173, %v1336
    %v1418 = vsub.f32 %v1176, %v1338
    %v1419 = vsub.f32 %v1181, %v1340
    %v1420 = vsub.f32 %v1184, %v1342
    %v1421 = vsub.f32 %v1189, %v1344
    %v1422 = vsub.f32 %v1192, %v1346
    %v1423 = vsub.f32 %v1197, %v1348
    %v1424 = vsub.f32 %v1200, %v1350
    %v1425 = vsub.f32 %v1205, %v1352
    %v1426 = vsub.f32 %v1208, %v1354
    %v1427 = vsub.f32 %v1213, %v1356
    %v1428 = vsub.f32 %v1216, %v1358
    %v1429 = vsub.f32 %v1221, %v1360
    %v1430 = vsub.f32 %v1224, %v1362
    %v1431 = vsub.f32 %v1229, %v1364
    %v1432 = vsub.f32 %v1232, %v1366
    %v1433 = vsub.f32 %v1237, %v1368
    %v1434 = vsub.f32 %v1240, %v1370
    %v1435 = vsub.f32 %v1245, %v1372
    %v1436 = vsub.f32 %v1248, %v1374
    %v1437 = vsub.f32 %v1253, %v1376
    %v1438 = vsub.f32 %v1256, %v1378
    %v1439 = vsub.f32 %v1261, %v1380
    %v1440 = vsub.f32 %v1264, %v1382
    %v1441 = vsub.f32 %v1269, %v1384
    %v1442 = vsub.f32 %v1272, %v1386
    %v1443 = vsub.f32 %v1277, %v1388
    %v1444 = vsub.f32 %v1280, %v1390
    %v1445 = vsub.f32 %v1285, %v1392
    %v1446 = vsub.f32 %v1288, %v1394
    %v1447 = vsub.f32 %v1293, %v1396
    %v1448 = vsub.f32 %v1296, %v1398
    %v1449 = vsub.f32 %v1301, %v1400
    %v1450 = vsub.f32 %v1304, %v1402
    %v1451 = vmul.f32 %v1403, 1.442695
    %v1452 = vpow.pop %v1451
    %v1453 = vmul.f32 %v1404, 1.442695
    %v1454 = vpow.pop %v1453
    %v1455 = vmul.f32 %v1405, 1.442695
    %v1456 = vpow.pop %v1455
    %v1457 = vmul.f32 %v1406, 1.442695
    %v1458 = vpow.pop %v1457
    %v1459 = vmul.f32 %v1407, 1.442695
    %v1460 = vpow.pop %v1459
    %v1461 = vmul.f32 %v1408, 1.442695
    %v1462 = vpow.pop %v1461
    %v1463 = vmul.f32 %v1409, 1.442695
    %v1464 = vpow.pop %v1463
    %v1465 = vmul.f32 %v1410, 1.442695
    %v1466 = vpow.pop %v1465
    %v1467 = vmul.f32 %v1411, 1.442695
    %v1468 = vpow.pop %v1467
    %v1469 = vmul.f32 %v1412, 1.442695
    %v1470 = vpow.pop %v1469
    %v1471 = vmul.f32 %v1413, 1.442695
    %v1472 = vpow.pop %v1471
    %v1473 = vmul.f32 %v1414, 1.442695
    %v1474 = vpow.pop %v1473
    %v1475 = vmul.f32 %v1415, 1.442695
    %v1476 = vpow.pop %v1475
    %v1477 = vmul.f32 %v1416, 1.442695
    %v1478 = vpow.pop %v1477
    %v1479 = vmul.f32 %v1417, 1.442695
    %v1480 = vpow.pop %v1479
    %v1481 = vmul.f32 %v1418, 1.442695
    %v1482 = vpow.pop %v1481
    %v1483 = vmul.f32 %v1419, 1.442695
    %v1484 = vpow.pop %v1483
    %v1485 = vmul.f32 %v1420, 1.442695
    %v1486 = vpow.pop %v1485
    %v1487 = vmul.f32 %v1421, 1.442695
    %v1488 = vpow.pop %v1487
    %v1489 = vmul.f32 %v1422, 1.442695
    %v1490 = vpow.pop %v1489
    %v1491 = vmul.f32 %v1423, 1.442695
    %v1492 = vpow.pop %v1491
    %v1493 = vmul.f32 %v1424, 1.442695
    %v1494 = vpow.pop %v1493
    %v1495 = vmul.f32 %v1425, 1.442695
    %v1496 = vpow.pop %v1495
    %v1497 = vmul.f32 %v1426, 1.442695
    %v1498 = vpow.pop %v1497
    %v1499 = vmul.f32 %v1427, 1.442695
    %v1500 = vpow.pop %v1499
    %v1501 = vmul.f32 %v1428, 1.442695
    %v1502 = vpow.pop %v1501
    %v1503 = vmul.f32 %v1429, 1.442695
    %v1504 = vpow.pop %v1503
    %v1505 = vmul.f32 %v1430, 1.442695
    %v1506 = vpow.pop %v1505
    %v1507 = vmul.f32 %v1431, 1.442695
    %v1508 = vpow.pop %v1507
    %v1509 = vmul.f32 %v1432, 1.442695
    %v1510 = vpow.pop %v1509
    %v1511 = vmul.f32 %v1433, 1.442695
    %v1512 = vpow.pop %v1511
    %v1513 = vmul.f32 %v1434, 1.442695
    %v1514 = vpow.pop %v1513
    %v1515 = vmul.f32 %v1435, 1.442695
    %v1516 = vpow.pop %v1515
    %v1517 = vmul.f32 %v1436, 1.442695
    %v1518 = vpow.pop %v1517
    %v1519 = vmul.f32 %v1437, 1.442695
    %v1520 = vpow.pop %v1519
    %v1521 = vmul.f32 %v1438, 1.442695
    %v1522 = vpow.pop %v1521
    %v1523 = vmul.f32 %v1439, 1.442695
    %v1524 = vpow.pop %v1523
    %v1525 = vmul.f32 %v1440, 1.442695
    %v1526 = vpow.pop %v1525
    %v1527 = vmul.f32 %v1441, 1.442695
    %v1528 = vpow.pop %v1527
    %v1529 = vmul.f32 %v1442, 1.442695
    %v1530 = vpow.pop %v1529
    %v1531 = vmul.f32 %v1443, 1.442695
    %v1532 = vpow.pop %v1531
    %v1533 = vmul.f32 %v1444, 1.442695
    %v1534 = vpow.pop %v1533
    %v1535 = vmul.f32 %v1445, 1.442695
    %v1536 = vpow.pop %v1535
    %v1537 = vmul.f32 %v1446, 1.442695
    %v1538 = vpow.pop %v1537
    %v1539 = vmul.f32 %v1447, 1.442695
    %v1540 = vpow.pop %v1539
    %v1541 = vmul.f32 %v1448, 1.442695
    %v1542 = vpow.pop %v1541
    %v1543 = vmul.f32 %v1449, 1.442695
    %v1544 = vpow.pop %v1543
    %v1545 = vmul.f32 %v1450, 1.442695
    %v1546 = vpow.pop %v1545
    %1547 = vadd.xlane.f32.xlu0 %v1452
    %v1548 = vpop.xlane.xlu0 %1547
    %1549 = vadd.xlane.f32.xlu0 %v1454
    %v1550 = vpop.xlane.xlu0 %1549
    %1551 = vadd.xlane.f32.xlu0 %v1456
    %v1552 = vpop.xlane.xlu0 %1551
    %1553 = vadd.xlane.f32.xlu0 %v1458
    %v1554 = vpop.xlane.xlu0 %1553
    %1555 = vadd.xlane.f32.xlu0 %v1460
    %v1556 = vpop.xlane.xlu0 %1555
    %1557 = vadd.xlane.f32.xlu0 %v1462
    %v1558 = vpop.xlane.xlu0 %1557
    %1559 = vadd.xlane.f32.xlu0 %v1464
    %v1560 = vpop.xlane.xlu0 %1559
    %1561 = vadd.xlane.f32.xlu0 %v1466
    %v1562 = vpop.xlane.xlu0 %1561
    %1563 = vadd.xlane.f32.xlu0 %v1468
    %v1564 = vpop.xlane.xlu0 %1563
    %1565 = vadd.xlane.f32.xlu0 %v1470
    %v1566 = vpop.xlane.xlu0 %1565
    %1567 = vadd.xlane.f32.xlu0 %v1472
    %v1568 = vpop.xlane.xlu0 %1567
    %1569 = vadd.xlane.f32.xlu0 %v1474
    %v1570 = vpop.xlane.xlu0 %1569
    %1571 = vadd.xlane.f32.xlu0 %v1476
    %v1572 = vpop.xlane.xlu0 %1571
    %1573 = vadd.xlane.f32.xlu0 %v1478
    %v1574 = vpop.xlane.xlu0 %1573
    %1575 = vadd.xlane.f32.xlu0 %v1480
    %v1576 = vpop.xlane.xlu0 %1575
    %1577 = vadd.xlane.f32.xlu0 %v1482
    %v1578 = vpop.xlane.xlu0 %1577
    %1579 = vadd.xlane.f32.xlu0 %v1484
    %v1580 = vpop.xlane.xlu0 %1579
    %1581 = vadd.xlane.f32.xlu0 %v1486
    %v1582 = vpop.xlane.xlu0 %1581
    %1583 = vadd.xlane.f32.xlu0 %v1488
    %v1584 = vpop.xlane.xlu0 %1583
    %1585 = vadd.xlane.f32.xlu0 %v1490
    %v1586 = vpop.xlane.xlu0 %1585
    %1587 = vadd.xlane.f32.xlu0 %v1492
    %v1588 = vpop.xlane.xlu0 %1587
    %1589 = vadd.xlane.f32.xlu0 %v1494
    %v1590 = vpop.xlane.xlu0 %1589
    %1591 = vadd.xlane.f32.xlu0 %v1496
    %v1592 = vpop.xlane.xlu0 %1591
    %1593 = vadd.xlane.f32.xlu0 %v1498
    %v1594 = vpop.xlane.xlu0 %1593
    %1595 = vadd.xlane.f32.xlu0 %v1500
    %v1596 = vpop.xlane.xlu0 %1595
    %1597 = vadd.xlane.f32.xlu0 %v1502
    %v1598 = vpop.xlane.xlu0 %1597
    %1599 = vadd.xlane.f32.xlu0 %v1504
    %v1600 = vpop.xlane.xlu0 %1599
    %1601 = vadd.xlane.f32.xlu0 %v1506
    %v1602 = vpop.xlane.xlu0 %1601
    %1603 = vadd.xlane.f32.xlu0 %v1508
    %v1604 = vpop.xlane.xlu0 %1603
    %1605 = vadd.xlane.f32.xlu0 %v1510
    %v1606 = vpop.xlane.xlu0 %1605
    %1607 = vadd.xlane.f32.xlu0 %v1512
    %v1608 = vpop.xlane.xlu0 %1607
    %1609 = vadd.xlane.f32.xlu0 %v1514
    %v1610 = vpop.xlane.xlu0 %1609
    %1611 = vadd.xlane.f32.xlu0 %v1516
    %v1612 = vpop.xlane.xlu0 %1611
    %1613 = vadd.xlane.f32.xlu0 %v1518
    %v1614 = vpop.xlane.xlu0 %1613
    %1615 = vadd.xlane.f32.xlu0 %v1520
    %v1616 = vpop.xlane.xlu0 %1615
    %1617 = vadd.xlane.f32.xlu0 %v1522
    %v1618 = vpop.xlane.xlu0 %1617
    %1619 = vadd.xlane.f32.xlu0 %v1524
    %v1620 = vpop.xlane.xlu0 %1619
    %1621 = vadd.xlane.f32.xlu0 %v1526
    %v1622 = vpop.xlane.xlu0 %1621
    %1623 = vadd.xlane.f32.xlu0 %v1528
    %v1624 = vpop.xlane.xlu0 %1623
    %1625 = vadd.xlane.f32.xlu0 %v1530
    %v1626 = vpop.xlane.xlu0 %1625
    %1627 = vadd.xlane.f32.xlu0 %v1532
    %v1628 = vpop.xlane.xlu0 %1627
    %1629 = vadd.xlane.f32.xlu0 %v1534
    %v1630 = vpop.xlane.xlu0 %1629
    %1631 = vadd.xlane.f32.xlu0 %v1536
    %v1632 = vpop.xlane.xlu0 %1631
    %1633 = vadd.xlane.f32.xlu0 %v1538
    %v1634 = vpop.xlane.xlu0 %1633
    %1635 = vadd.xlane.f32.xlu0 %v1540
    %v1636 = vpop.xlane.xlu0 %1635
    %1637 = vadd.xlane.f32.xlu0 %v1542
    %v1638 = vpop.xlane.xlu0 %1637
    %1639 = vadd.xlane.f32.xlu0 %v1544
    %v1640 = vpop.xlane.xlu0 %1639
    %1641 = vadd.xlane.f32.xlu0 %v1546
    %v1642 = vpop.xlane.xlu0 %1641
    %v1643 = vrcp.pop %v1548
    %v1644 = vrcp.pop %v1550
    %v1645 = vrcp.pop %v1552
    %v1646 = vrcp.pop %v1554
    %v1647 = vrcp.pop %v1556
    %v1648 = vrcp.pop %v1558
    %v1649 = vrcp.pop %v1560
    %v1650 = vrcp.pop %v1562
    %v1651 = vrcp.pop %v1564
    %v1652 = vrcp.pop %v1566
    %v1653 = vrcp.pop %v1568
    %v1654 = vrcp.pop %v1570
    %v1655 = vrcp.pop %v1572
    %v1656 = vrcp.pop %v1574
    %v1657 = vrcp.pop %v1576
    %v1658 = vrcp.pop %v1578
    %v1659 = vrcp.pop %v1580
    %v1660 = vrcp.pop %v1582
    %v1661 = vrcp.pop %v1584
    %v1662 = vrcp.pop %v1586
    %v1663 = vrcp.pop %v1588
    %v1664 = vrcp.pop %v1590
    %v1665 = vrcp.pop %v1592
    %v1666 = vrcp.pop %v1594
    %v1667 = vrcp.pop %v1596
    %v1668 = vrcp.pop %v1598
    %v1669 = vrcp.pop %v1600
    %v1670 = vrcp.pop %v1602
    %v1671 = vrcp.pop %v1604
    %v1672 = vrcp.pop %v1606
    %v1673 = vrcp.pop %v1608
    %v1674 = vrcp.pop %v1610
    %v1675 = vrcp.pop %v1612
    %v1676 = vrcp.pop %v1614
    %v1677 = vrcp.pop %v1616
    %v1678 = vrcp.pop %v1618
    %v1679 = vrcp.pop %v1620
    %v1680 = vrcp.pop %v1622
    %v1681 = vrcp.pop %v1624
    %v1682 = vrcp.pop %v1626
    %v1683 = vrcp.pop %v1628
    %v1684 = vrcp.pop %v1630
    %v1685 = vrcp.pop %v1632
    %v1686 = vrcp.pop %v1634
    %v1687 = vrcp.pop %v1636
    %v1688 = vrcp.pop %v1638
    %v1689 = vrcp.pop %v1640
    %v1690 = vrcp.pop %v1642
    %v1691 = vmul.f32 %v1452, %v1643
    %v1692 = vmul.f32 %v1454, %v1644
    %v1693 = vmul.f32 %v1456, %v1645
    %v1694 = vmul.f32 %v1458, %v1646
    %v1695 = vmul.f32 %v1460, %v1647
    %v1696 = vmul.f32 %v1462, %v1648
    %v1697 = vmul.f32 %v1464, %v1649
    %v1698 = vmul.f32 %v1466, %v1650
    %v1699 = vmul.f32 %v1468, %v1651
    %v1700 = vmul.f32 %v1470, %v1652
    %v1701 = vmul.f32 %v1472, %v1653
    %v1702 = vmul.f32 %v1474, %v1654
    %v1703 = vmul.f32 %v1476, %v1655
    %v1704 = vmul.f32 %v1478, %v1656
    %v1705 = vmul.f32 %v1480, %v1657
    %v1706 = vmul.f32 %v1482, %v1658
    %v1707 = vmul.f32 %v1484, %v1659
    %v1708 = vmul.f32 %v1486, %v1660
    %v1709 = vmul.f32 %v1488, %v1661
    %v1710 = vmul.f32 %v1490, %v1662
    %v1711 = vmul.f32 %v1492, %v1663
    %v1712 = vmul.f32 %v1494, %v1664
    %v1713 = vmul.f32 %v1496, %v1665
    %v1714 = vmul.f32 %v1498, %v1666
    %v1715 = vmul.f32 %v1500, %v1667
    %v1716 = vmul.f32 %v1502, %v1668
    %v1717 = vmul.f32 %v1504, %v1669
    %v1718 = vmul.f32 %v1506, %v1670
    %v1719 = vmul.f32 %v1508, %v1671
    %v1720 = vmul.f32 %v1510, %v1672
    %v1721 = vmul.f32 %v1512, %v1673
    %v1722 = vmul.f32 %v1514, %v1674
    %v1723 = vmul.f32 %v1516, %v1675
    %v1724 = vmul.f32 %v1518, %v1676
    %v1725 = vmul.f32 %v1520, %v1677
    %v1726 = vmul.f32 %v1522, %v1678
    %v1727 = vmul.f32 %v1524, %v1679
    %v1728 = vmul.f32 %v1526, %v1680
    %v1729 = vmul.f32 %v1528, %v1681
    %v1730 = vmul.f32 %v1530, %v1682
    %v1731 = vmul.f32 %v1532, %v1683
    %v1732 = vmul.f32 %v1534, %v1684
    %v1733 = vmul.f32 %v1536, %v1685
    %v1734 = vmul.f32 %v1538, %v1686
    %v1735 = vmul.f32 %v1540, %v1687
    %v1736 = vmul.f32 %v1542, %v1688
    %v1737 = vmul.f32 %v1544, %v1689
    %v1738 = vmul.f32 %v1546, %v1690
    %1739 = vst [vmem:[#allocation10] sm:$0xff] %v1691
    %1740 = vst [vmem:[#allocation10 + $0x8] sm:$0xff] %v1692
    %1741 = vst [vmem:[#allocation10 + $0x10] sm:$0xff] %v1693
    %1742 = vst [vmem:[#allocation10 + $0x18] sm:$0xff] %v1694
    %1743 = vst [vmem:[#allocation10 + $0x20] sm:$0xff] %v1695
    %1744 = vst [vmem:[#allocation10 + $0x28] sm:$0xff] %v1696
    %1745 = vst [vmem:[#allocation10 + $0x30] sm:$0xff] %v1697
    %1746 = vst [vmem:[#allocation10 + $0x38] sm:$0xff] %v1698
    %1747 = vst [vmem:[#allocation10 + $0x40] sm:$0xff] %v1699
    %1748 = vst [vmem:[#allocation10 + $0x48] sm:$0xff] %v1700
    %1749 = vst [vmem:[#allocation10 + $0x50] sm:$0xff] %v1701
    %1750 = vst [vmem:[#allocation10 + $0x58] sm:$0xff] %v1702
    %1751 = vst [vmem:[#allocation10 + $0x60] sm:$0xff] %v1703
    %1752 = vst [vmem:[#allocation10 + $0x68] sm:$0xff] %v1704
    %1753 = vst [vmem:[#allocation10 + $0x70] sm:$0xff] %v1705
    %1754 = vst [vmem:[#allocation10 + $0x78] sm:$0xff] %v1706
    %1755 = vst [vmem:[#allocation10 + $0x80] sm:$0xff] %v1707
    %1756 = vst [vmem:[#allocation10 + $0x88] sm:$0xff] %v1708
    %1757 = vst [vmem:[#allocation10 + $0x90] sm:$0xff] %v1709
    %1758 = vst [vmem:[#allocation10 + $0x98] sm:$0xff] %v1710
    %1759 = vst [vmem:[#allocation10 + $0xa0] sm:$0xff] %v1711
    %1760 = vst [vmem:[#allocation10 + $0xa8] sm:$0xff] %v1712
    %1761 = vst [vmem:[#allocation10 + $0xb0] sm:$0xff] %v1713
    %1762 = vst [vmem:[#allocation10 + $0xb8] sm:$0xff] %v1714
    %1763 = vst [vmem:[#allocation10 + $0xc0] sm:$0xff] %v1715
    %1764 = vst [vmem:[#allocation10 + $0xc8] sm:$0xff] %v1716
    %1765 = vst [vmem:[#allocation10 + $0xd0] sm:$0xff] %v1717
    %1766 = vst [vmem:[#allocation10 + $0xd8] sm:$0xff] %v1718
    %1767 = vst [vmem:[#allocation10 + $0xe0] sm:$0xff] %v1719
    %1768 = vst [vmem:[#allocation10 + $0xe8] sm:$0xff] %v1720
    %1769 = vst [vmem:[#allocation10 + $0xf0] sm:$0xff] %v1721
    %1770 = vst [vmem:[#allocation10 + $0xf8] sm:$0xff] %v1722
    %1771 = vst [vmem:[#allocation10 + $0x100] sm:$0xff] %v1723
    %1772 = vst [vmem:[#allocation10 + $0x108] sm:$0xff] %v1724
    %1773 = vst [vmem:[#allocation10 + $0x110] sm:$0xff] %v1725
    %1774 = vst [vmem:[#allocation10 + $0x118] sm:$0xff] %v1726
    %1775 = vst [vmem:[#allocation10 + $0x120] sm:$0xff] %v1727
    %1776 = vst [vmem:[#allocation10 + $0x128] sm:$0xff] %v1728
    %1777 = vst [vmem:[#allocation10 + $0x130] sm:$0xff] %v1729
    %1778 = vst [vmem:[#allocation10 + $0x138] sm:$0xff] %v1730
    %1779 = vst [vmem:[#allocation10 + $0x140] sm:$0xff] %v1731
    %1780 = vst [vmem:[#allocation10 + $0x148] sm:$0xff] %v1732
    %1781 = vst [vmem:[#allocation10 + $0x150] sm:$0xff] %v1733
    %1782 = vst [vmem:[#allocation10 + $0x158] sm:$0xff] %v1734
    %1783 = vst [vmem:[#allocation10 + $0x160] sm:$0xff] %v1735
    %1784 = vst [vmem:[#allocation10 + $0x168] sm:$0xff] %v1736
    %1785 = vst [vmem:[#allocation10 + $0x170] sm:$0xff] %v1737
    %1786 = vst [vmem:[#allocation10 + $0x178] sm:$0xff] %v1738
    // Predicated region
    $region46: #{tpu_custom_call.1} parent=1 // pred_check
      _
    $region47: #{tpu_custom_call.1} parent=1 // pred_check_branch
      %1788 = sbr.rel (0) target = $region49
    $region48: #{tpu_custom_call.1} parent=1 // pred_region
      %s1790 = ssub.s32 6144, 6144
      %1791 = vsyncadd [#allocation4], %s1790
      %s1792 = sshll.u32 [#allocation10], 4
      %s1793 = int_to_ptr.vmem [resolvable:$true] %s1792
      %1798 = dma.vmem_to_hbm [thread:$0]  %s1793, 6144, %s7, [#allocation4], 128, 128, 8
    $region49: #{tpu_custom_call.1} parent=1 // pred_fallthru
      _
    // Predicated region
    $region50: #{tpu_custom_call.1} parent=1 // pred_check
      _
    $region51: #{tpu_custom_call.1} parent=1 // pred_check_branch
      %1800 = sbr.rel (0) target = $region53
    $region52: #{tpu_custom_call.1} parent=1 // pred_region
      %1801 = dma.done [#allocation4], 6144
    $region53: #{tpu_custom_call.1} parent=1 // pred_fallthru
      _
    %1802 = vsyncpa [#allocation3], 1
    %1803 = vsyncpa [#allocation6], 1
    %1804 = vsyncpa [#allocation9], 1
    %1805 = vsyncpa [#allocation4], 1

// kernel: tpu_custom_call.1
$region0: #{tpu_custom_call.1}
  #allocation0 [shape = 'u32[]', space=smem, size = 0x4, offset = 0x4, fixed_abs, tag = 'smem constant byte address 0x4 - core index']
  #allocation1 [shape = 'u32[144,128]{1,0:T(1,128)}', space=vmem, size = 0x12000, scoped, tag = 'internal scratch']
  %s0 = inlined_call_operand.hbm [shape: bf16[384,128], index: 0, kind: input, shape index: {}]
  %s1 = inlined_call_operand.hbm [shape: bf16[128,128], index: 1, kind: input, shape index: {}]
  %s2 = inlined_call_operand.vmem [shape: f32[1,128], index: 2, kind: input, shape index: {}]
  %s3 = inlined_call_operand.hbm [shape: bf16[128,128], index: 3, kind: input, shape index: {}]
  %s4 = inlined_call_operand.vmem [shape: f32[1,128], index: 4, kind: input, shape index: {}]
  %s5 = inlined_call_operand.hbm [shape: bf16[128,128], index: 5, kind: input, shape index: {}]
  %s6 = inlined_call_operand.vmem [shape: f32[1,128], index: 6, kind: input, shape index: {}]
  %s7 = inlined_call_operand.hbm [shape: f32[384,128], index: 7, kind: output, shape index: {}]
  %s8 = sld [smem:[#allocation0]]
  $region54: #{tpu_custom_call.1} parent=0
    _
  %s10 = ssub.s32 1, %s8
  %s11 = scalar_select 0, %s10, %s8
  $region1: #{tpu_custom_call.1} parent=0
    #allocation2 [shape = 'u8[98304]{0}', space=vmem, size = 0x18000, scoped, tag = 'input window, operand 0, single buffered']
    #allocation3 [shape = 's32[1]{0}', space=sflag, size = 0x4, scoped, tag = 'scoped memory for tpu_custom_call.1']
    #allocation4 [shape = 's32[1]{0}', space=sflag, size = 0x4, scoped, tag = 'scoped memory for tpu_custom_call.1']
    #allocation5 [shape = 'u8[32768]{0}', space=vmem, size = 0x8000, scoped, tag = 'input window, operand 1, single buffered']
    #allocation6 [shape = 's32[1]{0}', space=sflag, size = 0x4, scoped, tag = 'scoped memory for tpu_custom_call.1']
    #allocation7 [shape = 'u8[32768]{0}', space=vmem, size = 0x8000, scoped, tag = 'input window, operand 3, single buffered']
    #allocation8 [shape = 'u8[32768]{0}', space=vmem, size = 0x8000, scoped, tag = 'input window, operand 5, single buffered']
    #allocation9 [shape = 's32[1]{0}', space=sflag, size = 0x4, scoped, tag = 'scoped memory for tpu_custom_call.1']
    #allocation10 [shape = 'u8[196608]{0}', space=vmem, size = 0x30000, scoped, tag = 'output window, operand 0, single buffered']
    %12 = vsyncpa [#allocation3], 0
    %13 = vsyncpa [#allocation6], 0
    %14 = vsyncpa [#allocation9], 0
    %15 = vsyncpa [#allocation4], 0
    // Predicated region
    $region2: #{tpu_custom_call.1} parent=1 // pred_check
      _
    $region3: #{tpu_custom_call.1} parent=1 // pred_check_branch
      %17 = sbr.rel (0) target = $region5
    $region4: #{tpu_custom_call.1} parent=1 // pred_region
      %s19 = ssub.s32 3072, 3072
      %20 = vsyncadd [#allocation3], %s19
      %s21 = sshll.u32 [#allocation2], 4
      %s22 = int_to_ptr.vmem [resolvable:$true] %s21
      %27 = dma.hbm_to_vmem [thread:$0]  %s0, 3072, %s22, [#allocation3], 64, 64, 4
    $region5: #{tpu_custom_call.1} parent=1 // pred_fallthru
      _
    // Predicated region
    $region6: #{tpu_custom_call.1} parent=1 // pred_check
      _
    $region7: #{tpu_custom_call.1} parent=1 // pred_check_branch
      %29 = sbr.rel (0) target = $region9
    $region8: #{tpu_custom_call.1} parent=1 // pred_region
      %s31 = ssub.s32 1024, 1024
      %32 = vsyncadd [#allocation6], %s31
      %s33 = sshll.u32 [#allocation5], 4
      %s34 = int_to_ptr.vmem [resolvable:$true] %s33
      %39 = dma.hbm_to_vmem [thread:$0]  %s1, 1024, %s34, [#allocation6], 64, 64, 4
    $region9: #{tpu_custom_call.1} parent=1 // pred_fallthru
      _
    // Predicated region
    $region10: #{tpu_custom_call.1} parent=1 // pred_check
      _
    $region11: #{tpu_custom_call.1} parent=1 // pred_check_branch
      %41 = sbr.rel (0) target = $region13
    $region12: #{tpu_custom_call.1} parent=1 // pred_region
      _
    $region13: #{tpu_custom_call.1} parent=1 // pred_fallthru
      _
    // Predicated region
    $region14: #{tpu_custom_call.1} parent=1 // pred_check
      _
    $region15: #{tpu_custom_call.1} parent=1 // pred_check_branch
      %43 = sbr.rel (0) target = $region17
    $region16: #{tpu_custom_call.1} parent=1 // pred_region
      %s45 = ssub.s32 1024, 1024
      %46 = vsyncadd [#allocation6], %s45
      %s47 = sshll.u32 [#allocation7], 4
      %s48 = int_to_ptr.vmem [resolvable:$true] %s47
      %53 = dma.hbm_to_vmem [thread:$0]  %s3, 1024, %s48, [#allocation6], 64, 64, 4
    $region17: #{tpu_custom_call.1} parent=1 // pred_fallthru
      _
    // Predicated region
    $region18: #{tpu_custom_call.1} parent=1 // pred_check
      _
    $region19: #{tpu_custom_call.1} parent=1 // pred_check_branch
      %55 = sbr.rel (0) target = $region21
    $region20: #{tpu_custom_call.1} parent=1 // pred_region
      _
    $region21: #{tpu_custom_call.1} parent=1 // pred_fallthru
      _
    // Predicated region
    $region22: #{tpu_custom_call.1} parent=1 // pred_check
      _
    $region23: #{tpu_custom_call.1} parent=1 // pred_check_branch
      %57 = sbr.rel (0) target = $region25
    $region24: #{tpu_custom_call.1} parent=1 // pred_region
      %s59 = ssub.s32 1024, 1024
      %60 = vsyncadd [#allocation9], %s59
      %s61 = sshll.u32 [#allocation8], 4
      %s62 = int_to_ptr.vmem [resolvable:$true] %s61
      %67 = dma.hbm_to_vmem [thread:$0]  %s5, 1024, %s62, [#allocation9], 64, 64, 4
    $region25: #{tpu_custom_call.1} parent=1 // pred_fallthru
      _
    // Predicated region
    $region26: #{tpu_custom_call.1} parent=1 // pred_check
      _
    $region27: #{tpu_custom_call.1} parent=1 // pred_check_branch
      %69 = sbr.rel (0) target = $region29
    $region28: #{tpu_custom_call.1} parent=1 // pred_region
      _
    $region29: #{tpu_custom_call.1} parent=1 // pred_fallthru
      _
    // Predicated region
    $region30: #{tpu_custom_call.1} parent=1 // pred_check
      _
    $region31: #{tpu_custom_call.1} parent=1 // pred_check_branch
      %71 = sbr.rel (0) target = $region33
    $region32: #{tpu_custom_call.1} parent=1 // pred_region
      %72 = dma.done [#allocation3], 3072
    $region33: #{tpu_custom_call.1} parent=1 // pred_fallthru
      _
    // Predicated region
    $region34: #{tpu_custom_call.1} parent=1 // pred_check
      _
    $region35: #{tpu_custom_call.1} parent=1 // pred_check_branch
      %74 = sbr.rel (0) target = $region37
    $region36: #{tpu_custom_call.1} parent=1 // pred_region
      %75 = dma.done [#allocation6], 1024
    $region37: #{tpu_custom_call.1} parent=1 // pred_fallthru
      _
    // Predicated region
    $region38: #{tpu_custom_call.1} parent=1 // pred_check
      _
    $region39: #{tpu_custom_call.1} parent=1 // pred_check_branch
      %77 = sbr.rel (0) target = $region41
    $region40: #{tpu_custom_call.1} parent=1 // pred_region
      %78 = dma.done [#allocation6], 1024
    $region41: #{tpu_custom_call.1} parent=1 // pred_fallthru
      _
    // Predicated region
    $region42: #{tpu_custom_call.1} parent=1 // pred_check
      _
    $region43: #{tpu_custom_call.1} parent=1 // pred_check_branch
      %80 = sbr.rel (0) target = $region45
    $region44: #{tpu_custom_call.1} parent=1 // pred_region
      %81 = dma.done [#allocation9], 1024
    $region45: #{tpu_custom_call.1} parent=1 // pred_fallthru
      _
    %v83 = vld [vmem:[#allocation2] sm:$0xf]
    %v84 = vld [vmem:[#allocation2 + $0x4] sm:$0xf]
    %v85 = vld [vmem:[#allocation2 + $0x8] sm:$0xf]
    %v86 = vld [vmem:[#allocation2 + $0xc] sm:$0xf]
    %v87 = vld [vmem:[#allocation2 + $0x10] sm:$0xf]
    %v88 = vld [vmem:[#allocation2 + $0x14] sm:$0xf]
    %v89 = vld [vmem:[#allocation2 + $0x18] sm:$0xf]
    %v90 = vld [vmem:[#allocation2 + $0x1c] sm:$0xf]
    %v91 = vld [vmem:[#allocation2 + $0x20] sm:$0xf]
    %v92 = vld [vmem:[#allocation2 + $0x24] sm:$0xf]
    %v93 = vld [vmem:[#allocation2 + $0x28] sm:$0xf]
    %v94 = vld [vmem:[#allocation2 + $0x2c] sm:$0xf]
    %v95 = vld [vmem:[#allocation2 + $0x30] sm:$0xf]
    %v96 = vld [vmem:[#allocation2 + $0x34] sm:$0xf]
    %v97 = vld [vmem:[#allocation2 + $0x38] sm:$0xf]
    %v98 = vld [vmem:[#allocation2 + $0x3c] sm:$0xf]
    %v99 = vld [vmem:[#allocation2 + $0x40] sm:$0xf]
    %v100 = vld [vmem:[#allocation2 + $0x44] sm:$0xf]
    %v101 = vld [vmem:[#allocation2 + $0x48] sm:$0xf]
    %v102 = vld [vmem:[#allocation2 + $0x4c] sm:$0xf]
    %v103 = vld [vmem:[#allocation2 + $0x50] sm:$0xf]
    %v104 = vld [vmem:[#allocation2 + $0x54] sm:$0xf]
    %v105 = vld [vmem:[#allocation2 + $0x58] sm:$0xf]
    %v106 = vld [vmem:[#allocation2 + $0x5c] sm:$0xf]
    %v107 = vld [vmem:[#allocation2 + $0x60] sm:$0xf]
    %v108 = vld [vmem:[#allocation2 + $0x64] sm:$0xf]
    %v109 = vld [vmem:[#allocation2 + $0x68] sm:$0xf]
    %v110 = vld [vmem:[#allocation2 + $0x6c] sm:$0xf]
    %v111 = vld [vmem:[#allocation2 + $0x70] sm:$0xf]
    %v112 = vld [vmem:[#allocation2 + $0x74] sm:$0xf]
    %v113 = vld [vmem:[#allocation2 + $0x78] sm:$0xf]
    %v114 = vld [vmem:[#allocation2 + $0x7c] sm:$0xf]
    %v115 = vld [vmem:[#allocation2 + $0x80] sm:$0xf]
    %v116 = vld [vmem:[#allocation2 + $0x84] sm:$0xf]
    %v117 = vld [vmem:[#allocation2 + $0x88] sm:$0xf]
    %v118 = vld [vmem:[#allocation2 + $0x8c] sm:$0xf]
    %v119 = vld [vmem:[#allocation2 + $0x90] sm:$0xf]
    %v120 = vld [vmem:[#allocation2 + $0x94] sm:$0xf]
    %v121 = vld [vmem:[#allocation2 + $0x98] sm:$0xf]
    %v122 = vld [vmem:[#allocation2 + $0x9c] sm:$0xf]
    %v123 = vld [vmem:[#allocation2 + $0xa0] sm:$0xf]
    %v124 = vld [vmem:[#allocation2 + $0xa4] sm:$0xf]
    %v125 = vld [vmem:[#allocation2 + $0xa8] sm:$0xf]
    %v126 = vld [vmem:[#allocation2 + $0xac] sm:$0xf]
    %v127 = vld [vmem:[#allocation2 + $0xb0] sm:$0xf]
    %v128 = vld [vmem:[#allocation2 + $0xb4] sm:$0xf]
    %v129 = vld [vmem:[#allocation2 + $0xb8] sm:$0xf]
    %v130 = vld [vmem:[#allocation2 + $0xbc] sm:$0xf]
    %v131 = vld [vmem:[#allocation5] sm:$0xf]
    %v132 = vld [vmem:[#allocation5 + $0x4] sm:$0xf]
    %v133 = vld [vmem:[#allocation5 + $0x8] sm:$0xf]
    %v134 = vld [vmem:[#allocation5 + $0xc] sm:$0xf]
    %v135 = vld [vmem:[#allocation5 + $0x10] sm:$0xf]
    %v136 = vld [vmem:[#allocation5 + $0x14] sm:$0xf]
    %v137 = vld [vmem:[#allocation5 + $0x18] sm:$0xf]
    %v138 = vld [vmem:[#allocation5 + $0x1c] sm:$0xf]
    %v139 = vld [vmem:[#allocation5 + $0x20] sm:$0xf]
    %v140 = vld [vmem:[#allocation5 + $0x24] sm:$0xf]
    %v141 = vld [vmem:[#allocation5 + $0x28] sm:$0xf]
    %v142 = vld [vmem:[#allocation5 + $0x2c] sm:$0xf]
    %v143 = vld [vmem:[#allocation5 + $0x30] sm:$0xf]
    %v144 = vld [vmem:[#allocation5 + $0x34] sm:$0xf]
    %v145 = vld [vmem:[#allocation5 + $0x38] sm:$0xf]
    %v146 = vld [vmem:[#allocation5 + $0x3c] sm:$0xf]
    %v147 = vld [vmem:[%s2] sm:$0x1]
    %v149 = vlaneseq
    %v150 = vshrl.u32 %v149, 7
    %v151 = vsub.s32 0, %v150
    %v152 = vrot.slane %v147, %v151
    %v202 = vunpack.c.l.b16 %v83
    %v203 = vunpack.c.l.b16 %v84
    %v204 = vunpack.c.l.b16 %v85
    %v205 = vunpack.c.l.b16 %v86
    %v206 = vunpack.c.l.b16 %v87
    %v207 = vunpack.c.l.b16 %v88
    %v208 = vunpack.c.l.b16 %v89
    %v209 = vunpack.c.l.b16 %v90
    %v210 = vunpack.c.l.b16 %v91
    %v211 = vunpack.c.l.b16 %v92
    %v212 = vunpack.c.l.b16 %v93
    %v213 = vunpack.c.l.b16 %v94
    %v214 = vunpack.c.l.b16 %v95
    %v215 = vunpack.c.l.b16 %v96
    %v216 = vunpack.c.l.b16 %v97
    %v217 = vunpack.c.l.b16 %v98
    %v218 = vunpack.c.l.b16 %v99
    %v219 = vunpack.c.l.b16 %v100
    %v220 = vunpack.c.l.b16 %v101
    %v221 = vunpack.c.l.b16 %v102
    %v222 = vunpack.c.l.b16 %v103
    %v223 = vunpack.c.l.b16 %v104
    %v224 = vunpack.c.l.b16 %v105
    %v225 = vunpack.c.l.b16 %v106
    %v226 = vunpack.c.l.b16 %v107
    %v227 = vunpack.c.l.b16 %v108
    %v228 = vunpack.c.l.b16 %v109
    %v229 = vunpack.c.l.b16 %v110
    %v230 = vunpack.c.l.b16 %v111
    %v231 = vunpack.c.l.b16 %v112
    %v232 = vunpack.c.l.b16 %v113
    %v233 = vunpack.c.l.b16 %v114
    %v234 = vunpack.c.l.b16 %v115
    %v235 = vunpack.c.l.b16 %v116
    %v236 = vunpack.c.l.b16 %v117
    %v237 = vunpack.c.l.b16 %v118
    %v238 = vunpack.c.l.b16 %v119
    %v239 = vunpack.c.l.b16 %v120
    %v240 = vunpack.c.l.b16 %v121
    %v241 = vunpack.c.l.b16 %v122
    %v242 = vunpack.c.l.b16 %v123
    %v243 = vunpack.c.l.b16 %v124
    %v244 = vunpack.c.l.b16 %v125
    %v245 = vunpack.c.l.b16 %v126
    %v246 = vunpack.c.l.b16 %v127
    %v247 = vunpack.c.l.b16 %v128
    %v248 = vunpack.c.l.b16 %v129
    %v249 = vunpack.c.l.b16 %v130
    %v250 = vpack.c.b16 %v203, %v202
    %v251 = vpack.c.b16 %v205, %v204
    %v252 = vpack.c.b16 %v207, %v206
    %v253 = vpack.c.b16 %v209, %v208
    %v254 = vpack.c.b16 %v211, %v210
    %v255 = vpack.c.b16 %v213, %v212
    %v256 = vpack.c.b16 %v215, %v214
    %v257 = vpack.c.b16 %v217, %v216
    %v258 = vpack.c.b16 %v219, %v218
    %v259 = vpack.c.b16 %v221, %v220
    %v260 = vpack.c.b16 %v223, %v222
    %v261 = vpack.c.b16 %v225, %v224
    %v262 = vpack.c.b16 %v227, %v226
    %v263 = vpack.c.b16 %v229, %v228
    %v264 = vpack.c.b16 %v231, %v230
    %v265 = vpack.c.b16 %v233, %v232
    %v266 = vpack.c.b16 %v235, %v234
    %v267 = vpack.c.b16 %v237, %v236
    %v268 = vpack.c.b16 %v239, %v238
    %v269 = vpack.c.b16 %v241, %v240
    %v270 = vpack.c.b16 %v243, %v242
    %v271 = vpack.c.b16 %v245, %v244
    %v272 = vpack.c.b16 %v247, %v246
    %v273 = vpack.c.b16 %v249, %v248
    %v314 = vunpack.c.l.b16 %v131
    %v315 = vunpack.c.l.b16 %v132
    %v316 = vunpack.c.l.b16 %v133
    %v317 = vunpack.c.l.b16 %v134
    %v318 = vunpack.c.l.b16 %v135
    %v319 = vunpack.c.l.b16 %v136
    %v320 = vunpack.c.l.b16 %v137
    %v321 = vunpack.c.l.b16 %v138
    %v322 = vunpack.c.l.b16 %v139
    %v323 = vunpack.c.l.b16 %v140
    %v324 = vunpack.c.l.b16 %v141
    %v325 = vunpack.c.l.b16 %v142
    %v326 = vunpack.c.l.b16 %v143
    %v327 = vunpack.c.l.b16 %v144
    %v328 = vunpack.c.l.b16 %v145
    %v329 = vunpack.c.l.b16 %v146
    %v330 = vpack.c.b16 %v315, %v314
    %v331 = vpack.c.b16 %v317, %v316
    %v332 = vpack.c.b16 %v319, %v318
    %v333 = vpack.c.b16 %v321, %v320
    %v334 = vpack.c.b16 %v323, %v322
    %v335 = vpack.c.b16 %v325, %v324
    %v336 = vpack.c.b16 %v327, %v326
    %v337 = vpack.c.b16 %v329, %v328
    %346 = vmatprep.subr.bf16.mxu0 0
    %347 = vmatpush1.bf16.msra.mxu0 %v337
    %348 = vmatprep.subr.bf16.mxu0 0
    %349 = vmatpush1.bf16.msra.mxu0 %v336
    %350 = vmatprep.subr.bf16.mxu0 0
    %351 = vmatpush1.bf16.msra.mxu0 %v335
    %352 = vmatprep.subr.bf16.mxu0 0
    %353 = vmatpush1.bf16.msra.mxu0 %v334
    %354 = vmatprep.subr.bf16.mxu0 0
    %355 = vmatpush1.bf16.msra.mxu0 %v333
    %356 = vmatprep.subr.bf16.mxu0 0
    %357 = vmatpush1.bf16.msra.mxu0 %v332
    %358 = vmatprep.subr.bf16.mxu0 0
    %359 = vmatpush1.bf16.msra.mxu0 %v331
    %360 = vmatprep.subr.bf16.mxu0 0
    %361 = vmatpush1.bf16.msra.mxu0 %v330
    %362 = vmatprep.subr.bf16.mxu0 0
    %363 = vmatpush2.bf16.msra.mxu0 0
    %364 = vmatprep.subr.bf16.mxu0 0
    %365 = vmatpush2.bf16.msra.mxu0 0
    %366 = vmatprep.subr.bf16.mxu0 0
    %367 = vmatpush2.bf16.msra.mxu0 0
    %368 = vmatprep.subr.bf16.mxu0 0
    %369 = vmatpush2.bf16.msra.mxu0 0
    %370 = vmatprep.subr.bf16.mxu0 0
    %371 = vmatpush2.bf16.msra.mxu0 0
    %372 = vmatprep.subr.bf16.mxu0 0
    %373 = vmatpush2.bf16.msra.mxu0 0
    %374 = vmatprep.subr.bf16.mxu0 0
    %375 = vmatpush2.bf16.msra.mxu0 0
    %376 = vmatprep.subr.bf16.mxu0 0
    %377 = vmatpush2.bf16.msra.mxu0 0
    %378 = vmatprep.mubr.bf16.mxu0 0
    %379 = vmatmul.mubr.bf16.gmra.mxu0 %v250
    %v380 = vpop.f32.mrf.mxu0
    %v381 = vadd.f32 %v152, %v380
    %v382 = vpop.f32.mrf.mxu0
    %v383 = vpop.f32.mrf.mxu0
    %v384 = vadd.f32 %v152, %v383
    %v385 = vpop.f32.mrf.mxu0
    %386 = vmatprep.mubr.bf16.mxu0 0
    %387 = vmatmul.mubr.bf16.gmra.mxu0 %v251
    %v388 = vpop.f32.mrf.mxu0
    %v389 = vadd.f32 %v152, %v388
    %v390 = vpop.f32.mrf.mxu0
    %v391 = vpop.f32.mrf.mxu0
    %v392 = vadd.f32 %v152, %v391
    %v393 = vpop.f32.mrf.mxu0
    %394 = vmatprep.mubr.bf16.mxu0 0
    %395 = vmatmul.mubr.bf16.gmra.mxu0 %v252
    %v396 = vpop.f32.mrf.mxu0
    %v397 = vadd.f32 %v152, %v396
    %v398 = vpop.f32.mrf.mxu0
    %v399 = vpop.f32.mrf.mxu0
    %v400 = vadd.f32 %v152, %v399
    %v401 = vpop.f32.mrf.mxu0
    %402 = vmatprep.mubr.bf16.mxu0 0
    %403 = vmatmul.mubr.bf16.gmra.mxu0 %v253
    %v404 = vpop.f32.mrf.mxu0
    %v405 = vadd.f32 %v152, %v404
    %v406 = vpop.f32.mrf.mxu0
    %v407 = vpop.f32.mrf.mxu0
    %v408 = vadd.f32 %v152, %v407
    %v409 = vpop.f32.mrf.mxu0
    %410 = vmatprep.mubr.bf16.mxu0 0
    %411 = vmatmul.mubr.bf16.gmra.mxu0 %v254
    %v412 = vpop.f32.mrf.mxu0
    %v413 = vadd.f32 %v152, %v412
    %v414 = vpop.f32.mrf.mxu0
    %v415 = vpop.f32.mrf.mxu0
    %v416 = vadd.f32 %v152, %v415
    %v417 = vpop.f32.mrf.mxu0
    %418 = vmatprep.mubr.bf16.mxu0 0
    %419 = vmatmul.mubr.bf16.gmra.mxu0 %v255
    %v420 = vpop.f32.mrf.mxu0
    %v421 = vadd.f32 %v152, %v420
    %v422 = vpop.f32.mrf.mxu0
    %v423 = vpop.f32.mrf.mxu0
    %v424 = vadd.f32 %v152, %v423
    %v425 = vpop.f32.mrf.mxu0
    %426 = vmatprep.mubr.bf16.mxu0 0
    %427 = vmatmul.mubr.bf16.gmra.mxu0 %v256
    %v428 = vpop.f32.mrf.mxu0
    %v429 = vadd.f32 %v152, %v428
    %v430 = vpop.f32.mrf.mxu0
    %v431 = vpop.f32.mrf.mxu0
    %v432 = vadd.f32 %v152, %v431
    %v433 = vpop.f32.mrf.mxu0
    %434 = vmatprep.mubr.bf16.mxu0 0
    %435 = vmatmul.mubr.bf16.gmra.mxu0 %v257
    %v436 = vpop.f32.mrf.mxu0
    %v437 = vadd.f32 %v152, %v436
    %v438 = vpop.f32.mrf.mxu0
    %v439 = vpop.f32.mrf.mxu0
    %v440 = vadd.f32 %v152, %v439
    %v441 = vpop.f32.mrf.mxu0
    %442 = vmatprep.mubr.bf16.mxu0 0
    %443 = vmatmul.mubr.bf16.gmra.mxu0 %v258
    %v444 = vpop.f32.mrf.mxu0
    %v445 = vadd.f32 %v152, %v444
    %v446 = vpop.f32.mrf.mxu0
    %v447 = vpop.f32.mrf.mxu0
    %v448 = vadd.f32 %v152, %v447
    %v449 = vpop.f32.mrf.mxu0
    %450 = vmatprep.mubr.bf16.mxu0 0
    %451 = vmatmul.mubr.bf16.gmra.mxu0 %v259
    %v452 = vpop.f32.mrf.mxu0
    %v453 = vadd.f32 %v152, %v452
    %v454 = vpop.f32.mrf.mxu0
    %v455 = vpop.f32.mrf.mxu0
    %v456 = vadd.f32 %v152, %v455
    %v457 = vpop.f32.mrf.mxu0
    %458 = vmatprep.mubr.bf16.mxu0 0
    %459 = vmatmul.mubr.bf16.gmra.mxu0 %v260
    %v460 = vpop.f32.mrf.mxu0
    %v461 = vadd.f32 %v152, %v460
    %v462 = vpop.f32.mrf.mxu0
    %v463 = vpop.f32.mrf.mxu0
    %v464 = vadd.f32 %v152, %v463
    %v465 = vpop.f32.mrf.mxu0
    %466 = vmatprep.mubr.bf16.mxu0 0
    %467 = vmatmul.mubr.bf16.gmra.mxu0 %v261
    %v468 = vpop.f32.mrf.mxu0
    %v469 = vadd.f32 %v152, %v468
    %v470 = vpop.f32.mrf.mxu0
    %v471 = vpop.f32.mrf.mxu0
    %v472 = vadd.f32 %v152, %v471
    %v473 = vpop.f32.mrf.mxu0
    %474 = vmatprep.mubr.bf16.mxu0 0
    %475 = vmatmul.mubr.bf16.gmra.mxu0 %v262
    %v476 = vpop.f32.mrf.mxu0
    %v477 = vadd.f32 %v152, %v476
    %v478 = vpop.f32.mrf.mxu0
    %v479 = vpop.f32.mrf.mxu0
    %v480 = vadd.f32 %v152, %v479
    %v481 = vpop.f32.mrf.mxu0
    %482 = vmatprep.mubr.bf16.mxu0 0
    %483 = vmatmul.mubr.bf16.gmra.mxu0 %v263
    %v484 = vpop.f32.mrf.mxu0
    %v485 = vadd.f32 %v152, %v484
    %v486 = vpop.f32.mrf.mxu0
    %v487 = vpop.f32.mrf.mxu0
    %v488 = vadd.f32 %v152, %v487
    %v489 = vpop.f32.mrf.mxu0
    %490 = vmatprep.mubr.bf16.mxu0 0
    %491 = vmatmul.mubr.bf16.gmra.mxu0 %v264
    %v492 = vpop.f32.mrf.mxu0
    %v493 = vadd.f32 %v152, %v492
    %v494 = vpop.f32.mrf.mxu0
    %v495 = vpop.f32.mrf.mxu0
    %v496 = vadd.f32 %v152, %v495
    %v497 = vpop.f32.mrf.mxu0
    %498 = vmatprep.mubr.bf16.mxu0 0
    %499 = vmatmul.mubr.bf16.gmra.mxu0 %v265
    %v500 = vpop.f32.mrf.mxu0
    %v501 = vadd.f32 %v152, %v500
    %v502 = vpop.f32.mrf.mxu0
    %v503 = vpop.f32.mrf.mxu0
    %v504 = vadd.f32 %v152, %v503
    %v505 = vpop.f32.mrf.mxu0
    %506 = vmatprep.mubr.bf16.mxu0 0
    %507 = vmatmul.mubr.bf16.gmra.mxu0 %v266
    %v508 = vpop.f32.mrf.mxu0
    %v509 = vadd.f32 %v152, %v508
    %v510 = vpop.f32.mrf.mxu0
    %v511 = vpop.f32.mrf.mxu0
    %v512 = vadd.f32 %v152, %v511
    %v513 = vpop.f32.mrf.mxu0
    %514 = vmatprep.mubr.bf16.mxu0 0
    %515 = vmatmul.mubr.bf16.gmra.mxu0 %v267
    %v516 = vpop.f32.mrf.mxu0
    %v517 = vadd.f32 %v152, %v516
    %v518 = vpop.f32.mrf.mxu0
    %v519 = vpop.f32.mrf.mxu0
    %v520 = vadd.f32 %v152, %v519
    %v521 = vpop.f32.mrf.mxu0
    %522 = vmatprep.mubr.bf16.mxu0 0
    %523 = vmatmul.mubr.bf16.gmra.mxu0 %v268
    %v524 = vpop.f32.mrf.mxu0
    %v525 = vadd.f32 %v152, %v524
    %v526 = vpop.f32.mrf.mxu0
    %v527 = vpop.f32.mrf.mxu0
    %v528 = vadd.f32 %v152, %v527
    %v529 = vpop.f32.mrf.mxu0
    %530 = vmatprep.mubr.bf16.mxu0 0
    %531 = vmatmul.mubr.bf16.gmra.mxu0 %v269
    %v532 = vpop.f32.mrf.mxu0
    %v533 = vadd.f32 %v152, %v532
    %v534 = vpop.f32.mrf.mxu0
    %v535 = vpop.f32.mrf.mxu0
    %v536 = vadd.f32 %v152, %v535
    %v537 = vpop.f32.mrf.mxu0
    %538 = vmatprep.mubr.bf16.mxu0 0
    %539 = vmatmul.mubr.bf16.gmra.mxu0 %v270
    %v540 = vpop.f32.mrf.mxu0
    %v541 = vadd.f32 %v152, %v540
    %v542 = vpop.f32.mrf.mxu0
    %v543 = vpop.f32.mrf.mxu0
    %v544 = vadd.f32 %v152, %v543
    %v545 = vpop.f32.mrf.mxu0
    %546 = vmatprep.mubr.bf16.mxu0 0
    %547 = vmatmul.mubr.bf16.gmra.mxu0 %v271
    %v548 = vpop.f32.mrf.mxu0
    %v549 = vadd.f32 %v152, %v548
    %v550 = vpop.f32.mrf.mxu0
    %v551 = vpop.f32.mrf.mxu0
    %v552 = vadd.f32 %v152, %v551
    %v553 = vpop.f32.mrf.mxu0
    %554 = vmatprep.mubr.bf16.mxu0 0
    %555 = vmatmul.mubr.bf16.gmra.mxu0 %v272
    %v556 = vpop.f32.mrf.mxu0
    %v557 = vadd.f32 %v152, %v556
    %v558 = vpop.f32.mrf.mxu0
    %v559 = vpop.f32.mrf.mxu0
    %v560 = vadd.f32 %v152, %v559
    %v561 = vpop.f32.mrf.mxu0
    %562 = vmatprep.mubr.bf16.mxu0 0
    %563 = vmatmul.mubr.bf16.gmra.mxu0 %v273
    %v564 = vpop.f32.mrf.mxu0
    %v565 = vadd.f32 %v152, %v564
    %v566 = vpop.f32.mrf.mxu0
    %v567 = vpop.f32.mrf.mxu0
    %v568 = vadd.f32 %v152, %v567
    %v569 = vpop.f32.mrf.mxu0
    %570 = vdwg.mxu0
    %v571 = vmax.f32 %v381, 0.0
    %v572 = vmax.f32 %v384, 0.0
    %v573 = vmax.f32 %v389, 0.0
    %v574 = vmax.f32 %v392, 0.0
    %v575 = vmax.f32 %v397, 0.0
    %v576 = vmax.f32 %v400, 0.0
    %v577 = vmax.f32 %v405, 0.0
    %v578 = vmax.f32 %v408, 0.0
    %v579 = vmax.f32 %v413, 0.0
    %v580 = vmax.f32 %v416, 0.0
    %v581 = vmax.f32 %v421, 0.0
    %v582 = vmax.f32 %v424, 0.0
    %v583 = vmax.f32 %v429, 0.0
    %v584 = vmax.f32 %v432, 0.0
    %v585 = vmax.f32 %v437, 0.0
    %v586 = vmax.f32 %v440, 0.0
    %v587 = vmax.f32 %v445, 0.0
    %v588 = vmax.f32 %v448, 0.0
    %v589 = vmax.f32 %v453, 0.0
    %v590 = vmax.f32 %v456, 0.0
    %v591 = vmax.f32 %v461, 0.0
    %v592 = vmax.f32 %v464, 0.0
    %v593 = vmax.f32 %v469, 0.0
    %v594 = vmax.f32 %v472, 0.0
    %v595 = vmax.f32 %v477, 0.0
    %v596 = vmax.f32 %v480, 0.0
    %v597 = vmax.f32 %v485, 0.0
    %v598 = vmax.f32 %v488, 0.0
    %v599 = vmax.f32 %v493, 0.0
    %v600 = vmax.f32 %v496, 0.0
    %v601 = vmax.f32 %v501, 0.0
    %v602 = vmax.f32 %v504, 0.0
    %v603 = vmax.f32 %v509, 0.0
    %v604 = vmax.f32 %v512, 0.0
    %v605 = vmax.f32 %v517, 0.0
    %v606 = vmax.f32 %v520, 0.0
    %v607 = vmax.f32 %v525, 0.0
    %v608 = vmax.f32 %v528, 0.0
    %v609 = vmax.f32 %v533, 0.0
    %v610 = vmax.f32 %v536, 0.0
    %v611 = vmax.f32 %v541, 0.0
    %v612 = vmax.f32 %v544, 0.0
    %v613 = vmax.f32 %v549, 0.0
    %v614 = vmax.f32 %v552, 0.0
    %v615 = vmax.f32 %v557, 0.0
    %v616 = vmax.f32 %v560, 0.0
    %v617 = vmax.f32 %v565, 0.0
    %v618 = vmax.f32 %v568, 0.0
    %v619 = vld [vmem:[#allocation7] sm:$0xf]
    %v620 = vld [vmem:[#allocation7 + $0x4] sm:$0xf]
    %v621 = vld [vmem:[#allocation7 + $0x8] sm:$0xf]
    %v622 = vld [vmem:[#allocation7 + $0xc] sm:$0xf]
    %v623 = vld [vmem:[#allocation7 + $0x10] sm:$0xf]
    %v624 = vld [vmem:[#allocation7 + $0x14] sm:$0xf]
    %v625 = vld [vmem:[#allocation7 + $0x18] sm:$0xf]
    %v626 = vld [vmem:[#allocation7 + $0x1c] sm:$0xf]
    %v627 = vld [vmem:[#allocation7 + $0x20] sm:$0xf]
    %v628 = vld [vmem:[#allocation7 + $0x24] sm:$0xf]
    %v629 = vld [vmem:[#allocation7 + $0x28] sm:$0xf]
    %v630 = vld [vmem:[#allocation7 + $0x2c] sm:$0xf]
    %v631 = vld [vmem:[#allocation7 + $0x30] sm:$0xf]
    %v632 = vld [vmem:[#allocation7 + $0x34] sm:$0xf]
    %v633 = vld [vmem:[#allocation7 + $0x38] sm:$0xf]
    %v634 = vld [vmem:[#allocation7 + $0x3c] sm:$0xf]
    %v635 = vld [vmem:[%s4] sm:$0x1]
    %v636 = vpack.c.bf16 %v572, %v571
    %v637 = vpack.c.bf16 %v574, %v573
    %v638 = vpack.c.bf16 %v576, %v575
    %v639 = vpack.c.bf16 %v578, %v577
    %v640 = vpack.c.bf16 %v580, %v579
    %v641 = vpack.c.bf16 %v582, %v581
    %v642 = vpack.c.bf16 %v584, %v583
    %v643 = vpack.c.bf16 %v586, %v585
    %v644 = vpack.c.bf16 %v588, %v587
    %v645 = vpack.c.bf16 %v590, %v589
    %v646 = vpack.c.bf16 %v592, %v591
    %v647 = vpack.c.bf16 %v594, %v593
    %v648 = vpack.c.bf16 %v596, %v595
    %v649 = vpack.c.bf16 %v598, %v597
    %v650 = vpack.c.bf16 %v600, %v599
    %v651 = vpack.c.bf16 %v602, %v601
    %v652 = vpack.c.bf16 %v604, %v603
    %v653 = vpack.c.bf16 %v606, %v605
    %v654 = vpack.c.bf16 %v608, %v607
    %v655 = vpack.c.bf16 %v610, %v609
    %v656 = vpack.c.bf16 %v612, %v611
    %v657 = vpack.c.bf16 %v614, %v613
    %v658 = vpack.c.bf16 %v616, %v615
    %v659 = vpack.c.bf16 %v618, %v617
    %v661 = vlaneseq
    %v662 = vshrl.u32 %v661, 7
    %v663 = vsub.s32 0, %v662
    %v664 = vrot.slane %v635, %v663
    %v682 = vunpack.c.l.b16 %v619
    %v683 = vunpack.c.l.b16 %v620
    %v684 = vunpack.c.l.b16 %v621
    %v685 = vunpack.c.l.b16 %v622
    %v686 = vunpack.c.l.b16 %v623
    %v687 = vunpack.c.l.b16 %v624
    %v688 = vunpack.c.l.b16 %v625
    %v689 = vunpack.c.l.b16 %v626
    %v690 = vunpack.c.l.b16 %v627
    %v691 = vunpack.c.l.b16 %v628
    %v692 = vunpack.c.l.b16 %v629
    %v693 = vunpack.c.l.b16 %v630
    %v694 = vunpack.c.l.b16 %v631
    %v695 = vunpack.c.l.b16 %v632
    %v696 = vunpack.c.l.b16 %v633
    %v697 = vunpack.c.l.b16 %v634
    %v698 = vpack.c.b16 %v683, %v682
    %v699 = vpack.c.b16 %v685, %v684
    %v700 = vpack.c.b16 %v687, %v686
    %v701 = vpack.c.b16 %v689, %v688
    %v702 = vpack.c.b16 %v691, %v690
    %v703 = vpack.c.b16 %v693, %v692
    %v704 = vpack.c.b16 %v695, %v694
    %v705 = vpack.c.b16 %v697, %v696
    %714 = vmatprep.subr.bf16.mxu0 0
    %715 = vmatpush1.bf16.msra.mxu0 %v705
    %716 = vmatprep.subr.bf16.mxu0 0
    %717 = vmatpush1.bf16.msra.mxu0 %v704
    %718 = vmatprep.subr.bf16.mxu0 0
    %719 = vmatpush1.bf16.msra.mxu0 %v703
    %720 = vmatprep.subr.bf16.mxu0 0
    %721 = vmatpush1.bf16.msra.mxu0 %v702
    %722 = vmatprep.subr.bf16.mxu0 0
    %723 = vmatpush1.bf16.msra.mxu0 %v701
    %724 = vmatprep.subr.bf16.mxu0 0
    %725 = vmatpush1.bf16.msra.mxu0 %v700
    %726 = vmatprep.subr.bf16.mxu0 0
    %727 = vmatpush1.bf16.msra.mxu0 %v699
    %728 = vmatprep.subr.bf16.mxu0 0
    %729 = vmatpush1.bf16.msra.mxu0 %v698
    %730 = vmatprep.subr.bf16.mxu0 0
    %731 = vmatpush2.bf16.msra.mxu0 0
    %732 = vmatprep.subr.bf16.mxu0 0
    %733 = vmatpush2.bf16.msra.mxu0 0
    %734 = vmatprep.subr.bf16.mxu0 0
    %735 = vmatpush2.bf16.msra.mxu0 0
    %736 = vmatprep.subr.bf16.mxu0 0
    %737 = vmatpush2.bf16.msra.mxu0 0
    %738 = vmatprep.subr.bf16.mxu0 0
    %739 = vmatpush2.bf16.msra.mxu0 0
    %740 = vmatprep.subr.bf16.mxu0 0
    %741 = vmatpush2.bf16.msra.mxu0 0
    %742 = vmatprep.subr.bf16.mxu0 0
    %743 = vmatpush2.bf16.msra.mxu0 0
    %744 = vmatprep.subr.bf16.mxu0 0
    %745 = vmatpush2.bf16.msra.mxu0 0
    %746 = vmatprep.mubr.bf16.mxu0 0
    %747 = vmatmul.mubr.bf16.gmra.mxu0 %v636
    %v748 = vpop.f32.mrf.mxu0
    %v749 = vadd.f32 %v664, %v748
    %v750 = vpop.f32.mrf.mxu0
    %v751 = vpop.f32.mrf.mxu0
    %v752 = vadd.f32 %v664, %v751
    %v753 = vpop.f32.mrf.mxu0
    %754 = vmatprep.mubr.bf16.mxu0 0
    %755 = vmatmul.mubr.bf16.gmra.mxu0 %v637
    %v756 = vpop.f32.mrf.mxu0
    %v757 = vadd.f32 %v664, %v756
    %v758 = vpop.f32.mrf.mxu0
    %v759 = vpop.f32.mrf.mxu0
    %v760 = vadd.f32 %v664, %v759
    %v761 = vpop.f32.mrf.mxu0
    %762 = vmatprep.mubr.bf16.mxu0 0
    %763 = vmatmul.mubr.bf16.gmra.mxu0 %v638
    %v764 = vpop.f32.mrf.mxu0
    %v765 = vadd.f32 %v664, %v764
    %v766 = vpop.f32.mrf.mxu0
    %v767 = vpop.f32.mrf.mxu0
    %v768 = vadd.f32 %v664, %v767
    %v769 = vpop.f32.mrf.mxu0
    %770 = vmatprep.mubr.bf16.mxu0 0
    %771 = vmatmul.mubr.bf16.gmra.mxu0 %v639
    %v772 = vpop.f32.mrf.mxu0
    %v773 = vadd.f32 %v664, %v772
    %v774 = vpop.f32.mrf.mxu0
    %v775 = vpop.f32.mrf.mxu0
    %v776 = vadd.f32 %v664, %v775
    %v777 = vpop.f32.mrf.mxu0
    %778 = vmatprep.mubr.bf16.mxu0 0
    %779 = vmatmul.mubr.bf16.gmra.mxu0 %v640
    %v780 = vpop.f32.mrf.mxu0
    %v781 = vadd.f32 %v664, %v780
    %v782 = vpop.f32.mrf.mxu0
    %v783 = vpop.f32.mrf.mxu0
    %v784 = vadd.f32 %v664, %v783
    %v785 = vpop.f32.mrf.mxu0
    %786 = vmatprep.mubr.bf16.mxu0 0
    %787 = vmatmul.mubr.bf16.gmra.mxu0 %v641
    %v788 = vpop.f32.mrf.mxu0
    %v789 = vadd.f32 %v664, %v788
    %v790 = vpop.f32.mrf.mxu0
    %v791 = vpop.f32.mrf.mxu0
    %v792 = vadd.f32 %v664, %v791
    %v793 = vpop.f32.mrf.mxu0
    %794 = vmatprep.mubr.bf16.mxu0 0
    %795 = vmatmul.mubr.bf16.gmra.mxu0 %v642
    %v796 = vpop.f32.mrf.mxu0
    %v797 = vadd.f32 %v664, %v796
    %v798 = vpop.f32.mrf.mxu0
    %v799 = vpop.f32.mrf.mxu0
    %v800 = vadd.f32 %v664, %v799
    %v801 = vpop.f32.mrf.mxu0
    %802 = vmatprep.mubr.bf16.mxu0 0
    %803 = vmatmul.mubr.bf16.gmra.mxu0 %v643
    %v804 = vpop.f32.mrf.mxu0
    %v805 = vadd.f32 %v664, %v804
    %v806 = vpop.f32.mrf.mxu0
    %v807 = vpop.f32.mrf.mxu0
    %v808 = vadd.f32 %v664, %v807
    %v809 = vpop.f32.mrf.mxu0
    %810 = vmatprep.mubr.bf16.mxu0 0
    %811 = vmatmul.mubr.bf16.gmra.mxu0 %v644
    %v812 = vpop.f32.mrf.mxu0
    %v813 = vadd.f32 %v664, %v812
    %v814 = vpop.f32.mrf.mxu0
    %v815 = vpop.f32.mrf.mxu0
    %v816 = vadd.f32 %v664, %v815
    %v817 = vpop.f32.mrf.mxu0
    %818 = vmatprep.mubr.bf16.mxu0 0
    %819 = vmatmul.mubr.bf16.gmra.mxu0 %v645
    %v820 = vpop.f32.mrf.mxu0
    %v821 = vadd.f32 %v664, %v820
    %v822 = vpop.f32.mrf.mxu0
    %v823 = vpop.f32.mrf.mxu0
    %v824 = vadd.f32 %v664, %v823
    %v825 = vpop.f32.mrf.mxu0
    %826 = vmatprep.mubr.bf16.mxu0 0
    %827 = vmatmul.mubr.bf16.gmra.mxu0 %v646
    %v828 = vpop.f32.mrf.mxu0
    %v829 = vadd.f32 %v664, %v828
    %v830 = vpop.f32.mrf.mxu0
    %v831 = vpop.f32.mrf.mxu0
    %v832 = vadd.f32 %v664, %v831
    %v833 = vpop.f32.mrf.mxu0
    %834 = vmatprep.mubr.bf16.mxu0 0
    %835 = vmatmul.mubr.bf16.gmra.mxu0 %v647
    %v836 = vpop.f32.mrf.mxu0
    %v837 = vadd.f32 %v664, %v836
    %v838 = vpop.f32.mrf.mxu0
    %v839 = vpop.f32.mrf.mxu0
    %v840 = vadd.f32 %v664, %v839
    %v841 = vpop.f32.mrf.mxu0
    %842 = vmatprep.mubr.bf16.mxu0 0
    %843 = vmatmul.mubr.bf16.gmra.mxu0 %v648
    %v844 = vpop.f32.mrf.mxu0
    %v845 = vadd.f32 %v664, %v844
    %v846 = vpop.f32.mrf.mxu0
    %v847 = vpop.f32.mrf.mxu0
    %v848 = vadd.f32 %v664, %v847
    %v849 = vpop.f32.mrf.mxu0
    %850 = vmatprep.mubr.bf16.mxu0 0
    %851 = vmatmul.mubr.bf16.gmra.mxu0 %v649
    %v852 = vpop.f32.mrf.mxu0
    %v853 = vadd.f32 %v664, %v852
    %v854 = vpop.f32.mrf.mxu0
    %v855 = vpop.f32.mrf.mxu0
    %v856 = vadd.f32 %v664, %v855
    %v857 = vpop.f32.mrf.mxu0
    %858 = vmatprep.mubr.bf16.mxu0 0
    %859 = vmatmul.mubr.bf16.gmra.mxu0 %v650
    %v860 = vpop.f32.mrf.mxu0
    %v861 = vadd.f32 %v664, %v860
    %v862 = vpop.f32.mrf.mxu0
    %v863 = vpop.f32.mrf.mxu0
    %v864 = vadd.f32 %v664, %v863
    %v865 = vpop.f32.mrf.mxu0
    %866 = vmatprep.mubr.bf16.mxu0 0
    %867 = vmatmul.mubr.bf16.gmra.mxu0 %v651
    %v868 = vpop.f32.mrf.mxu0
    %v869 = vadd.f32 %v664, %v868
    %v870 = vpop.f32.mrf.mxu0
    %v871 = vpop.f32.mrf.mxu0
    %v872 = vadd.f32 %v664, %v871
    %v873 = vpop.f32.mrf.mxu0
    %874 = vmatprep.mubr.bf16.mxu0 0
    %875 = vmatmul.mubr.bf16.gmra.mxu0 %v652
    %v876 = vpop.f32.mrf.mxu0
    %v877 = vadd.f32 %v664, %v876
    %v878 = vpop.f32.mrf.mxu0
    %v879 = vpop.f32.mrf.mxu0
    %v880 = vadd.f32 %v664, %v879
    %v881 = vpop.f32.mrf.mxu0
    %882 = vmatprep.mubr.bf16.mxu0 0
    %883 = vmatmul.mubr.bf16.gmra.mxu0 %v653
    %v884 = vpop.f32.mrf.mxu0
    %v885 = vadd.f32 %v664, %v884
    %v886 = vpop.f32.mrf.mxu0
    %v887 = vpop.f32.mrf.mxu0
    %v888 = vadd.f32 %v664, %v887
    %v889 = vpop.f32.mrf.mxu0
    %890 = vmatprep.mubr.bf16.mxu0 0
    %891 = vmatmul.mubr.bf16.gmra.mxu0 %v654
    %v892 = vpop.f32.mrf.mxu0
    %v893 = vadd.f32 %v664, %v892
    %v894 = vpop.f32.mrf.mxu0
    %v895 = vpop.f32.mrf.mxu0
    %v896 = vadd.f32 %v664, %v895
    %v897 = vpop.f32.mrf.mxu0
    %898 = vmatprep.mubr.bf16.mxu0 0
    %899 = vmatmul.mubr.bf16.gmra.mxu0 %v655
    %v900 = vpop.f32.mrf.mxu0
    %v901 = vadd.f32 %v664, %v900
    %v902 = vpop.f32.mrf.mxu0
    %v903 = vpop.f32.mrf.mxu0
    %v904 = vadd.f32 %v664, %v903
    %v905 = vpop.f32.mrf.mxu0
    %906 = vmatprep.mubr.bf16.mxu0 0
    %907 = vmatmul.mubr.bf16.gmra.mxu0 %v656
    %v908 = vpop.f32.mrf.mxu0
    %v909 = vadd.f32 %v664, %v908
    %v910 = vpop.f32.mrf.mxu0
    %v911 = vpop.f32.mrf.mxu0
    %v912 = vadd.f32 %v664, %v911
    %v913 = vpop.f32.mrf.mxu0
    %914 = vmatprep.mubr.bf16.mxu0 0
    %915 = vmatmul.mubr.bf16.gmra.mxu0 %v657
    %v916 = vpop.f32.mrf.mxu0
    %v917 = vadd.f32 %v664, %v916
    %v918 = vpop.f32.mrf.mxu0
    %v919 = vpop.f32.mrf.mxu0
    %v920 = vadd.f32 %v664, %v919
    %v921 = vpop.f32.mrf.mxu0
    %922 = vmatprep.mubr.bf16.mxu0 0
    %923 = vmatmul.mubr.bf16.gmra.mxu0 %v658
    %v924 = vpop.f32.mrf.mxu0
    %v925 = vadd.f32 %v664, %v924
    %v926 = vpop.f32.mrf.mxu0
    %v927 = vpop.f32.mrf.mxu0
    %v928 = vadd.f32 %v664, %v927
    %v929 = vpop.f32.mrf.mxu0
    %930 = vmatprep.mubr.bf16.mxu0 0
    %931 = vmatmul.mubr.bf16.gmra.mxu0 %v659
    %v932 = vpop.f32.mrf.mxu0
    %v933 = vadd.f32 %v664, %v932
    %v934 = vpop.f32.mrf.mxu0
    %v935 = vpop.f32.mrf.mxu0
    %v936 = vadd.f32 %v664, %v935
    %v937 = vpop.f32.mrf.mxu0
    %938 = vdwg.mxu0
    %v939 = vmax.f32 %v749, 0.0
    %v940 = vmax.f32 %v752, 0.0
    %v941 = vmax.f32 %v757, 0.0
    %v942 = vmax.f32 %v760, 0.0
    %v943 = vmax.f32 %v765, 0.0
    %v944 = vmax.f32 %v768, 0.0
    %v945 = vmax.f32 %v773, 0.0
    %v946 = vmax.f32 %v776, 0.0
    %v947 = vmax.f32 %v781, 0.0
    %v948 = vmax.f32 %v784, 0.0
    %v949 = vmax.f32 %v789, 0.0
    %v950 = vmax.f32 %v792, 0.0
    %v951 = vmax.f32 %v797, 0.0
    %v952 = vmax.f32 %v800, 0.0
    %v953 = vmax.f32 %v805, 0.0
    %v954 = vmax.f32 %v808, 0.0
    %v955 = vmax.f32 %v813, 0.0
    %v956 = vmax.f32 %v816, 0.0
    %v957 = vmax.f32 %v821, 0.0
    %v958 = vmax.f32 %v824, 0.0
    %v959 = vmax.f32 %v829, 0.0
    %v960 = vmax.f32 %v832, 0.0
    %v961 = vmax.f32 %v837, 0.0
    %v962 = vmax.f32 %v840, 0.0
    %v963 = vmax.f32 %v845, 0.0
    %v964 = vmax.f32 %v848, 0.0
    %v965 = vmax.f32 %v853, 0.0
    %v966 = vmax.f32 %v856, 0.0
    %v967 = vmax.f32 %v861, 0.0
    %v968 = vmax.f32 %v864, 0.0
    %v969 = vmax.f32 %v869, 0.0
    %v970 = vmax.f32 %v872, 0.0
    %v971 = vmax.f32 %v877, 0.0
    %v972 = vmax.f32 %v880, 0.0
    %v973 = vmax.f32 %v885, 0.0
    %v974 = vmax.f32 %v888, 0.0
    %v975 = vmax.f32 %v893, 0.0
    %v976 = vmax.f32 %v896, 0.0
    %v977 = vmax.f32 %v901, 0.0
    %v978 = vmax.f32 %v904, 0.0
    %v979 = vmax.f32 %v909, 0.0
    %v980 = vmax.f32 %v912, 0.0
    %v981 = vmax.f32 %v917, 0.0
    %v982 = vmax.f32 %v920, 0.0
    %v983 = vmax.f32 %v925, 0.0
    %v984 = vmax.f32 %v928, 0.0
    %v985 = vmax.f32 %v933, 0.0
    %v986 = vmax.f32 %v936, 0.0
    %v987 = vld [vmem:[#allocation8] sm:$0xf]
    %v988 = vld [vmem:[#allocation8 + $0x4] sm:$0xf]
    %v989 = vld [vmem:[#allocation8 + $0x8] sm:$0xf]
    %v990 = vld [vmem:[#allocation8 + $0xc] sm:$0xf]
    %v991 = vld [vmem:[#allocation8 + $0x10] sm:$0xf]
    %v992 = vld [vmem:[#allocation8 + $0x14] sm:$0xf]
    %v993 = vld [vmem:[#allocation8 + $0x18] sm:$0xf]
    %v994 = vld [vmem:[#allocation8 + $0x1c] sm:$0xf]
    %v995 = vld [vmem:[#allocation8 + $0x20] sm:$0xf]
    %v996 = vld [vmem:[#allocation8 + $0x24] sm:$0xf]
    %v997 = vld [vmem:[#allocation8 + $0x28] sm:$0xf]
    %v998 = vld [vmem:[#allocation8 + $0x2c] sm:$0xf]
    %v999 = vld [vmem:[#allocation8 + $0x30] sm:$0xf]
    %v1000 = vld [vmem:[#allocation8 + $0x34] sm:$0xf]
    %v1001 = vld [vmem:[#allocation8 + $0x38] sm:$0xf]
    %v1002 = vld [vmem:[#allocation8 + $0x3c] sm:$0xf]
    %v1003 = vld [vmem:[%s6] sm:$0x1]
    %v1004 = vpack.c.bf16 %v940, %v939
    %v1005 = vpack.c.bf16 %v942, %v941
    %v1006 = vpack.c.bf16 %v944, %v943
    %v1007 = vpack.c.bf16 %v946, %v945
    %v1008 = vpack.c.bf16 %v948, %v947
    %v1009 = vpack.c.bf16 %v950, %v949
    %v1010 = vpack.c.bf16 %v952, %v951
    %v1011 = vpack.c.bf16 %v954, %v953
    %v1012 = vpack.c.bf16 %v956, %v955
    %v1013 = vpack.c.bf16 %v958, %v957
    %v1014 = vpack.c.bf16 %v960, %v959
    %v1015 = vpack.c.bf16 %v962, %v961
    %v1016 = vpack.c.bf16 %v964, %v963
    %v1017 = vpack.c.bf16 %v966, %v965
    %v1018 = vpack.c.bf16 %v968, %v967
    %v1019 = vpack.c.bf16 %v970, %v969
    %v1020 = vpack.c.bf16 %v972, %v971
    %v1021 = vpack.c.bf16 %v974, %v973
    %v1022 = vpack.c.bf16 %v976, %v975
    %v1023 = vpack.c.bf16 %v978, %v977
    %v1024 = vpack.c.bf16 %v980, %v979
    %v1025 = vpack.c.bf16 %v982, %v981
    %v1026 = vpack.c.bf16 %v984, %v983
    %v1027 = vpack.c.bf16 %v986, %v985
    %v1029 = vlaneseq
    %v1030 = vshrl.u32 %v1029, 7
    %v1031 = vsub.s32 0, %v1030
    %v1032 = vrot.slane %v1003, %v1031
    %v1050 = vunpack.c.l.b16 %v987
    %v1051 = vunpack.c.l.b16 %v988
    %v1052 = vunpack.c.l.b16 %v989
    %v1053 = vunpack.c.l.b16 %v990
    %v1054 = vunpack.c.l.b16 %v991
    %v1055 = vunpack.c.l.b16 %v992
    %v1056 = vunpack.c.l.b16 %v993
    %v1057 = vunpack.c.l.b16 %v994
    %v1058 = vunpack.c.l.b16 %v995
    %v1059 = vunpack.c.l.b16 %v996
    %v1060 = vunpack.c.l.b16 %v997
    %v1061 = vunpack.c.l.b16 %v998
    %v1062 = vunpack.c.l.b16 %v999
    %v1063 = vunpack.c.l.b16 %v1000
    %v1064 = vunpack.c.l.b16 %v1001
    %v1065 = vunpack.c.l.b16 %v1002
    %v1066 = vpack.c.b16 %v1051, %v1050
    %v1067 = vpack.c.b16 %v1053, %v1052
    %v1068 = vpack.c.b16 %v1055, %v1054
    %v1069 = vpack.c.b16 %v1057, %v1056
    %v1070 = vpack.c.b16 %v1059, %v1058
    %v1071 = vpack.c.b16 %v1061, %v1060
    %v1072 = vpack.c.b16 %v1063, %v1062
    %v1073 = vpack.c.b16 %v1065, %v1064
    %1082 = vmatprep.subr.bf16.mxu0 0
    %1083 = vmatpush1.bf16.msra.mxu0 %v1073
    %1084 = vmatprep.subr.bf16.mxu0 0
    %1085 = vmatpush1.bf16.msra.mxu0 %v1072
    %1086 = vmatprep.subr.bf16.mxu0 0
    %1087 = vmatpush1.bf16.msra.mxu0 %v1071
    %1088 = vmatprep.subr.bf16.mxu0 0
    %1089 = vmatpush1.bf16.msra.mxu0 %v1070
    %1090 = vmatprep.subr.bf16.mxu0 0
    %1091 = vmatpush1.bf16.msra.mxu0 %v1069
    %1092 = vmatprep.subr.bf16.mxu0 0
    %1093 = vmatpush1.bf16.msra.mxu0 %v1068
    %1094 = vmatprep.subr.bf16.mxu0 0
    %1095 = vmatpush1.bf16.msra.mxu0 %v1067
    %1096 = vmatprep.subr.bf16.mxu0 0
    %1097 = vmatpush1.bf16.msra.mxu0 %v1066
    %1098 = vmatprep.subr.bf16.mxu0 0
    %1099 = vmatpush2.bf16.msra.mxu0 0
    %1100 = vmatprep.subr.bf16.mxu0 0
    %1101 = vmatpush2.bf16.msra.mxu0 0
    %1102 = vmatprep.subr.bf16.mxu0 0
    %1103 = vmatpush2.bf16.msra.mxu0 0
    %1104 = vmatprep.subr.bf16.mxu0 0
    %1105 = vmatpush2.bf16.msra.mxu0 0
    %1106 = vmatprep.subr.bf16.mxu0 0
    %1107 = vmatpush2.bf16.msra.mxu0 0
    %1108 = vmatprep.subr.bf16.mxu0 0
    %1109 = vmatpush2.bf16.msra.mxu0 0
    %1110 = vmatprep.subr.bf16.mxu0 0
    %1111 = vmatpush2.bf16.msra.mxu0 0
    %1112 = vmatprep.subr.bf16.mxu0 0
    %1113 = vmatpush2.bf16.msra.mxu0 0
    %1114 = vmatprep.mubr.bf16.mxu0 0
    %1115 = vmatmul.mubr.bf16.gmra.mxu0 %v1004
    %v1116 = vpop.f32.mrf.mxu0
    %v1117 = vadd.f32 %v1032, %v1116
    %v1118 = vpop.f32.mrf.mxu0
    %v1119 = vpop.f32.mrf.mxu0
    %v1120 = vadd.f32 %v1032, %v1119
    %v1121 = vpop.f32.mrf.mxu0
    %1122 = vmatprep.mubr.bf16.mxu0 0
    %1123 = vmatmul.mubr.bf16.gmra.mxu0 %v1005
    %v1124 = vpop.f32.mrf.mxu0
    %v1125 = vadd.f32 %v1032, %v1124
    %v1126 = vpop.f32.mrf.mxu0
    %v1127 = vpop.f32.mrf.mxu0
    %v1128 = vadd.f32 %v1032, %v1127
    %v1129 = vpop.f32.mrf.mxu0
    %1130 = vmatprep.mubr.bf16.mxu0 0
    %1131 = vmatmul.mubr.bf16.gmra.mxu0 %v1006
    %v1132 = vpop.f32.mrf.mxu0
    %v1133 = vadd.f32 %v1032, %v1132
    %v1134 = vpop.f32.mrf.mxu0
    %v1135 = vpop.f32.mrf.mxu0
    %v1136 = vadd.f32 %v1032, %v1135
    %v1137 = vpop.f32.mrf.mxu0
    %1138 = vmatprep.mubr.bf16.mxu0 0
    %1139 = vmatmul.mubr.bf16.gmra.mxu0 %v1007
    %v1140 = vpop.f32.mrf.mxu0
    %v1141 = vadd.f32 %v1032, %v1140
    %v1142 = vpop.f32.mrf.mxu0
    %v1143 = vpop.f32.mrf.mxu0
    %v1144 = vadd.f32 %v1032, %v1143
    %v1145 = vpop.f32.mrf.mxu0
    %1146 = vmatprep.mubr.bf16.mxu0 0
    %1147 = vmatmul.mubr.bf16.gmra.mxu0 %v1008
    %v1148 = vpop.f32.mrf.mxu0
    %v1149 = vadd.f32 %v1032, %v1148
    %v1150 = vpop.f32.mrf.mxu0
    %v1151 = vpop.f32.mrf.mxu0
    %v1152 = vadd.f32 %v1032, %v1151
    %v1153 = vpop.f32.mrf.mxu0
    %1154 = vmatprep.mubr.bf16.mxu0 0
    %1155 = vmatmul.mubr.bf16.gmra.mxu0 %v1009
    %v1156 = vpop.f32.mrf.mxu0
    %v1157 = vadd.f32 %v1032, %v1156
    %v1158 = vpop.f32.mrf.mxu0
    %v1159 = vpop.f32.mrf.mxu0
    %v1160 = vadd.f32 %v1032, %v1159
    %v1161 = vpop.f32.mrf.mxu0
    %1162 = vmatprep.mubr.bf16.mxu0 0
    %1163 = vmatmul.mubr.bf16.gmra.mxu0 %v1010
    %v1164 = vpop.f32.mrf.mxu0
    %v1165 = vadd.f32 %v1032, %v1164
    %v1166 = vpop.f32.mrf.mxu0
    %v1167 = vpop.f32.mrf.mxu0
    %v1168 = vadd.f32 %v1032, %v1167
    %v1169 = vpop.f32.mrf.mxu0
    %1170 = vmatprep.mubr.bf16.mxu0 0
    %1171 = vmatmul.mubr.bf16.gmra.mxu0 %v1011
    %v1172 = vpop.f32.mrf.mxu0
    %v1173 = vadd.f32 %v1032, %v1172
    %v1174 = vpop.f32.mrf.mxu0
    %v1175 = vpop.f32.mrf.mxu0
    %v1176 = vadd.f32 %v1032, %v1175
    %v1177 = vpop.f32.mrf.mxu0
    %1178 = vmatprep.mubr.bf16.mxu0 0
    %1179 = vmatmul.mubr.bf16.gmra.mxu0 %v1012
    %v1180 = vpop.f32.mrf.mxu0
    %v1181 = vadd.f32 %v1032, %v1180
    %v1182 = vpop.f32.mrf.mxu0
    %v1183 = vpop.f32.mrf.mxu0
    %v1184 = vadd.f32 %v1032, %v1183
    %v1185 = vpop.f32.mrf.mxu0
    %1186 = vmatprep.mubr.bf16.mxu0 0
    %1187 = vmatmul.mubr.bf16.gmra.mxu0 %v1013
    %v1188 = vpop.f32.mrf.mxu0
    %v1189 = vadd.f32 %v1032, %v1188
    %v1190 = vpop.f32.mrf.mxu0
    %v1191 = vpop.f32.mrf.mxu0
    %v1192 = vadd.f32 %v1032, %v1191
    %v1193 = vpop.f32.mrf.mxu0
    %1194 = vmatprep.mubr.bf16.mxu0 0
    %1195 = vmatmul.mubr.bf16.gmra.mxu0 %v1014
    %v1196 = vpop.f32.mrf.mxu0
    %v1197 = vadd.f32 %v1032, %v1196
    %v1198 = vpop.f32.mrf.mxu0
    %v1199 = vpop.f32.mrf.mxu0
    %v1200 = vadd.f32 %v1032, %v1199
    %v1201 = vpop.f32.mrf.mxu0
    %1202 = vmatprep.mubr.bf16.mxu0 0
    %1203 = vmatmul.mubr.bf16.gmra.mxu0 %v1015
    %v1204 = vpop.f32.mrf.mxu0
    %v1205 = vadd.f32 %v1032, %v1204
    %v1206 = vpop.f32.mrf.mxu0
    %v1207 = vpop.f32.mrf.mxu0
    %v1208 = vadd.f32 %v1032, %v1207
    %v1209 = vpop.f32.mrf.mxu0
    %1210 = vmatprep.mubr.bf16.mxu0 0
    %1211 = vmatmul.mubr.bf16.gmra.mxu0 %v1016
    %v1212 = vpop.f32.mrf.mxu0
    %v1213 = vadd.f32 %v1032, %v1212
    %v1214 = vpop.f32.mrf.mxu0
    %v1215 = vpop.f32.mrf.mxu0
    %v1216 = vadd.f32 %v1032, %v1215
    %v1217 = vpop.f32.mrf.mxu0
    %1218 = vmatprep.mubr.bf16.mxu0 0
    %1219 = vmatmul.mubr.bf16.gmra.mxu0 %v1017
    %v1220 = vpop.f32.mrf.mxu0
    %v1221 = vadd.f32 %v1032, %v1220
    %v1222 = vpop.f32.mrf.mxu0
    %v1223 = vpop.f32.mrf.mxu0
    %v1224 = vadd.f32 %v1032, %v1223
    %v1225 = vpop.f32.mrf.mxu0
    %1226 = vmatprep.mubr.bf16.mxu0 0
    %1227 = vmatmul.mubr.bf16.gmra.mxu0 %v1018
    %v1228 = vpop.f32.mrf.mxu0
    %v1229 = vadd.f32 %v1032, %v1228
    %v1230 = vpop.f32.mrf.mxu0
    %v1231 = vpop.f32.mrf.mxu0
    %v1232 = vadd.f32 %v1032, %v1231
    %v1233 = vpop.f32.mrf.mxu0
    %1234 = vmatprep.mubr.bf16.mxu0 0
    %1235 = vmatmul.mubr.bf16.gmra.mxu0 %v1019
    %v1236 = vpop.f32.mrf.mxu0
    %v1237 = vadd.f32 %v1032, %v1236
    %v1238 = vpop.f32.mrf.mxu0
    %v1239 = vpop.f32.mrf.mxu0
    %v1240 = vadd.f32 %v1032, %v1239
    %v1241 = vpop.f32.mrf.mxu0
    %1242 = vmatprep.mubr.bf16.mxu0 0
    %1243 = vmatmul.mubr.bf16.gmra.mxu0 %v1020
    %v1244 = vpop.f32.mrf.mxu0
    %v1245 = vadd.f32 %v1032, %v1244
    %v1246 = vpop.f32.mrf.mxu0
    %v1247 = vpop.f32.mrf.mxu0
    %v1248 = vadd.f32 %v1032, %v1247
    %v1249 = vpop.f32.mrf.mxu0
    %1250 = vmatprep.mubr.bf16.mxu0 0
    %1251 = vmatmul.mubr.bf16.gmra.mxu0 %v1021
    %v1252 = vpop.f32.mrf.mxu0
    %v1253 = vadd.f32 %v1032, %v1252
    %v1254 = vpop.f32.mrf.mxu0
    %v1255 = vpop.f32.mrf.mxu0
    %v1256 = vadd.f32 %v1032, %v1255
    %v1257 = vpop.f32.mrf.mxu0
    %1258 = vmatprep.mubr.bf16.mxu0 0
    %1259 = vmatmul.mubr.bf16.gmra.mxu0 %v1022
    %v1260 = vpop.f32.mrf.mxu0
    %v1261 = vadd.f32 %v1032, %v1260
    %v1262 = vpop.f32.mrf.mxu0
    %v1263 = vpop.f32.mrf.mxu0
    %v1264 = vadd.f32 %v1032, %v1263
    %v1265 = vpop.f32.mrf.mxu0
    %1266 = vmatprep.mubr.bf16.mxu0 0
    %1267 = vmatmul.mubr.bf16.gmra.mxu0 %v1023
    %v1268 = vpop.f32.mrf.mxu0
    %v1269 = vadd.f32 %v1032, %v1268
    %v1270 = vpop.f32.mrf.mxu0
    %v1271 = vpop.f32.mrf.mxu0
    %v1272 = vadd.f32 %v1032, %v1271
    %v1273 = vpop.f32.mrf.mxu0
    %1274 = vmatprep.mubr.bf16.mxu0 0
    %1275 = vmatmul.mubr.bf16.gmra.mxu0 %v1024
    %v1276 = vpop.f32.mrf.mxu0
    %v1277 = vadd.f32 %v1032, %v1276
    %v1278 = vpop.f32.mrf.mxu0
    %v1279 = vpop.f32.mrf.mxu0
    %v1280 = vadd.f32 %v1032, %v1279
    %v1281 = vpop.f32.mrf.mxu0
    %1282 = vmatprep.mubr.bf16.mxu0 0
    %1283 = vmatmul.mubr.bf16.gmra.mxu0 %v1025
    %v1284 = vpop.f32.mrf.mxu0
    %v1285 = vadd.f32 %v1032, %v1284
    %v1286 = vpop.f32.mrf.mxu0
    %v1287 = vpop.f32.mrf.mxu0
    %v1288 = vadd.f32 %v1032, %v1287
    %v1289 = vpop.f32.mrf.mxu0
    %1290 = vmatprep.mubr.bf16.mxu0 0
    %1291 = vmatmul.mubr.bf16.gmra.mxu0 %v1026
    %v1292 = vpop.f32.mrf.mxu0
    %v1293 = vadd.f32 %v1032, %v1292
    %v1294 = vpop.f32.mrf.mxu0
    %v1295 = vpop.f32.mrf.mxu0
    %v1296 = vadd.f32 %v1032, %v1295
    %v1297 = vpop.f32.mrf.mxu0
    %1298 = vmatprep.mubr.bf16.mxu0 0
    %1299 = vmatmul.mubr.bf16.gmra.mxu0 %v1027
    %v1300 = vpop.f32.mrf.mxu0
    %v1301 = vadd.f32 %v1032, %v1300
    %v1302 = vpop.f32.mrf.mxu0
    %v1303 = vpop.f32.mrf.mxu0
    %v1304 = vadd.f32 %v1032, %v1303
    %v1305 = vpop.f32.mrf.mxu0
    %1306 = vdwg.mxu0
    %1307 = vmax.xlane.f32.xlu0 %v1117
    %v1308 = vpop.xlane.xlu0 %1307
    %1309 = vmax.xlane.f32.xlu0 %v1120
    %v1310 = vpop.xlane.xlu0 %1309
    %1311 = vmax.xlane.f32.xlu0 %v1125
    %v1312 = vpop.xlane.xlu0 %1311
    %1313 = vmax.xlane.f32.xlu0 %v1128
    %v1314 = vpop.xlane.xlu0 %1313
    %1315 = vmax.xlane.f32.xlu0 %v1133
    %v1316 = vpop.xlane.xlu0 %1315
    %1317 = vmax.xlane.f32.xlu0 %v1136
    %v1318 = vpop.xlane.xlu0 %1317
    %1319 = vmax.xlane.f32.xlu0 %v1141
    %v1320 = vpop.xlane.xlu0 %1319
    %1321 = vmax.xlane.f32.xlu0 %v1144
    %v1322 = vpop.xlane.xlu0 %1321
    %1323 = vmax.xlane.f32.xlu0 %v1149
    %v1324 = vpop.xlane.xlu0 %1323
    %1325 = vmax.xlane.f32.xlu0 %v1152
    %v1326 = vpop.xlane.xlu0 %1325
    %1327 = vmax.xlane.f32.xlu0 %v1157
    %v1328 = vpop.xlane.xlu0 %1327
    %1329 = vmax.xlane.f32.xlu0 %v1160
    %v1330 = vpop.xlane.xlu0 %1329
    %1331 = vmax.xlane.f32.xlu0 %v1165
    %v1332 = vpop.xlane.xlu0 %1331
    %1333 = vmax.xlane.f32.xlu0 %v1168
    %v1334 = vpop.xlane.xlu0 %1333
    %1335 = vmax.xlane.f32.xlu0 %v1173
    %v1336 = vpop.xlane.xlu0 %1335
    %1337 = vmax.xlane.f32.xlu0 %v1176
    %v1338 = vpop.xlane.xlu0 %1337
    %1339 = vmax.xlane.f32.xlu0 %v1181
    %v1340 = vpop.xlane.xlu0 %1339
    %1341 = vmax.xlane.f32.xlu0 %v1184
    %v1342 = vpop.xlane.xlu0 %1341
    %1343 = vmax.xlane.f32.xlu0 %v1189
    %v1344 = vpop.xlane.xlu0 %1343
    %1345 = vmax.xlane.f32.xlu0 %v1192
    %v1346 = vpop.xlane.xlu0 %1345
    %1347 = vmax.xlane.f32.xlu0 %v1197
    %v1348 = vpop.xlane.xlu0 %1347
    %1349 = vmax.xlane.f32.xlu0 %v1200
    %v1350 = vpop.xlane.xlu0 %1349
    %1351 = vmax.xlane.f32.xlu0 %v1205
    %v1352 = vpop.xlane.xlu0 %1351
    %1353 = vmax.xlane.f32.xlu0 %v1208
    %v1354 = vpop.xlane.xlu0 %1353
    %1355 = vmax.xlane.f32.xlu0 %v1213
    %v1356 = vpop.xlane.xlu0 %1355
    %1357 = vmax.xlane.f32.xlu0 %v1216
    %v1358 = vpop.xlane.xlu0 %1357
    %1359 = vmax.xlane.f32.xlu0 %v1221
    %v1360 = vpop.xlane.xlu0 %1359
    %1361 = vmax.xlane.f32.xlu0 %v1224
    %v1362 = vpop.xlane.xlu0 %1361
    %1363 = vmax.xlane.f32.xlu0 %v1229
    %v1364 = vpop.xlane.xlu0 %1363
    %1365 = vmax.xlane.f32.xlu0 %v1232
    %v1366 = vpop.xlane.xlu0 %1365
    %1367 = vmax.xlane.f32.xlu0 %v1237
    %v1368 = vpop.xlane.xlu0 %1367
    %1369 = vmax.xlane.f32.xlu0 %v1240
    %v1370 = vpop.xlane.xlu0 %1369
    %1371 = vmax.xlane.f32.xlu0 %v1245
    %v1372 = vpop.xlane.xlu0 %1371
    %1373 = vmax.xlane.f32.xlu0 %v1248
    %v1374 = vpop.xlane.xlu0 %1373
    %1375 = vmax.xlane.f32.xlu0 %v1253
    %v1376 = vpop.xlane.xlu0 %1375
    %1377 = vmax.xlane.f32.xlu0 %v1256
    %v1378 = vpop.xlane.xlu0 %1377
    %1379 = vmax.xlane.f32.xlu0 %v1261
    %v1380 = vpop.xlane.xlu0 %1379
    %1381 = vmax.xlane.f32.xlu0 %v1264
    %v1382 = vpop.xlane.xlu0 %1381
    %1383 = vmax.xlane.f32.xlu0 %v1269
    %v1384 = vpop.xlane.xlu0 %1383
    %1385 = vmax.xlane.f32.xlu0 %v1272
    %v1386 = vpop.xlane.xlu0 %1385
    %1387 = vmax.xlane.f32.xlu0 %v1277
    %v1388 = vpop.xlane.xlu0 %1387
    %1389 = vmax.xlane.f32.xlu0 %v1280
    %v1390 = vpop.xlane.xlu0 %1389
    %1391 = vmax.xlane.f32.xlu0 %v1285
    %v1392 = vpop.xlane.xlu0 %1391
    %1393 = vmax.xlane.f32.xlu0 %v1288
    %v1394 = vpop.xlane.xlu0 %1393
    %1395 = vmax.xlane.f32.xlu0 %v1293
    %v1396 = vpop.xlane.xlu0 %1395
    %1397 = vmax.xlane.f32.xlu0 %v1296
    %v1398 = vpop.xlane.xlu0 %1397
    %1399 = vmax.xlane.f32.xlu0 %v1301
    %v1400 = vpop.xlane.xlu0 %1399
    %1401 = vmax.xlane.f32.xlu0 %v1304
    %v1402 = vpop.xlane.xlu0 %1401
    %v1403 = vsub.f32 %v1117, %v1308
    %v1404 = vsub.f32 %v1120, %v1310
    %v1405 = vsub.f32 %v1125, %v1312
    %v1406 = vsub.f32 %v1128, %v1314
    %v1407 = vsub.f32 %v1133, %v1316
    %v1408 = vsub.f32 %v1136, %v1318
    %v1409 = vsub.f32 %v1141, %v1320
    %v1410 = vsub.f32 %v1144, %v1322
    %v1411 = vsub.f32 %v1149, %v1324
    %v1412 = vsub.f32 %v1152, %v1326
    %v1413 = vsub.f32 %v1157, %v1328
    %v1414 = vsub.f32 %v1160, %v1330
    %v1415 = vsub.f32 %v1165, %v1332
    %v1416 = vsub.f32 %v1168, %v1334
    %v1417 = vsub.f32 %v1173, %v1336
    %v1418 = vsub.f32 %v1176, %v1338
    %v1419 = vsub.f32 %v1181, %v1340
    %v1420 = vsub.f32 %v1184, %v1342
    %v1421 = vsub.f32 %v1189, %v1344
    %v1422 = vsub.f32 %v1192, %v1346
    %v1423 = vsub.f32 %v1197, %v1348
    %v1424 = vsub.f32 %v1200, %v1350
    %v1425 = vsub.f32 %v1205, %v1352
    %v1426 = vsub.f32 %v1208, %v1354
    %v1427 = vsub.f32 %v1213, %v1356
    %v1428 = vsub.f32 %v1216, %v1358
    %v1429 = vsub.f32 %v1221, %v1360
    %v1430 = vsub.f32 %v1224, %v1362
    %v1431 = vsub.f32 %v1229, %v1364
    %v1432 = vsub.f32 %v1232, %v1366
    %v1433 = vsub.f32 %v1237, %v1368
    %v1434 = vsub.f32 %v1240, %v1370
    %v1435 = vsub.f32 %v1245, %v1372
    %v1436 = vsub.f32 %v1248, %v1374
    %v1437 = vsub.f32 %v1253, %v1376
    %v1438 = vsub.f32 %v1256, %v1378
    %v1439 = vsub.f32 %v1261, %v1380
    %v1440 = vsub.f32 %v1264, %v1382
    %v1441 = vsub.f32 %v1269, %v1384
    %v1442 = vsub.f32 %v1272, %v1386
    %v1443 = vsub.f32 %v1277, %v1388
    %v1444 = vsub.f32 %v1280, %v1390
    %v1445 = vsub.f32 %v1285, %v1392
    %v1446 = vsub.f32 %v1288, %v1394
    %v1447 = vsub.f32 %v1293, %v1396
    %v1448 = vsub.f32 %v1296, %v1398
    %v1449 = vsub.f32 %v1301, %v1400
    %v1450 = vsub.f32 %v1304, %v1402
    %v1451 = vmul.f32 %v1403, 1.442695
    %v1452 = vpow.pop %v1451
    %v1453 = vmul.f32 %v1404, 1.442695
    %v1454 = vpow.pop %v1453
    %v1455 = vmul.f32 %v1405, 1.442695
    %v1456 = vpow.pop %v1455
    %v1457 = vmul.f32 %v1406, 1.442695
    %v1458 = vpow.pop %v1457
    %v1459 = vmul.f32 %v1407, 1.442695
    %v1460 = vpow.pop %v1459
    %v1461 = vmul.f32 %v1408, 1.442695
    %v1462 = vpow.pop %v1461
    %v1463 = vmul.f32 %v1409, 1.442695
    %v1464 = vpow.pop %v1463
    %v1465 = vmul.f32 %v1410, 1.442695
    %v1466 = vpow.pop %v1465
    %v1467 = vmul.f32 %v1411, 1.442695
    %v1468 = vpow.pop %v1467
    %v1469 = vmul.f32 %v1412, 1.442695
    %v1470 = vpow.pop %v1469
    %v1471 = vmul.f32 %v1413, 1.442695
    %v1472 = vpow.pop %v1471
    %v1473 = vmul.f32 %v1414, 1.442695
    %v1474 = vpow.pop %v1473
    %v1475 = vmul.f32 %v1415, 1.442695
    %v1476 = vpow.pop %v1475
    %v1477 = vmul.f32 %v1416, 1.442695
    %v1478 = vpow.pop %v1477
    %v1479 = vmul.f32 %v1417, 1.442695
    %v1480 = vpow.pop %v1479
    %v1481 = vmul.f32 %v1418, 1.442695
    %v1482 = vpow.pop %v1481
    %v1483 = vmul.f32 %v1419, 1.442695
    %v1484 = vpow.pop %v1483
    %v1485 = vmul.f32 %v1420, 1.442695
    %v1486 = vpow.pop %v1485
    %v1487 = vmul.f32 %v1421, 1.442695
    %v1488 = vpow.pop %v1487
    %v1489 = vmul.f32 %v1422, 1.442695
    %v1490 = vpow.pop %v1489
    %v1491 = vmul.f32 %v1423, 1.442695
    %v1492 = vpow.pop %v1491
    %v1493 = vmul.f32 %v1424, 1.442695
    %v1494 = vpow.pop %v1493
    %v1495 = vmul.f32 %v1425, 1.442695
    %v1496 = vpow.pop %v1495
    %v1497 = vmul.f32 %v1426, 1.442695
    %v1498 = vpow.pop %v1497
    %v1499 = vmul.f32 %v1427, 1.442695
    %v1500 = vpow.pop %v1499
    %v1501 = vmul.f32 %v1428, 1.442695
    %v1502 = vpow.pop %v1501
    %v1503 = vmul.f32 %v1429, 1.442695
    %v1504 = vpow.pop %v1503
    %v1505 = vmul.f32 %v1430, 1.442695
    %v1506 = vpow.pop %v1505
    %v1507 = vmul.f32 %v1431, 1.442695
    %v1508 = vpow.pop %v1507
    %v1509 = vmul.f32 %v1432, 1.442695
    %v1510 = vpow.pop %v1509
    %v1511 = vmul.f32 %v1433, 1.442695
    %v1512 = vpow.pop %v1511
    %v1513 = vmul.f32 %v1434, 1.442695
    %v1514 = vpow.pop %v1513
    %v1515 = vmul.f32 %v1435, 1.442695
    %v1516 = vpow.pop %v1515
    %v1517 = vmul.f32 %v1436, 1.442695
    %v1518 = vpow.pop %v1517
    %v1519 = vmul.f32 %v1437, 1.442695
    %v1520 = vpow.pop %v1519
    %v1521 = vmul.f32 %v1438, 1.442695
    %v1522 = vpow.pop %v1521
    %v1523 = vmul.f32 %v1439, 1.442695
    %v1524 = vpow.pop %v1523
    %v1525 = vmul.f32 %v1440, 1.442695
    %v1526 = vpow.pop %v1525
    %v1527 = vmul.f32 %v1441, 1.442695
    %v1528 = vpow.pop %v1527
    %v1529 = vmul.f32 %v1442, 1.442695
    %v1530 = vpow.pop %v1529
    %v1531 = vmul.f32 %v1443, 1.442695
    %v1532 = vpow.pop %v1531
    %v1533 = vmul.f32 %v1444, 1.442695
    %v1534 = vpow.pop %v1533
    %v1535 = vmul.f32 %v1445, 1.442695
    %v1536 = vpow.pop %v1535
    %v1537 = vmul.f32 %v1446, 1.442695
    %v1538 = vpow.pop %v1537
    %v1539 = vmul.f32 %v1447, 1.442695
    %v1540 = vpow.pop %v1539
    %v1541 = vmul.f32 %v1448, 1.442695
    %v1542 = vpow.pop %v1541
    %v1543 = vmul.f32 %v1449, 1.442695
    %v1544 = vpow.pop %v1543
    %v1545 = vmul.f32 %v1450, 1.442695
    %v1546 = vpow.pop %v1545
    %1547 = vadd.xlane.f32.xlu0 %v1452
    %v1548 = vpop.xlane.xlu0 %1547
    %1549 = vadd.xlane.f32.xlu0 %v1454
    %v1550 = vpop.xlane.xlu0 %1549
    %1551 = vadd.xlane.f32.xlu0 %v1456
    %v1552 = vpop.xlane.xlu0 %1551
    %1553 = vadd.xlane.f32.xlu0 %v1458
    %v1554 = vpop.xlane.xlu0 %1553
    %1555 = vadd.xlane.f32.xlu0 %v1460
    %v1556 = vpop.xlane.xlu0 %1555
    %1557 = vadd.xlane.f32.xlu0 %v1462
    %v1558 = vpop.xlane.xlu0 %1557
    %1559 = vadd.xlane.f32.xlu0 %v1464
    %v1560 = vpop.xlane.xlu0 %1559
    %1561 = vadd.xlane.f32.xlu0 %v1466
    %v1562 = vpop.xlane.xlu0 %1561
    %1563 = vadd.xlane.f32.xlu0 %v1468
    %v1564 = vpop.xlane.xlu0 %1563
    %1565 = vadd.xlane.f32.xlu0 %v1470
    %v1566 = vpop.xlane.xlu0 %1565
    %1567 = vadd.xlane.f32.xlu0 %v1472
    %v1568 = vpop.xlane.xlu0 %1567
    %1569 = vadd.xlane.f32.xlu0 %v1474
    %v1570 = vpop.xlane.xlu0 %1569
    %1571 = vadd.xlane.f32.xlu0 %v1476
    %v1572 = vpop.xlane.xlu0 %1571
    %1573 = vadd.xlane.f32.xlu0 %v1478
    %v1574 = vpop.xlane.xlu0 %1573
    %1575 = vadd.xlane.f32.xlu0 %v1480
    %v1576 = vpop.xlane.xlu0 %1575
    %1577 = vadd.xlane.f32.xlu0 %v1482
    %v1578 = vpop.xlane.xlu0 %1577
    %1579 = vadd.xlane.f32.xlu0 %v1484
    %v1580 = vpop.xlane.xlu0 %1579
    %1581 = vadd.xlane.f32.xlu0 %v1486
    %v1582 = vpop.xlane.xlu0 %1581
    %1583 = vadd.xlane.f32.xlu0 %v1488
    %v1584 = vpop.xlane.xlu0 %1583
    %1585 = vadd.xlane.f32.xlu0 %v1490
    %v1586 = vpop.xlane.xlu0 %1585
    %1587 = vadd.xlane.f32.xlu0 %v1492
    %v1588 = vpop.xlane.xlu0 %1587
    %1589 = vadd.xlane.f32.xlu0 %v1494
    %v1590 = vpop.xlane.xlu0 %1589
    %1591 = vadd.xlane.f32.xlu0 %v1496
    %v1592 = vpop.xlane.xlu0 %1591
    %1593 = vadd.xlane.f32.xlu0 %v1498
    %v1594 = vpop.xlane.xlu0 %1593
    %1595 = vadd.xlane.f32.xlu0 %v1500
    %v1596 = vpop.xlane.xlu0 %1595
    %1597 = vadd.xlane.f32.xlu0 %v1502
    %v1598 = vpop.xlane.xlu0 %1597
    %1599 = vadd.xlane.f32.xlu0 %v1504
    %v1600 = vpop.xlane.xlu0 %1599
    %1601 = vadd.xlane.f32.xlu0 %v1506
    %v1602 = vpop.xlane.xlu0 %1601
    %1603 = vadd.xlane.f32.xlu0 %v1508
    %v1604 = vpop.xlane.xlu0 %1603
    %1605 = vadd.xlane.f32.xlu0 %v1510
    %v1606 = vpop.xlane.xlu0 %1605
    %1607 = vadd.xlane.f32.xlu0 %v1512
    %v1608 = vpop.xlane.xlu0 %1607
    %1609 = vadd.xlane.f32.xlu0 %v1514
    %v1610 = vpop.xlane.xlu0 %1609
    %1611 = vadd.xlane.f32.xlu0 %v1516
    %v1612 = vpop.xlane.xlu0 %1611
    %1613 = vadd.xlane.f32.xlu0 %v1518
    %v1614 = vpop.xlane.xlu0 %1613
    %1615 = vadd.xlane.f32.xlu0 %v1520
    %v1616 = vpop.xlane.xlu0 %1615
    %1617 = vadd.xlane.f32.xlu0 %v1522
    %v1618 = vpop.xlane.xlu0 %1617
    %1619 = vadd.xlane.f32.xlu0 %v1524
    %v1620 = vpop.xlane.xlu0 %1619
    %1621 = vadd.xlane.f32.xlu0 %v1526
    %v1622 = vpop.xlane.xlu0 %1621
    %1623 = vadd.xlane.f32.xlu0 %v1528
    %v1624 = vpop.xlane.xlu0 %1623
    %1625 = vadd.xlane.f32.xlu0 %v1530
    %v1626 = vpop.xlane.xlu0 %1625
    %1627 = vadd.xlane.f32.xlu0 %v1532
    %v1628 = vpop.xlane.xlu0 %1627
    %1629 = vadd.xlane.f32.xlu0 %v1534
    %v1630 = vpop.xlane.xlu0 %1629
    %1631 = vadd.xlane.f32.xlu0 %v1536
    %v1632 = vpop.xlane.xlu0 %1631
    %1633 = vadd.xlane.f32.xlu0 %v1538
    %v1634 = vpop.xlane.xlu0 %1633
    %1635 = vadd.xlane.f32.xlu0 %v1540
    %v1636 = vpop.xlane.xlu0 %1635
    %1637 = vadd.xlane.f32.xlu0 %v1542
    %v1638 = vpop.xlane.xlu0 %1637
    %1639 = vadd.xlane.f32.xlu0 %v1544
    %v1640 = vpop.xlane.xlu0 %1639
    %1641 = vadd.xlane.f32.xlu0 %v1546
    %v1642 = vpop.xlane.xlu0 %1641
    %v1643 = vrcp.pop %v1548
    %v1644 = vrcp.pop %v1550
    %v1645 = vrcp.pop %v1552
    %v1646 = vrcp.pop %v1554
    %v1647 = vrcp.pop %v1556
    %v1648 = vrcp.pop %v1558
    %v1649 = vrcp.pop %v1560
    %v1650 = vrcp.pop %v1562
    %v1651 = vrcp.pop %v1564
    %v1652 = vrcp.pop %v1566
    %v1653 = vrcp.pop %v1568
    %v1654 = vrcp.pop %v1570
    %v1655 = vrcp.pop %v1572
    %v1656 = vrcp.pop %v1574
    %v1657 = vrcp.pop %v1576
    %v1658 = vrcp.pop %v1578
    %v1659 = vrcp.pop %v1580
    %v1660 = vrcp.pop %v1582
    %v1661 = vrcp.pop %v1584
    %v1662 = vrcp.pop %v1586
    %v1663 = vrcp.pop %v1588
    %v1664 = vrcp.pop %v1590
    %v1665 = vrcp.pop %v1592
    %v1666 = vrcp.pop %v1594
    %v1667 = vrcp.pop %v1596
    %v1668 = vrcp.pop %v1598
    %v1669 = vrcp.pop %v1600
    %v1670 = vrcp.pop %v1602
    %v1671 = vrcp.pop %v1604
    %v1672 = vrcp.pop %v1606
    %v1673 = vrcp.pop %v1608
    %v1674 = vrcp.pop %v1610
    %v1675 = vrcp.pop %v1612
    %v1676 = vrcp.pop %v1614
    %v1677 = vrcp.pop %v1616
    %v1678 = vrcp.pop %v1618
    %v1679 = vrcp.pop %v1620
    %v1680 = vrcp.pop %v1622
    %v1681 = vrcp.pop %v1624
    %v1682 = vrcp.pop %v1626
    %v1683 = vrcp.pop %v1628
    %v1684 = vrcp.pop %v1630
    %v1685 = vrcp.pop %v1632
    %v1686 = vrcp.pop %v1634
    %v1687 = vrcp.pop %v1636
    %v1688 = vrcp.pop %v1638
    %v1689 = vrcp.pop %v1640
    %v1690 = vrcp.pop %v1642
    %v1691 = vmul.f32 %v1452, %v1643
    %v1692 = vmul.f32 %v1454, %v1644
    %v1693 = vmul.f32 %v1456, %v1645
    %v1694 = vmul.f32 %v1458, %v1646
    %v1695 = vmul.f32 %v1460, %v1647
    %v1696 = vmul.f32 %v1462, %v1648
    %v1697 = vmul.f32 %v1464, %v1649
    %v1698 = vmul.f32 %v1466, %v1650
    %v1699 = vmul.f32 %v1468, %v1651
    %v1700 = vmul.f32 %v1470, %v1652
    %v1701 = vmul.f32 %v1472, %v1653
    %v1702 = vmul.f32 %v1474, %v1654
    %v1703 = vmul.f32 %v1476, %v1655
    %v1704 = vmul.f32 %v1478, %v1656
    %v1705 = vmul.f32 %v1480, %v1657
    %v1706 = vmul.f32 %v1482, %v1658
    %v1707 = vmul.f32 %v1484, %v1659
    %v1708 = vmul.f32 %v1486, %v1660
    %v1709 = vmul.f32 %v1488, %v1661
    %v1710 = vmul.f32 %v1490, %v1662
    %v1711 = vmul.f32 %v1492, %v1663
    %v1712 = vmul.f32 %v1494, %v1664
    %v1713 = vmul.f32 %v1496, %v1665
    %v1714 = vmul.f32 %v1498, %v1666
    %v1715 = vmul.f32 %v1500, %v1667
    %v1716 = vmul.f32 %v1502, %v1668
    %v1717 = vmul.f32 %v1504, %v1669
    %v1718 = vmul.f32 %v1506, %v1670
    %v1719 = vmul.f32 %v1508, %v1671
    %v1720 = vmul.f32 %v1510, %v1672
    %v1721 = vmul.f32 %v1512, %v1673
    %v1722 = vmul.f32 %v1514, %v1674
    %v1723 = vmul.f32 %v1516, %v1675
    %v1724 = vmul.f32 %v1518, %v1676
    %v1725 = vmul.f32 %v1520, %v1677
    %v1726 = vmul.f32 %v1522, %v1678
    %v1727 = vmul.f32 %v1524, %v1679
    %v1728 = vmul.f32 %v1526, %v1680
    %v1729 = vmul.f32 %v1528, %v1681
    %v1730 = vmul.f32 %v1530, %v1682
    %v1731 = vmul.f32 %v1532, %v1683
    %v1732 = vmul.f32 %v1534, %v1684
    %v1733 = vmul.f32 %v1536, %v1685
    %v1734 = vmul.f32 %v1538, %v1686
    %v1735 = vmul.f32 %v1540, %v1687
    %v1736 = vmul.f32 %v1542, %v1688
    %v1737 = vmul.f32 %v1544, %v1689
    %v1738 = vmul.f32 %v1546, %v1690
    %1739 = vst [vmem:[#allocation10] sm:$0xff] %v1691
    %1740 = vst [vmem:[#allocation10 + $0x8] sm:$0xff] %v1692
    %1741 = vst [vmem:[#allocation10 + $0x10] sm:$0xff] %v1693
    %1742 = vst [vmem:[#allocation10 + $0x18] sm:$0xff] %v1694
    %1743 = vst [vmem:[#allocation10 + $0x20] sm:$0xff] %v1695
    %1744 = vst [vmem:[#allocation10 + $0x28] sm:$0xff] %v1696
    %1745 = vst [vmem:[#allocation10 + $0x30] sm:$0xff] %v1697
    %1746 = vst [vmem:[#allocation10 + $0x38] sm:$0xff] %v1698
    %1747 = vst [vmem:[#allocation10 + $0x40] sm:$0xff] %v1699
    %1748 = vst [vmem:[#allocation10 + $0x48] sm:$0xff] %v1700
    %1749 = vst [vmem:[#allocation10 + $0x50] sm:$0xff] %v1701
    %1750 = vst [vmem:[#allocation10 + $0x58] sm:$0xff] %v1702
    %1751 = vst [vmem:[#allocation10 + $0x60] sm:$0xff] %v1703
    %1752 = vst [vmem:[#allocation10 + $0x68] sm:$0xff] %v1704
    %1753 = vst [vmem:[#allocation10 + $0x70] sm:$0xff] %v1705
    %1754 = vst [vmem:[#allocation10 + $0x78] sm:$0xff] %v1706
    %1755 = vst [vmem:[#allocation10 + $0x80] sm:$0xff] %v1707
    %1756 = vst [vmem:[#allocation10 + $0x88] sm:$0xff] %v1708
    %1757 = vst [vmem:[#allocation10 + $0x90] sm:$0xff] %v1709
    %1758 = vst [vmem:[#allocation10 + $0x98] sm:$0xff] %v1710
    %1759 = vst [vmem:[#allocation10 + $0xa0] sm:$0xff] %v1711
    %1760 = vst [vmem:[#allocation10 + $0xa8] sm:$0xff] %v1712
    %1761 = vst [vmem:[#allocation10 + $0xb0] sm:$0xff] %v1713
    %1762 = vst [vmem:[#allocation10 + $0xb8] sm:$0xff] %v1714
    %1763 = vst [vmem:[#allocation10 + $0xc0] sm:$0xff] %v1715
    %1764 = vst [vmem:[#allocation10 + $0xc8] sm:$0xff] %v1716
    %1765 = vst [vmem:[#allocation10 + $0xd0] sm:$0xff] %v1717
    %1766 = vst [vmem:[#allocation10 + $0xd8] sm:$0xff] %v1718
    %1767 = vst [vmem:[#allocation10 + $0xe0] sm:$0xff] %v1719
    %1768 = vst [vmem:[#allocation10 + $0xe8] sm:$0xff] %v1720
    %1769 = vst [vmem:[#allocation10 + $0xf0] sm:$0xff] %v1721
    %1770 = vst [vmem:[#allocation10 + $0xf8] sm:$0xff] %v1722
    %1771 = vst [vmem:[#allocation10 + $0x100] sm:$0xff] %v1723
    %1772 = vst [vmem:[#allocation10 + $0x108] sm:$0xff] %v1724
    %1773 = vst [vmem:[#allocation10 + $0x110] sm:$0xff] %v1725
    %1774 = vst [vmem:[#allocation10 + $0x118] sm:$0xff] %v1726
    %1775 = vst [vmem:[#allocation10 + $0x120] sm:$0xff] %v1727
    %1776 = vst [vmem:[#allocation10 + $0x128] sm:$0xff] %v1728
    %1777 = vst [vmem:[#allocation10 + $0x130] sm:$0xff] %v1729
    %1778 = vst [vmem:[#allocation10 + $0x138] sm:$0xff] %v1730
    %1779 = vst [vmem:[#allocation10 + $0x140] sm:$0xff] %v1731
    %1780 = vst [vmem:[#allocation10 + $0x148] sm:$0xff] %v1732
    %1781 = vst [vmem:[#allocation10 + $0x150] sm:$0xff] %v1733
    %1782 = vst [vmem:[#allocation10 + $0x158] sm:$0xff] %v1734
    %1783 = vst [vmem:[#allocation10 + $0x160] sm:$0xff] %v1735
    %1784 = vst [vmem:[#allocation10 + $0x168] sm:$0xff] %v1736
    %1785 = vst [vmem:[#allocation10 + $0x170] sm:$0xff] %v1737
    %1786 = vst [vmem:[#allocation10 + $0x178] sm:$0xff] %v1738
    // Predicated region
    $region46: #{tpu_custom_call.1} parent=1 // pred_check
      _
    $region47: #{tpu_custom_call.1} parent=1 // pred_check_branch
      %1788 = sbr.rel (0) target = $region49
    $region48: #{tpu_custom_call.1} parent=1 // pred_region
      %s1790 = ssub.s32 6144, 6144
      %1791 = vsyncadd [#allocation4], %s1790
      %s1792 = sshll.u32 [#allocation10], 4
      %s1793 = int_to_ptr.vmem [resolvable:$true] %s1792
      %1798 = dma.vmem_to_hbm [thread:$0]  %s1793, 6144, %s7, [#allocation4], 128, 128, 8
    $region49: #{tpu_custom_call.1} parent=1 // pred_fallthru
      _
    // Predicated region
    $region50: #{tpu_custom_call.1} parent=1 // pred_check
      _
    $region51: #{tpu_custom_call.1} parent=1 // pred_check_branch
      %1800 = sbr.rel (0) target = $region53
    $region52: #{tpu_custom_call.1} parent=1 // pred_region
      %1801 = dma.done [#allocation4], 6144
    $region53: #{tpu_custom_call.1} parent=1 // pred_fallthru
      _
    %1802 = vsyncpa [#allocation3], 1
    %1803 = vsyncpa [#allocation6], 1
    %1804 = vsyncpa [#allocation9], 1
    %1805 = vsyncpa [#allocation4], 1

</llo_original>
